<compile_context>
chip_gen: v7x
topology: tpu7x:2x2x1
jax: 0.10.0
libtpu: 0.0.40
codegen_flags: <defaults>
</compile_context>

<pallas_src>
import jax
import jax.numpy as jnp
import numpy as np
from jax import lax
from jax.experimental import pallas as pl
from jax.experimental.pallas import tpu as pltpu


def _round_up(x, m):
    return ((x + m - 1) // m) * m


def make_classifier_kernel(H, W, C, K_sub, R, R_pad, Wp, L, dilations, max_pad):
    """Builds the Pallas kernel body (all shape/tap info is static, closed over)."""
    taps = []
    for d in dilations:               # branch order
        for ky in range(3):           # 3x3 taps
            for kx in range(3):
                taps.append((max_pad - d + ky * d, max_pad - d + kx * d))
    assert len(taps) * C == R
    HWp = H * Wp

    def kernel(x_ref, w_ref, b_ref, out_ref, xflat_ref, xcol_ref):
        # x_ref    : (1, C, H*W)      unpadded image, bf16, spatial on lanes
        # w_ref    : (K_sub, R_pad)   dense bf16 weight slab, cols (branch,ky,kx,c)
        # b_ref    : (K_sub, 1)       branch-summed f32 bias
        # out_ref  : (1, K_sub, H*Wp) f32, spatial lane-dense (NCHW-compatible)
        # xflat_ref: (C, L)           bf16 scratch: row-flattened zero-padded image
        # xcol_ref : (R_pad, H*Wp)    bf16 scratch: im2col slab
        #
        # Zero-fill every step (scratch is per-core; with the batch axis marked
        # "parallel" a first-step-only init would miss the second core).
        xflat_ref[...] = jnp.zeros_like(xflat_ref)
        xcol_ref[R:, :] = jnp.zeros((R_pad - R, HWp), xcol_ref.dtype)

        # Scatter the unpadded image rows into the interior of the flattened
        # padded image.  Only H*W real pixels were DMA'd from HBM.
        for y in range(H):
            dst = (y + max_pad) * Wp + max_pad
            xflat_ref[:, dst:dst + W] = x_ref[0, :, y * W:(y + 1) * W]

        # im2col assembly: one dense (C, H*Wp) lane-contiguous copy per tap.
        # Row pitch Wp >= W + 2*max_pad makes tap (h0, w0) a single static
        # slice at offset h0*Wp + w0 (the Wp-W garbage columns per output row
        # are discarded by the wrapper).
        for j, (h0, w0) in enumerate(taps):
            off = h0 * Wp + w0
            xcol_ref[j * C:(j + 1) * C, :] = xflat_ref[:, off:off + HWp]

        # Single deep MXU contraction, bf16 x bf16 with f32 accumulation:
        # (K_sub, R_pad) x (R_pad, H*Wp) -> (K_sub, H*Wp).
        acc = lax.dot_general(
            w_ref[...], xcol_ref[...],
            dimension_numbers=(((1,), (0,)), ((), ())),
            preferred_element_type=jnp.float32)
        out_ref[0] = (acc + b_ref[...]).astype(out_ref.dtype)

    return kernel


def classifier_forward(x_nchw, weights_oihw, biases, dilations):
    """x: (N,C,H,W); weights_oihw: (NB,K,C,3,3) (PyTorch OIHW per branch); biases: (NB,K)."""
    N, C, H, W = x_nchw.shape
    NB, K = weights_oihw.shape[0], weights_oihw.shape[1]
    assert weights_oihw.shape == (NB, K, C, 3, 3)
    max_pad = max(dilations)
    Wp = W + 2 * max_pad                      # padded row pitch
    HWp = H * Wp                              # wide (lane-dense) output columns
    R = NB * 9 * C                            # folded contraction depth
    R_pad = _round_up(R, 128)                 # full 128-deep MXU passes
    K_sub = _round_up(K, 8)                   # full sublane rows for lhs/output
    L = _round_up(2 * max_pad * (Wp + 1) + HWp, 128)   # flat padded-image length

    # --- wrapper-side layout plumbing (plain JAX, all tiny) -----------------
    # Unpadded image, spatial flattened onto the lane axis, shipped in bf16.
    x_flat = x_nchw.reshape(N, C, H * W).astype(jnp.bfloat16)

    # Dense (K_sub, R_pad) bf16 weight slab, columns ordered (branch, ky, kx, c).
    w = jnp.transpose(weights_oihw, (1, 0, 3, 4, 2)).reshape(K, R)
    w = jnp.pad(w, ((0, K_sub - K), (0, R_pad - R))).astype(jnp.bfloat16)

    # All branches are summed, so their biases can be summed once up front.
    b = jnp.pad(jnp.sum(biases, axis=0), (0, K_sub - K)).reshape(K_sub, 1)
    b = b.astype(jnp.float32)

    kernel = make_classifier_kernel(H, W, C, K_sub, R, R_pad, Wp, L,
                                    tuple(dilations), max_pad)

    flops = 2 * N * K_sub * R_pad * HWp
    bytes_accessed = (N * C * H * W * 2            # bf16 input
                      + K_sub * R_pad * 2          # bf16 weights
                      + K_sub * 4                  # f32 bias
                      + N * K_sub * HWp * 4)       # f32 output

    out_wide = pl.pallas_call(
        kernel,
        out_shape=jax.ShapeDtypeStruct((N, K_sub, HWp), jnp.float32),
        grid_spec=pltpu.PrefetchScalarGridSpec(
            num_scalar_prefetch=0,
            grid=(N,),
            in_specs=[
                pl.BlockSpec((1, C, H * W), lambda n: (n, 0, 0)),
                pl.BlockSpec((K_sub, R_pad), lambda n: (0, 0)),   # grid-invariant
                pl.BlockSpec((K_sub, 1), lambda n: (0, 0)),       # grid-invariant
            ],
            out_specs=pl.BlockSpec((1, K_sub, HWp), lambda n: (n, 0, 0)),
            scratch_shapes=[
                pltpu.VMEM((C, L), jnp.bfloat16),        # flattened padded image
                pltpu.VMEM((R_pad, HWp), jnp.bfloat16),  # im2col slab
            ],
        ),
        compiler_params=pltpu.CompilerParams(
            dimension_semantics=("parallel",),
        ),
        cost_estimate=pl.CostEstimate(
            flops=flops, transcendentals=0, bytes_accessed=bytes_accessed),
    )(x_flat, w, b)

    # (N, K_sub, H*Wp) -> (N, K_sub, H, Wp): free contiguous reshape, then drop
    # the class padding rows and the garbage halo columns -> exact NCHW output.
    out = out_wide.reshape(N, K_sub, H, Wp)[:, :K, :, :W]
    return out.astype(x_nchw.dtype)


def reference_forward(x_nchw, weights_oihw, biases, dilations):
    """Pure-JAX reference using lax.conv_general_dilated (matches nn.Conv2d)."""
    out = None
    for i, d in enumerate(dilations):
        y = lax.conv_general_dilated(
            x_nchw, weights_oihw[i],
            window_strides=(1, 1),
            padding=((d, d), (d, d)),
            rhs_dilation=(d, d),
            dimension_numbers=("NCHW", "OIHW", "NCHW"),
        ) + biases[i][None, :, None, None]
        out = y if out is None else out + y
    return out


if __name__ == "__main__":
    # Small, DeepLabv2-shaped config.
    batch, inplanes, spatial = 2, 4, 16
    num_classes = 5
    dilation_series = [6, 12, 18, 24]
    padding_series = [6, 12, 18, 24]   # == dilation_series -> "same" spatial size
    assert dilation_series == padding_series

    NB = len(dilation_series)
    key = jax.random.PRNGKey(0)
    k_x, k_w, k_b = jax.random.split(key, 3)

    x = jax.random.normal(k_x, (batch, inplanes, spatial, spatial), jnp.float32)
    # weight.data.normal_(0, 0.01) per branch; PyTorch OIHW layout.
    weights = 0.01 * jax.random.normal(
        k_w, (NB, num_classes, inplanes, 3, 3), jnp.float32)
    # Conv2d bias (not re-initialized in the module) -- deterministic synthetic init.
    bound = 1.0 / np.sqrt(inplanes * 3 * 3)
    biases = jax.random.uniform(
        k_b, (NB, num_classes), jnp.float32, minval=-bound, maxval=bound)

    out = classifier_forward(x, weights, biases, dilation_series)
    out = jax.block_until_ready(out)

    ref = reference_forward(x, weights, biases, dilation_series)
    ref = jax.block_until_ready(ref)

    # bf16 MXU operands with f32 accumulation -> modestly loosened tolerance
    # versus the all-f32 reference.
    np.testing.assert_allclose(np.asarray(out), np.asarray(ref),
                               rtol=2e-2, atol=2e-2)
    print("KERNEL_OK")
</pallas_src>

<mosaic_0001>
module attributes {stable_mosaic.version = 11 : i64} {
  func.func @kernel(%arg0: i32, %arg1: memref<1x4x256xbf16, #tpu.memory_space<vmem>>, %arg2: memref<8x256xbf16, #tpu.memory_space<vmem>>, %arg3: memref<8x1xf32, #tpu.memory_space<vmem>>, %arg4: memref<1x8x1024xf32, #tpu.memory_space<vmem>>, %arg5: memref<4x4224xbf16, #tpu.memory_space<vmem>>, %arg6: memref<256x1024xbf16, #tpu.memory_space<vmem>>) attributes {dimension_semantics = [#tpu.dimension_semantics<parallel>], iteration_bounds = array<i64: 2>, scalar_prefetch = 0 : i64, scratch_operands = 2 : i64, tpu.core_type = #tpu.core_type<tc>, window_params = [{transform_indices = @transform_0, window_bounds = array<i64: 1, 4, 256>}, {pipeline_mode = #tpu.pipeline_mode<synchronous>, transform_indices = @transform_1, window_bounds = array<i64: 8, 256>}, {pipeline_mode = #tpu.pipeline_mode<synchronous>, transform_indices = @transform_2, window_bounds = array<i64: 8, 1>}, {transform_indices = @transform_3, window_bounds = array<i64: 1, 8, 1024>}]} {
    %cst = arith.constant 0.000000e+00 : bf16
    %0 = vector.broadcast %cst : bf16 to vector<4x4224xbf16>
    %c0 = arith.constant 0 : index
    %c0_0 = arith.constant 0 : index
    %1 = vector.load %arg5[%c0, %c0_0] : memref<4x4224xbf16, #tpu.memory_space<vmem>>, vector<4x4224xbf16>
    tpu.vector_store %arg5[%c0, %c0_0], %0 {strides = array<i32>} : memref<4x4224xbf16, #tpu.memory_space<vmem>>, vector<4x4224xbf16>,
    %cst_1 = arith.constant 0.000000e+00 : bf16
    %2 = vector.broadcast %cst_1 : bf16 to vector<112x1024xbf16>
    %c144 = arith.constant 144 : index
    %c0_2 = arith.constant 0 : index
    %3 = vector.load %arg6[%c144, %c0_2] : memref<256x1024xbf16, #tpu.memory_space<vmem>>, vector<112x1024xbf16>
    tpu.vector_store %arg6[%c144, %c0_2], %2 {strides = array<i32>} : memref<256x1024xbf16, #tpu.memory_space<vmem>>, vector<112x1024xbf16>,
    %c0_3 = arith.constant 0 : index
    %c0_4 = arith.constant 0 : index
    %c0_5 = arith.constant 0 : index
    %4 = vector.load %arg1[%c0_3, %c0_4, %c0_5] : memref<1x4x256xbf16, #tpu.memory_space<vmem>>, vector<1x4x16xbf16>
    %5 = vector.shape_cast %4 : vector<1x4x16xbf16> to vector<4x16xbf16>
    %c0_6 = arith.constant 0 : index
    %c1560 = arith.constant 1560 : index
    %6 = vector.load %arg5[%c0_6, %c1560] : memref<4x4224xbf16, #tpu.memory_space<vmem>>, vector<4x16xbf16>
    tpu.vector_store %arg5[%c0_6, %c1560], %5 {strides = array<i32>} : memref<4x4224xbf16, #tpu.memory_space<vmem>>, vector<4x16xbf16>,
    %c0_7 = arith.constant 0 : index
    %c0_8 = arith.constant 0 : index
    %c16 = arith.constant 16 : index
    %7 = vector.load %arg1[%c0_7, %c0_8, %c16] : memref<1x4x256xbf16, #tpu.memory_space<vmem>>, vector<1x4x16xbf16>
    %8 = vector.shape_cast %7 : vector<1x4x16xbf16> to vector<4x16xbf16>
    %c0_9 = arith.constant 0 : index
    %c1624 = arith.constant 1624 : index
    %9 = vector.load %arg5[%c0_9, %c1624] : memref<4x4224xbf16, #tpu.memory_space<vmem>>, vector<4x16xbf16>
    tpu.vector_store %arg5[%c0_9, %c1624], %8 {strides = array<i32>} : memref<4x4224xbf16, #tpu.memory_space<vmem>>, vector<4x16xbf16>,
    %c0_10 = arith.constant 0 : index
    %c0_11 = arith.constant 0 : index
    %c32 = arith.constant 32 : index
    %10 = vector.load %arg1[%c0_10, %c0_11, %c32] : memref<1x4x256xbf16, #tpu.memory_space<vmem>>, vector<1x4x16xbf16>
    %11 = vector.shape_cast %10 : vector<1x4x16xbf16> to vector<4x16xbf16>
    %c0_12 = arith.constant 0 : index
    %c1688 = arith.constant 1688 : index
    %12 = vector.load %arg5[%c0_12, %c1688] : memref<4x4224xbf16, #tpu.memory_space<vmem>>, vector<4x16xbf16>
    tpu.vector_store %arg5[%c0_12, %c1688], %11 {strides = array<i32>} : memref<4x4224xbf16, #tpu.memory_space<vmem>>, vector<4x16xbf16>,
    %c0_13 = arith.constant 0 : index
    %c0_14 = arith.constant 0 : index
    %c48 = arith.constant 48 : index
    %13 = vector.load %arg1[%c0_13, %c0_14, %c48] : memref<1x4x256xbf16, #tpu.memory_space<vmem>>, vector<1x4x16xbf16>
    %14 = vector.shape_cast %13 : vector<1x4x16xbf16> to vector<4x16xbf16>
    %c0_15 = arith.constant 0 : index
    %c1752 = arith.constant 1752 : index
    %15 = vector.load %arg5[%c0_15, %c1752] : memref<4x4224xbf16, #tpu.memory_space<vmem>>, vector<4x16xbf16>
    tpu.vector_store %arg5[%c0_15, %c1752], %14 {strides = array<i32>} : memref<4x4224xbf16, #tpu.memory_space<vmem>>, vector<4x16xbf16>,
    %c0_16 = arith.constant 0 : index
    %c0_17 = arith.constant 0 : index
    %c64 = arith.constant 64 : index
    %16 = vector.load %arg1[%c0_16, %c0_17, %c64] : memref<1x4x256xbf16, #tpu.memory_space<vmem>>, vector<1x4x16xbf16>
    %17 = vector.shape_cast %16 : vector<1x4x16xbf16> to vector<4x16xbf16>
    %c0_18 = arith.constant 0 : index
    %c1816 = arith.constant 1816 : index
    %18 = vector.load %arg5[%c0_18, %c1816] : memref<4x4224xbf16, #tpu.memory_space<vmem>>, vector<4x16xbf16>
    tpu.vector_store %arg5[%c0_18, %c1816], %17 {strides = array<i32>} : memref<4x4224xbf16, #tpu.memory_space<vmem>>, vector<4x16xbf16>,
    %c0_19 = arith.constant 0 : index
    %c0_20 = arith.constant 0 : index
    %c80 = arith.constant 80 : index
    %19 = vector.load %arg1[%c0_19, %c0_20, %c80] : memref<1x4x256xbf16, #tpu.memory_space<vmem>>, vector<1x4x16xbf16>
    %20 = vector.shape_cast %19 : vector<1x4x16xbf16> to vector<4x16xbf16>
    %c0_21 = arith.constant 0 : index
    %c1880 = arith.constant 1880 : index
    %21 = vector.load %arg5[%c0_21, %c1880] : memref<4x4224xbf16, #tpu.memory_space<vmem>>, vector<4x16xbf16>
    tpu.vector_store %arg5[%c0_21, %c1880], %20 {strides = array<i32>} : memref<4x4224xbf16, #tpu.memory_space<vmem>>, vector<4x16xbf16>,
    %c0_22 = arith.constant 0 : index
    %c0_23 = arith.constant 0 : index
    %c96 = arith.constant 96 : index
    %22 = vector.load %arg1[%c0_22, %c0_23, %c96] : memref<1x4x256xbf16, #tpu.memory_space<vmem>>, vector<1x4x16xbf16>
    %23 = vector.shape_cast %22 : vector<1x4x16xbf16> to vector<4x16xbf16>
    %c0_24 = arith.constant 0 : index
    %c1944 = arith.constant 1944 : index
    %24 = vector.load %arg5[%c0_24, %c1944] : memref<4x4224xbf16, #tpu.memory_space<vmem>>, vector<4x16xbf16>
    tpu.vector_store %arg5[%c0_24, %c1944], %23 {strides = array<i32>} : memref<4x4224xbf16, #tpu.memory_space<vmem>>, vector<4x16xbf16>,
    %c0_25 = arith.constant 0 : index
    %c0_26 = arith.constant 0 : index
    %c112 = arith.constant 112 : index
    %25 = vector.load %arg1[%c0_25, %c0_26, %c112] : memref<1x4x256xbf16, #tpu.memory_space<vmem>>, vector<1x4x16xbf16>
    %26 = vector.shape_cast %25 : vector<1x4x16xbf16> to vector<4x16xbf16>
    %c0_27 = arith.constant 0 : index
    %c2008 = arith.constant 2008 : index
    %27 = vector.load %arg5[%c0_27, %c2008] : memref<4x4224xbf16, #tpu.memory_space<vmem>>, vector<4x16xbf16>
    tpu.vector_store %arg5[%c0_27, %c2008], %26 {strides = array<i32>} : memref<4x4224xbf16, #tpu.memory_space<vmem>>, vector<4x16xbf16>,
    %c0_28 = arith.constant 0 : index
    %c0_29 = arith.constant 0 : index
    %c128 = arith.constant 128 : index
    %28 = vector.load %arg1[%c0_28, %c0_29, %c128] : memref<1x4x256xbf16, #tpu.memory_space<vmem>>, vector<1x4x16xbf16>
    %29 = vector.shape_cast %28 : vector<1x4x16xbf16> to vector<4x16xbf16>
    %c0_30 = arith.constant 0 : index
    %c2072 = arith.constant 2072 : index
    %30 = vector.load %arg5[%c0_30, %c2072] : memref<4x4224xbf16, #tpu.memory_space<vmem>>, vector<4x16xbf16>
    tpu.vector_store %arg5[%c0_30, %c2072], %29 {strides = array<i32>} : memref<4x4224xbf16, #tpu.memory_space<vmem>>, vector<4x16xbf16>,
    %c0_31 = arith.constant 0 : index
    %c0_32 = arith.constant 0 : index
    %c144_33 = arith.constant 144 : index
    %31 = vector.load %arg1[%c0_31, %c0_32, %c144_33] : memref<1x4x256xbf16, #tpu.memory_space<vmem>>, vector<1x4x16xbf16>
    %32 = vector.shape_cast %31 : vector<1x4x16xbf16> to vector<4x16xbf16>
    %c0_34 = arith.constant 0 : index
    %c2136 = arith.constant 2136 : index
    %33 = vector.load %arg5[%c0_34, %c2136] : memref<4x4224xbf16, #tpu.memory_space<vmem>>, vector<4x16xbf16>
    tpu.vector_store %arg5[%c0_34, %c2136], %32 {strides = array<i32>} : memref<4x4224xbf16, #tpu.memory_space<vmem>>, vector<4x16xbf16>,
    %c0_35 = arith.constant 0 : index
    %c0_36 = arith.constant 0 : index
    %c160 = arith.constant 160 : index
    %34 = vector.load %arg1[%c0_35, %c0_36, %c160] : memref<1x4x256xbf16, #tpu.memory_space<vmem>>, vector<1x4x16xbf16>
    %35 = vector.shape_cast %34 : vector<1x4x16xbf16> to vector<4x16xbf16>
    %c0_37 = arith.constant 0 : index
    %c2200 = arith.constant 2200 : index
    %36 = vector.load %arg5[%c0_37, %c2200] : memref<4x4224xbf16, #tpu.memory_space<vmem>>, vector<4x16xbf16>
    tpu.vector_store %arg5[%c0_37, %c2200], %35 {strides = array<i32>} : memref<4x4224xbf16, #tpu.memory_space<vmem>>, vector<4x16xbf16>,
    %c0_38 = arith.constant 0 : index
    %c0_39 = arith.constant 0 : index
    %c176 = arith.constant 176 : index
    %37 = vector.load %arg1[%c0_38, %c0_39, %c176] : memref<1x4x256xbf16, #tpu.memory_space<vmem>>, vector<1x4x16xbf16>
    %38 = vector.shape_cast %37 : vector<1x4x16xbf16> to vector<4x16xbf16>
    %c0_40 = arith.constant 0 : index
    %c2264 = arith.constant 2264 : index
    %39 = vector.load %arg5[%c0_40, %c2264] : memref<4x4224xbf16, #tpu.memory_space<vmem>>, vector<4x16xbf16>
    tpu.vector_store %arg5[%c0_40, %c2264], %38 {strides = array<i32>} : memref<4x4224xbf16, #tpu.memory_space<vmem>>, vector<4x16xbf16>,
    %c0_41 = arith.constant 0 : index
    %c0_42 = arith.constant 0 : index
    %c192 = arith.constant 192 : index
    %40 = vector.load %arg1[%c0_41, %c0_42, %c192] : memref<1x4x256xbf16, #tpu.memory_space<vmem>>, vector<1x4x16xbf16>
    %41 = vector.shape_cast %40 : vector<1x4x16xbf16> to vector<4x16xbf16>
    %c0_43 = arith.constant 0 : index
    %c2328 = arith.constant 2328 : index
    %42 = vector.load %arg5[%c0_43, %c2328] : memref<4x4224xbf16, #tpu.memory_space<vmem>>, vector<4x16xbf16>
    tpu.vector_store %arg5[%c0_43, %c2328], %41 {strides = array<i32>} : memref<4x4224xbf16, #tpu.memory_space<vmem>>, vector<4x16xbf16>,
    %c0_44 = arith.constant 0 : index
    %c0_45 = arith.constant 0 : index
    %c208 = arith.constant 208 : index
    %43 = vector.load %arg1[%c0_44, %c0_45, %c208] : memref<1x4x256xbf16, #tpu.memory_space<vmem>>, vector<1x4x16xbf16>
    %44 = vector.shape_cast %43 : vector<1x4x16xbf16> to vector<4x16xbf16>
    %c0_46 = arith.constant 0 : index
    %c2392 = arith.constant 2392 : index
    %45 = vector.load %arg5[%c0_46, %c2392] : memref<4x4224xbf16, #tpu.memory_space<vmem>>, vector<4x16xbf16>
    tpu.vector_store %arg5[%c0_46, %c2392], %44 {strides = array<i32>} : memref<4x4224xbf16, #tpu.memory_space<vmem>>, vector<4x16xbf16>,
    %c0_47 = arith.constant 0 : index
    %c0_48 = arith.constant 0 : index
    %c224 = arith.constant 224 : index
    %46 = vector.load %arg1[%c0_47, %c0_48, %c224] : memref<1x4x256xbf16, #tpu.memory_space<vmem>>, vector<1x4x16xbf16>
    %47 = vector.shape_cast %46 : vector<1x4x16xbf16> to vector<4x16xbf16>
    %c0_49 = arith.constant 0 : index
    %c2456 = arith.constant 2456 : index
    %48 = vector.load %arg5[%c0_49, %c2456] : memref<4x4224xbf16, #tpu.memory_space<vmem>>, vector<4x16xbf16>
    tpu.vector_store %arg5[%c0_49, %c2456], %47 {strides = array<i32>} : memref<4x4224xbf16, #tpu.memory_space<vmem>>, vector<4x16xbf16>,
    %c0_50 = arith.constant 0 : index
    %c0_51 = arith.constant 0 : index
    %c240 = arith.constant 240 : index
    %49 = vector.load %arg1[%c0_50, %c0_51, %c240] : memref<1x4x256xbf16, #tpu.memory_space<vmem>>, vector<1x4x16xbf16>
    %50 = vector.shape_cast %49 : vector<1x4x16xbf16> to vector<4x16xbf16>
    %c0_52 = arith.constant 0 : index
    %c2520 = arith.constant 2520 : index
    %51 = vector.load %arg5[%c0_52, %c2520] : memref<4x4224xbf16, #tpu.memory_space<vmem>>, vector<4x16xbf16>
    tpu.vector_store %arg5[%c0_52, %c2520], %50 {strides = array<i32>} : memref<4x4224xbf16, #tpu.memory_space<vmem>>, vector<4x16xbf16>,
    %c0_53 = arith.constant 0 : index
    %c1170 = arith.constant 1170 : index
    %52 = vector.load %arg5[%c0_53, %c1170] : memref<4x4224xbf16, #tpu.memory_space<vmem>>, vector<4x1024xbf16>
    %c0_54 = arith.constant 0 : index
    %c0_55 = arith.constant 0 : index
    %53 = vector.load %arg6[%c0_54, %c0_55] : memref<256x1024xbf16, #tpu.memory_space<vmem>>, vector<4x1024xbf16>
    tpu.vector_store %arg6[%c0_54, %c0_55], %52 {strides = array<i32>} : memref<256x1024xbf16, #tpu.memory_space<vmem>>, vector<4x1024xbf16>,
    %c0_56 = arith.constant 0 : index
    %c1176 = arith.constant 1176 : index
    %54 = vector.load %arg5[%c0_56, %c1176] : memref<4x4224xbf16, #tpu.memory_space<vmem>>, vector<4x1024xbf16>
    %c4 = arith.constant 4 : index
    %c0_57 = arith.constant 0 : index
    %55 = vector.load %arg6[%c4, %c0_57] : memref<256x1024xbf16, #tpu.memory_space<vmem>>, vector<4x1024xbf16>
    tpu.vector_store %arg6[%c4, %c0_57], %54 {strides = array<i32>} : memref<256x1024xbf16, #tpu.memory_space<vmem>>, vector<4x1024xbf16>,
    %c0_58 = arith.constant 0 : index
    %c1182 = arith.constant 1182 : index
    %56 = vector.load %arg5[%c0_58, %c1182] : memref<4x4224xbf16, #tpu.memory_space<vmem>>, vector<4x1024xbf16>
    %c8 = arith.constant 8 : index
    %c0_59 = arith.constant 0 : index
    %57 = vector.load %arg6[%c8, %c0_59] : memref<256x1024xbf16, #tpu.memory_space<vmem>>, vector<4x1024xbf16>
    tpu.vector_store %arg6[%c8, %c0_59], %56 {strides = array<i32>} : memref<256x1024xbf16, #tpu.memory_space<vmem>>, vector<4x1024xbf16>,
    %c0_60 = arith.constant 0 : index
    %c1554 = arith.constant 1554 : index
    %58 = vector.load %arg5[%c0_60, %c1554] : memref<4x4224xbf16, #tpu.memory_space<vmem>>, vector<4x1024xbf16>
    %c12 = arith.constant 12 : index
    %c0_61 = arith.constant 0 : index
    %59 = vector.load %arg6[%c12, %c0_61] : memref<256x1024xbf16, #tpu.memory_space<vmem>>, vector<4x1024xbf16>
    tpu.vector_store %arg6[%c12, %c0_61], %58 {strides = array<i32>} : memref<256x1024xbf16, #tpu.memory_space<vmem>>, vector<4x1024xbf16>,
    %c0_62 = arith.constant 0 : index
    %c1560_63 = arith.constant 1560 : index
    %60 = vector.load %arg5[%c0_62, %c1560_63] : memref<4x4224xbf16, #tpu.memory_space<vmem>>, vector<4x1024xbf16>
    %c16_64 = arith.constant 16 : index
    %c0_65 = arith.constant 0 : index
    %61 = vector.load %arg6[%c16_64, %c0_65] : memref<256x1024xbf16, #tpu.memory_space<vmem>>, vector<4x1024xbf16>
    tpu.vector_store %arg6[%c16_64, %c0_65], %60 {strides = array<i32>} : memref<256x1024xbf16, #tpu.memory_space<vmem>>, vector<4x1024xbf16>,
    %c0_66 = arith.constant 0 : index
    %c1566 = arith.constant 1566 : index
    %62 = vector.load %arg5[%c0_66, %c1566] : memref<4x4224xbf16, #tpu.memory_space<vmem>>, vector<4x1024xbf16>
    %c20 = arith.constant 20 : index
    %c0_67 = arith.constant 0 : index
    %63 = vector.load %arg6[%c20, %c0_67] : memref<256x1024xbf16, #tpu.memory_space<vmem>>, vector<4x1024xbf16>
    tpu.vector_store %arg6[%c20, %c0_67], %62 {strides = array<i32>} : memref<256x1024xbf16, #tpu.memory_space<vmem>>, vector<4x1024xbf16>,
    %c0_68 = arith.constant 0 : index
    %c1938 = arith.constant 1938 : index
    %64 = vector.load %arg5[%c0_68, %c1938] : memref<4x4224xbf16, #tpu.memory_space<vmem>>, vector<4x1024xbf16>
    %c24 = arith.constant 24 : index
    %c0_69 = arith.constant 0 : index
    %65 = vector.load %arg6[%c24, %c0_69] : memref<256x1024xbf16, #tpu.memory_space<vmem>>, vector<4x1024xbf16>
    tpu.vector_store %arg6[%c24, %c0_69], %64 {strides = array<i32>} : memref<256x1024xbf16, #tpu.memory_space<vmem>>, vector<4x1024xbf16>,
    %c0_70 = arith.constant 0 : index
    %c1944_71 = arith.constant 1944 : index
    %66 = vector.load %arg5[%c0_70, %c1944_71] : memref<4x4224xbf16, #tpu.memory_space<vmem>>, vector<4x1024xbf16>
    %c28 = arith.constant 28 : index
    %c0_72 = arith.constant 0 : index
    %67 = vector.load %arg6[%c28, %c0_72] : memref<256x1024xbf16, #tpu.memory_space<vmem>>, vector<4x1024xbf16>
    tpu.vector_store %arg6[%c28, %c0_72], %66 {strides = array<i32>} : memref<256x1024xbf16, #tpu.memory_space<vmem>>, vector<4x1024xbf16>,
    %c0_73 = arith.constant 0 : index
    %c1950 = arith.constant 1950 : index
    %68 = vector.load %arg5[%c0_73, %c1950] : memref<4x4224xbf16, #tpu.memory_space<vmem>>, vector<4x1024xbf16>
    %c32_74 = arith.constant 32 : index
    %c0_75 = arith.constant 0 : index
    %69 = vector.load %arg6[%c32_74, %c0_75] : memref<256x1024xbf16, #tpu.memory_space<vmem>>, vector<4x1024xbf16>
    tpu.vector_store %arg6[%c32_74, %c0_75], %68 {strides = array<i32>} : memref<256x1024xbf16, #tpu.memory_space<vmem>>, vector<4x1024xbf16>,
    %c0_76 = arith.constant 0 : index
    %c780 = arith.constant 780 : index
    %70 = vector.load %arg5[%c0_76, %c780] : memref<4x4224xbf16, #tpu.memory_space<vmem>>, vector<4x1024xbf16>
    %c36 = arith.constant 36 : index
    %c0_77 = arith.constant 0 : index
    %71 = vector.load %arg6[%c36, %c0_77] : memref<256x1024xbf16, #tpu.memory_space<vmem>>, vector<4x1024xbf16>
    tpu.vector_store %arg6[%c36, %c0_77], %70 {strides = array<i32>} : memref<256x1024xbf16, #tpu.memory_space<vmem>>, vector<4x1024xbf16>,
    %c0_78 = arith.constant 0 : index
    %c792 = arith.constant 792 : index
    %72 = vector.load %arg5[%c0_78, %c792] : memref<4x4224xbf16, #tpu.memory_space<vmem>>, vector<4x1024xbf16>
    %c40 = arith.constant 40 : index
    %c0_79 = arith.constant 0 : index
    %73 = vector.load %arg6[%c40, %c0_79] : memref<256x1024xbf16, #tpu.memory_space<vmem>>, vector<4x1024xbf16>
    tpu.vector_store %arg6[%c40, %c0_79], %72 {strides = array<i32>} : memref<256x1024xbf16, #tpu.memory_space<vmem>>, vector<4x1024xbf16>,
    %c0_80 = arith.constant 0 : index
    %c804 = arith.constant 804 : index
    %74 = vector.load %arg5[%c0_80, %c804] : memref<4x4224xbf16, #tpu.memory_space<vmem>>, vector<4x1024xbf16>
    %c44 = arith.constant 44 : index
    %c0_81 = arith.constant 0 : index
    %75 = vector.load %arg6[%c44, %c0_81] : memref<256x1024xbf16, #tpu.memory_space<vmem>>, vector<4x1024xbf16>
    tpu.vector_store %arg6[%c44, %c0_81], %74 {strides = array<i32>} : memref<256x1024xbf16, #tpu.memory_space<vmem>>, vector<4x1024xbf16>,
    %c0_82 = arith.constant 0 : index
    %c1548 = arith.constant 1548 : index
    %76 = vector.load %arg5[%c0_82, %c1548] : memref<4x4224xbf16, #tpu.memory_space<vmem>>, vector<4x1024xbf16>
    %c48_83 = arith.constant 48 : index
    %c0_84 = arith.constant 0 : index
    %77 = vector.load %arg6[%c48_83, %c0_84] : memref<256x1024xbf16, #tpu.memory_space<vmem>>, vector<4x1024xbf16>
    tpu.vector_store %arg6[%c48_83, %c0_84], %76 {strides = array<i32>} : memref<256x1024xbf16, #tpu.memory_space<vmem>>, vector<4x1024xbf16>,
    %c0_85 = arith.constant 0 : index
    %c1560_86 = arith.constant 1560 : index
    %78 = vector.load %arg5[%c0_85, %c1560_86] : memref<4x4224xbf16, #tpu.memory_space<vmem>>, vector<4x1024xbf16>
    %c52 = arith.constant 52 : index
    %c0_87 = arith.constant 0 : index
    %79 = vector.load %arg6[%c52, %c0_87] : memref<256x1024xbf16, #tpu.memory_space<vmem>>, vector<4x1024xbf16>
    tpu.vector_store %arg6[%c52, %c0_87], %78 {strides = array<i32>} : memref<256x1024xbf16, #tpu.memory_space<vmem>>, vector<4x1024xbf16>,
    %c0_88 = arith.constant 0 : index
    %c1572 = arith.constant 1572 : index
    %80 = vector.load %arg5[%c0_88, %c1572] : memref<4x4224xbf16, #tpu.memory_space<vmem>>, vector<4x1024xbf16>
    %c56 = arith.constant 56 : index
    %c0_89 = arith.constant 0 : index
    %81 = vector.load %arg6[%c56, %c0_89] : memref<256x1024xbf16, #tpu.memory_space<vmem>>, vector<4x1024xbf16>
    tpu.vector_store %arg6[%c56, %c0_89], %80 {strides = array<i32>} : memref<256x1024xbf16, #tpu.memory_space<vmem>>, vector<4x1024xbf16>,
    %c0_90 = arith.constant 0 : index
    %c2316 = arith.constant 2316 : index
    %82 = vector.load %arg5[%c0_90, %c2316] : memref<4x4224xbf16, #tpu.memory_space<vmem>>, vector<4x1024xbf16>
    %c60 = arith.constant 60 : index
    %c0_91 = arith.constant 0 : index
    %83 = vector.load %arg6[%c60, %c0_91] : memref<256x1024xbf16, #tpu.memory_space<vmem>>, vector<4x1024xbf16>
    tpu.vector_store %arg6[%c60, %c0_91], %82 {strides = array<i32>} : memref<256x1024xbf16, #tpu.memory_space<vmem>>, vector<4x1024xbf16>,
    %c0_92 = arith.constant 0 : index
    %c2328_93 = arith.constant 2328 : index
    %84 = vector.load %arg5[%c0_92, %c2328_93] : memref<4x4224xbf16, #tpu.memory_space<vmem>>, vector<4x1024xbf16>
    %c64_94 = arith.constant 64 : index
    %c0_95 = arith.constant 0 : index
    %85 = vector.load %arg6[%c64_94, %c0_95] : memref<256x1024xbf16, #tpu.memory_space<vmem>>, vector<4x1024xbf16>
    tpu.vector_store %arg6[%c64_94, %c0_95], %84 {strides = array<i32>} : memref<256x1024xbf16, #tpu.memory_space<vmem>>, vector<4x1024xbf16>,
    %c0_96 = arith.constant 0 : index
    %c2340 = arith.constant 2340 : index
    %86 = vector.load %arg5[%c0_96, %c2340] : memref<4x4224xbf16, #tpu.memory_space<vmem>>, vector<4x1024xbf16>
    %c68 = arith.constant 68 : index
    %c0_97 = arith.constant 0 : index
    %87 = vector.load %arg6[%c68, %c0_97] : memref<256x1024xbf16, #tpu.memory_space<vmem>>, vector<4x1024xbf16>
    tpu.vector_store %arg6[%c68, %c0_97], %86 {strides = array<i32>} : memref<256x1024xbf16, #tpu.memory_space<vmem>>, vector<4x1024xbf16>,
    %c0_98 = arith.constant 0 : index
    %c390 = arith.constant 390 : index
    %88 = vector.load %arg5[%c0_98, %c390] : memref<4x4224xbf16, #tpu.memory_space<vmem>>, vector<4x1024xbf16>
    %c72 = arith.constant 72 : index
    %c0_99 = arith.constant 0 : index
    %89 = vector.load %arg6[%c72, %c0_99] : memref<256x1024xbf16, #tpu.memory_space<vmem>>, vector<4x1024xbf16>
    tpu.vector_store %arg6[%c72, %c0_99], %88 {strides = array<i32>} : memref<256x1024xbf16, #tpu.memory_space<vmem>>, vector<4x1024xbf16>,
    %c0_100 = arith.constant 0 : index
    %c408 = arith.constant 408 : index
    %90 = vector.load %arg5[%c0_100, %c408] : memref<4x4224xbf16, #tpu.memory_space<vmem>>, vector<4x1024xbf16>
    %c76 = arith.constant 76 : index
    %c0_101 = arith.constant 0 : index
    %91 = vector.load %arg6[%c76, %c0_101] : memref<256x1024xbf16, #tpu.memory_space<vmem>>, vector<4x1024xbf16>
    tpu.vector_store %arg6[%c76, %c0_101], %90 {strides = array<i32>} : memref<256x1024xbf16, #tpu.memory_space<vmem>>, vector<4x1024xbf16>,
    %c0_102 = arith.constant 0 : index
    %c426 = arith.constant 426 : index
    %92 = vector.load %arg5[%c0_102, %c426] : memref<4x4224xbf16, #tpu.memory_space<vmem>>, vector<4x1024xbf16>
    %c80_103 = arith.constant 80 : index
    %c0_104 = arith.constant 0 : index
    %93 = vector.load %arg6[%c80_103, %c0_104] : memref<256x1024xbf16, #tpu.memory_space<vmem>>, vector<4x1024xbf16>
    tpu.vector_store %arg6[%c80_103, %c0_104], %92 {strides = array<i32>} : memref<256x1024xbf16, #tpu.memory_space<vmem>>, vector<4x1024xbf16>,
    %c0_105 = arith.constant 0 : index
    %c1542 = arith.constant 1542 : index
    %94 = vector.load %arg5[%c0_105, %c1542] : memref<4x4224xbf16, #tpu.memory_space<vmem>>, vector<4x1024xbf16>
    %c84 = arith.constant 84 : index
    %c0_106 = arith.constant 0 : index
    %95 = vector.load %arg6[%c84, %c0_106] : memref<256x1024xbf16, #tpu.memory_space<vmem>>, vector<4x1024xbf16>
    tpu.vector_store %arg6[%c84, %c0_106], %94 {strides = array<i32>} : memref<256x1024xbf16, #tpu.memory_space<vmem>>, vector<4x1024xbf16>,
    %c0_107 = arith.constant 0 : index
    %c1560_108 = arith.constant 1560 : index
    %96 = vector.load %arg5[%c0_107, %c1560_108] : memref<4x4224xbf16, #tpu.memory_space<vmem>>, vector<4x1024xbf16>
    %c88 = arith.constant 88 : index
    %c0_109 = arith.constant 0 : index
    %97 = vector.load %arg6[%c88, %c0_109] : memref<256x1024xbf16, #tpu.memory_space<vmem>>, vector<4x1024xbf16>
    tpu.vector_store %arg6[%c88, %c0_109], %96 {strides = array<i32>} : memref<256x1024xbf16, #tpu.memory_space<vmem>>, vector<4x1024xbf16>,
    %c0_110 = arith.constant 0 : index
    %c1578 = arith.constant 1578 : index
    %98 = vector.load %arg5[%c0_110, %c1578] : memref<4x4224xbf16, #tpu.memory_space<vmem>>, vector<4x1024xbf16>
    %c92 = arith.constant 92 : index
    %c0_111 = arith.constant 0 : index
    %99 = vector.load %arg6[%c92, %c0_111] : memref<256x1024xbf16, #tpu.memory_space<vmem>>, vector<4x1024xbf16>
    tpu.vector_store %arg6[%c92, %c0_111], %98 {strides = array<i32>} : memref<256x1024xbf16, #tpu.memory_space<vmem>>, vector<4x1024xbf16>,
    %c0_112 = arith.constant 0 : index
    %c2694 = arith.constant 2694 : index
    %100 = vector.load %arg5[%c0_112, %c2694] : memref<4x4224xbf16, #tpu.memory_space<vmem>>, vector<4x1024xbf16>
    %c96_113 = arith.constant 96 : index
    %c0_114 = arith.constant 0 : index
    %101 = vector.load %arg6[%c96_113, %c0_114] : memref<256x1024xbf16, #tpu.memory_space<vmem>>, vector<4x1024xbf16>
    tpu.vector_store %arg6[%c96_113, %c0_114], %100 {strides = array<i32>} : memref<256x1024xbf16, #tpu.memory_space<vmem>>, vector<4x1024xbf16>,
    %c0_115 = arith.constant 0 : index
    %c2712 = arith.constant 2712 : index
    %102 = vector.load %arg5[%c0_115, %c2712] : memref<4x4224xbf16, #tpu.memory_space<vmem>>, vector<4x1024xbf16>
    %c100 = arith.constant 100 : index
    %c0_116 = arith.constant 0 : index
    %103 = vector.load %arg6[%c100, %c0_116] : memref<256x1024xbf16, #tpu.memory_space<vmem>>, vector<4x1024xbf16>
    tpu.vector_store %arg6[%c100, %c0_116], %102 {strides = array<i32>} : memref<256x1024xbf16, #tpu.memory_space<vmem>>, vector<4x1024xbf16>,
    %c0_117 = arith.constant 0 : index
    %c2730 = arith.constant 2730 : index
    %104 = vector.load %arg5[%c0_117, %c2730] : memref<4x4224xbf16, #tpu.memory_space<vmem>>, vector<4x1024xbf16>
    %c104 = arith.constant 104 : index
    %c0_118 = arith.constant 0 : index
    %105 = vector.load %arg6[%c104, %c0_118] : memref<256x1024xbf16, #tpu.memory_space<vmem>>, vector<4x1024xbf16>
    tpu.vector_store %arg6[%c104, %c0_118], %104 {strides = array<i32>} : memref<256x1024xbf16, #tpu.memory_space<vmem>>, vector<4x1024xbf16>,
    %c0_119 = arith.constant 0 : index
    %c0_120 = arith.constant 0 : index
    %106 = vector.load %arg5[%c0_119, %c0_120] : memref<4x4224xbf16, #tpu.memory_space<vmem>>, vector<4x1024xbf16>
    %c108 = arith.constant 108 : index
    %c0_121 = arith.constant 0 : index
    %107 = vector.load %arg6[%c108, %c0_121] : memref<256x1024xbf16, #tpu.memory_space<vmem>>, vector<4x1024xbf16>
    tpu.vector_store %arg6[%c108, %c0_121], %106 {strides = array<i32>} : memref<256x1024xbf16, #tpu.memory_space<vmem>>, vector<4x1024xbf16>,
    %c0_122 = arith.constant 0 : index
    %c24_123 = arith.constant 24 : index
    %108 = vector.load %arg5[%c0_122, %c24_123] : memref<4x4224xbf16, #tpu.memory_space<vmem>>, vector<4x1024xbf16>
    %c112_124 = arith.constant 112 : index
    %c0_125 = arith.constant 0 : index
    %109 = vector.load %arg6[%c112_124, %c0_125] : memref<256x1024xbf16, #tpu.memory_space<vmem>>, vector<4x1024xbf16>
    tpu.vector_store %arg6[%c112_124, %c0_125], %108 {strides = array<i32>} : memref<256x1024xbf16, #tpu.memory_space<vmem>>, vector<4x1024xbf16>,
    %c0_126 = arith.constant 0 : index
    %c48_127 = arith.constant 48 : index
    %110 = vector.load %arg5[%c0_126, %c48_127] : memref<4x4224xbf16, #tpu.memory_space<vmem>>, vector<4x1024xbf16>
    %c116 = arith.constant 116 : index
    %c0_128 = arith.constant 0 : index
    %111 = vector.load %arg6[%c116, %c0_128] : memref<256x1024xbf16, #tpu.memory_space<vmem>>, vector<4x1024xbf16>
    tpu.vector_store %arg6[%c116, %c0_128], %110 {strides = array<i32>} : memref<256x1024xbf16, #tpu.memory_space<vmem>>, vector<4x1024xbf16>,
    %c0_129 = arith.constant 0 : index
    %c1536 = arith.constant 1536 : index
    %112 = vector.load %arg5[%c0_129, %c1536] : memref<4x4224xbf16, #tpu.memory_space<vmem>>, vector<4x1024xbf16>
    %c120 = arith.constant 120 : index
    %c0_130 = arith.constant 0 : index
    %113 = vector.load %arg6[%c120, %c0_130] : memref<256x1024xbf16, #tpu.memory_space<vmem>>, vector<4x1024xbf16>
    tpu.vector_store %arg6[%c120, %c0_130], %112 {strides = array<i32>} : memref<256x1024xbf16, #tpu.memory_space<vmem>>, vector<4x1024xbf16>,
    %c0_131 = arith.constant 0 : index
    %c1560_132 = arith.constant 1560 : index
    %114 = vector.load %arg5[%c0_131, %c1560_132] : memref<4x4224xbf16, #tpu.memory_space<vmem>>, vector<4x1024xbf16>
    %c124 = arith.constant 124 : index
    %c0_133 = arith.constant 0 : index
    %115 = vector.load %arg6[%c124, %c0_133] : memref<256x1024xbf16, #tpu.memory_space<vmem>>, vector<4x1024xbf16>
    tpu.vector_store %arg6[%c124, %c0_133], %114 {strides = array<i32>} : memref<256x1024xbf16, #tpu.memory_space<vmem>>, vector<4x1024xbf16>,
    %c0_134 = arith.constant 0 : index
    %c1584 = arith.constant 1584 : index
    %116 = vector.load %arg5[%c0_134, %c1584] : memref<4x4224xbf16, #tpu.memory_space<vmem>>, vector<4x1024xbf16>
    %c128_135 = arith.constant 128 : index
    %c0_136 = arith.constant 0 : index
    %117 = vector.load %arg6[%c128_135, %c0_136] : memref<256x1024xbf16, #tpu.memory_space<vmem>>, vector<4x1024xbf16>
    tpu.vector_store %arg6[%c128_135, %c0_136], %116 {strides = array<i32>} : memref<256x1024xbf16, #tpu.memory_space<vmem>>, vector<4x1024xbf16>,
    %c0_137 = arith.constant 0 : index
    %c3072 = arith.constant 3072 : index
    %118 = vector.load %arg5[%c0_137, %c3072] : memref<4x4224xbf16, #tpu.memory_space<vmem>>, vector<4x1024xbf16>
    %c132 = arith.constant 132 : index
    %c0_138 = arith.constant 0 : index
    %119 = vector.load %arg6[%c132, %c0_138] : memref<256x1024xbf16, #tpu.memory_space<vmem>>, vector<4x1024xbf16>
    tpu.vector_store %arg6[%c132, %c0_138], %118 {strides = array<i32>} : memref<256x1024xbf16, #tpu.memory_space<vmem>>, vector<4x1024xbf16>,
    %c0_139 = arith.constant 0 : index
    %c3096 = arith.constant 3096 : index
    %120 = vector.load %arg5[%c0_139, %c3096] : memref<4x4224xbf16, #tpu.memory_space<vmem>>, vector<4x1024xbf16>
    %c136 = arith.constant 136 : index
    %c0_140 = arith.constant 0 : index
    %121 = vector.load %arg6[%c136, %c0_140] : memref<256x1024xbf16, #tpu.memory_space<vmem>>, vector<4x1024xbf16>
    tpu.vector_store %arg6[%c136, %c0_140], %120 {strides = array<i32>} : memref<256x1024xbf16, #tpu.memory_space<vmem>>, vector<4x1024xbf16>,
    %c0_141 = arith.constant 0 : index
    %c3120 = arith.constant 3120 : index
    %122 = vector.load %arg5[%c0_141, %c3120] : memref<4x4224xbf16, #tpu.memory_space<vmem>>, vector<4x1024xbf16>
    %c140 = arith.constant 140 : index
    %c0_142 = arith.constant 0 : index
    %123 = vector.load %arg6[%c140, %c0_142] : memref<256x1024xbf16, #tpu.memory_space<vmem>>, vector<4x1024xbf16>
    tpu.vector_store %arg6[%c140, %c0_142], %122 {strides = array<i32>} : memref<256x1024xbf16, #tpu.memory_space<vmem>>, vector<4x1024xbf16>,
    %c0_143 = arith.constant 0 : index
    %c0_144 = arith.constant 0 : index
    %124 = vector.load %arg2[%c0_143, %c0_144] : memref<8x256xbf16, #tpu.memory_space<vmem>>, vector<8x256xbf16>
    %c0_145 = arith.constant 0 : index
    %c0_146 = arith.constant 0 : index
    %125 = vector.load %arg6[%c0_145, %c0_146] : memref<256x1024xbf16, #tpu.memory_space<vmem>>, vector<256x1024xbf16>
    %cst_147 = arith.constant dense<0.000000e+00> : vector<8x1024xf32>
    %126 = tpu.matmul %124, %125, %cst_147 {dimension_numbers = #tpu.dot_dimension_numbers<[1], [0], [0], [1], [0, 0, 1, 1], [], []>} : vector<8x256xbf16>, vector<256x1024xbf16>, vector<8x1024xf32> -> vector<8x1024xf32>
    %c0_148 = arith.constant 0 : index
    %c0_149 = arith.constant 0 : index
    %127 = vector.load %arg3[%c0_148, %c0_149] : memref<8x1xf32, #tpu.memory_space<vmem>>, vector<8x1xf32>
    %128 = vector.broadcast %127 : vector<8x1xf32> to vector<8x1024xf32>
    %129 = arith.addf %126, %128 : vector<8x1024xf32>
    %c0_150 = arith.constant 0 : index
    %c0_151 = arith.constant 0 : index
    %c0_152 = arith.constant 0 : index
    %130 = vector.load %arg4[%c0_150, %c0_151, %c0_152] : memref<1x8x1024xf32, #tpu.memory_space<vmem>>, vector<1x8x1024xf32>
    %131 = vector.shape_cast %130 : vector<1x8x1024xf32> to vector<8x1024xf32>
    %132 = vector.shape_cast %129 : vector<8x1024xf32> to vector<1x8x1024xf32>
    tpu.vector_store %arg4[%c0_150, %c0_151, %c0_152], %132 {strides = array<i32>} : memref<1x8x1024xf32, #tpu.memory_space<vmem>>, vector<1x8x1024xf32>,
    return
  }
  func.func @transform_0(%arg0: i32) -> (i32, i32, i32) {
    %c0_i32 = arith.constant 0 : i32
    %c0_i32_0 = arith.constant 0 : i32
    %c0_i32_1 = arith.constant 0 : i32
    return %arg0, %c0_i32, %c0_i32_0 : i32, i32, i32
  }
  func.func @transform_1(%arg0: i32) -> (i32, i32) {
    %c0_i32 = arith.constant 0 : i32
    %c0_i32_0 = arith.constant 0 : i32
    %c0_i32_1 = arith.constant 0 : i32
    return %c0_i32, %c0_i32_0 : i32, i32
  }
  func.func @transform_2(%arg0: i32) -> (i32, i32) {
    %c0_i32 = arith.constant 0 : i32
    %c0_i32_0 = arith.constant 0 : i32
    %c0_i32_1 = arith.constant 0 : i32
    return %c0_i32, %c0_i32_0 : i32, i32
  }
  func.func @transform_3(%arg0: i32) -> (i32, i32, i32) {
    %c0_i32 = arith.constant 0 : i32
    %c0_i32_0 = arith.constant 0 : i32
    %c0_i32_1 = arith.constant 0 : i32
    return %arg0, %c0_i32, %c0_i32_0 : i32, i32, i32
  }
}

</mosaic_0001>

<llo_original>
// kernel: tpu_custom_call.1
$region0: #{tpu_custom_call.1}
  #allocation0 [shape = 'u32[]', space=smem, size = 0x4, offset = 0x4, fixed_abs, tag = 'smem constant byte address 0x4 - core index']
  #allocation1 [shape = 'u32[144,128]{1,0:T(1,128)}', space=vmem, size = 0x12000, scoped, tag = 'internal scratch']
  #allocation2 [shape = 'bf16[4,4224]{1,0:T(4,128)(2,1)}', space=vmem, size = 0x8400, scoped, tag = 'scratch operand']
  #allocation3 [shape = 'bf16[256,1024]{1,0:T(16,128)(2,1)}', space=vmem, size = 0x80000, scoped, tag = 'scratch operand']
  %s0 = inlined_call_operand.vmem [shape: bf16[2,4,256], index: 0, kind: input, shape index: {}]
  %s1 = inlined_call_operand.hbm [shape: bf16[8,256], index: 1, kind: input, shape index: {}]
  %s2 = inlined_call_operand.vmem [shape: f32[8,1], index: 2, kind: input, shape index: {}]
  %s3 = inlined_call_operand.hbm [shape: f32[2,8,1024], index: 3, kind: output, shape index: {}]
  %s4 = sld [smem:[#allocation0]]
  $region49: #{tpu_custom_call.1} parent=0
    _
  %s6 = ssub.s32 1, %s4
  %s7 = scalar_select 0, %s6, %s4
  $region1: #{tpu_custom_call.1} parent=0
    #allocation4 [shape = 'u8[4096]{0}', space=vmem, size = 0x1000, scoped, tag = 'input window, operand 1, single buffered']
    #allocation5 [shape = 's32[2]{0}', space=sflag, size = 0x8, scoped, tag = 'scoped memory for tpu_custom_call.1']
    #allocation6 [shape = 's32[2]{0}', space=sflag, size = 0x8, scoped, tag = 'scoped memory for tpu_custom_call.1']
    #allocation7 [shape = 'u8[65536]{0}', space=vmem, size = 0x10000, scoped, tag = 'output window, operand 0']
    %8 = vsyncpa [#allocation5], 0
    %9 = vsyncpa [#allocation6], 0
    %s10 = scalar_lea.sflag [#allocation6], 1
    %11 = vsyncpa %s10, 0
    loop: start=0, step=1, limit=4
    $region2: #{tpu_custom_call.1} parent=1 // loop_pre_header
      _
    $region3: #{tpu_custom_call.1} parent=1 // loop_header
      %s13 = sphi 0, %s17
      %p14 = scmp.ge.s32.totalorder %s13, 4
      %s23 = sphi 0, %s25
      %s26 = sphi 0, %s23
      %s27 = sphi 0, %s26
      %s43 = sphi 0, %s27
      %s47 = sphi 0, %s47
      %s49 = sphi 0, %s47
      %s50 = sphi 0, %s49
      %s64 = sphi 0, %s50
      %s68 = sphi 0, %s68
      %s70 = sphi 0, %s68
      %s71 = sphi 0, %s70
      %s85 = sphi 0, %s71
      %s91 = sphi 0, %s93
      %s94 = sphi 0, %s91
      %s95 = sphi 0, %s94
      %s111 = sphi 0, %s95
    $region4: #{tpu_custom_call.1} parent=1 // loop_header_branch
      %16 = sbr.rel (%p14) target = $region8
    $region5: #{tpu_custom_call.1} parent=1 // loop_body
      %s18 = ssub.s32 %s13, 1
      %s19 = ssub.s32 %s13, 2
      %s20 = sadd.s32 %s13, 1
      %s21 = ssub.s32 %s13, %s20
      %p22 = scmp.eq.s32.totalorder %s21, 0
      %s24 = sadd.s32 %s23, 1
      %s25 = scalar_select %p22, %s23, %s24
      %p28 = pneg %p22
      %p29 = scmp.eq.s32.totalorder %s13, 1
      %p30 = por %p28, %p29
      %p31 = scmp.ne.s32.totalorder %s23, %s26
      %p32 = scmp.eq.s32.totalorder %s13, 0
      %p33 = por %p31, %p32
      %p34 = scmp.ne.s32.totalorder %s23, %s26
      %p35 = scmp.eq.s32.totalorder %s18, 1
      %p36 = por %p34, %p35
      %p37 = scmp.ne.s32.totalorder %s26, %s27
      %p38 = scmp.eq.s32.totalorder %s18, 0
      %p39 = por %p37, %p38
      %p40 = scmp.ne.s32.totalorder %s26, %s27
      %p41 = scmp.eq.s32.totalorder %s19, 1
      %p42 = por %p40, %p41
      %p44 = scmp.ne.s32.totalorder %s27, %s43
      %p45 = scmp.eq.s32.totalorder %s19, 0
      %p46 = por %p44, %p45
      %s48 = sadd.s32 %s47, 1
      %p51 = scmp.eq.s32.totalorder %s13, 1
      %p52 = scmp.ne.s32.totalorder %s47, %s49
      %p53 = scmp.eq.s32.totalorder %s13, 0
      %p54 = por %p52, %p53
      %p55 = scmp.ne.s32.totalorder %s47, %s49
      %p56 = scmp.eq.s32.totalorder %s18, 1
      %p57 = por %p55, %p56
      %p58 = scmp.ne.s32.totalorder %s49, %s50
      %p59 = scmp.eq.s32.totalorder %s18, 0
      %p60 = por %p58, %p59
      %p61 = scmp.ne.s32.totalorder %s49, %s50
      %p62 = scmp.eq.s32.totalorder %s19, 1
      %p63 = por %p61, %p62
      %p65 = scmp.ne.s32.totalorder %s50, %s64
      %p66 = scmp.eq.s32.totalorder %s19, 0
      %p67 = por %p65, %p66
      %s69 = sadd.s32 %s68, 1
      %p72 = scmp.eq.s32.totalorder %s13, 1
      %p73 = scmp.ne.s32.totalorder %s68, %s70
      %p74 = scmp.eq.s32.totalorder %s13, 0
      %p75 = por %p73, %p74
      %p76 = scmp.ne.s32.totalorder %s68, %s70
      %p77 = scmp.eq.s32.totalorder %s18, 1
      %p78 = por %p76, %p77
      %p79 = scmp.ne.s32.totalorder %s70, %s71
      %p80 = scmp.eq.s32.totalorder %s18, 0
      %p81 = por %p79, %p80
      %p82 = scmp.ne.s32.totalorder %s70, %s71
      %p83 = scmp.eq.s32.totalorder %s19, 1
      %p84 = por %p82, %p83
      %p86 = scmp.ne.s32.totalorder %s71, %s85
      %p87 = scmp.eq.s32.totalorder %s19, 0
      %p88 = por %p86, %p87
      %s89 = ssub.s32 %s13, %s20
      %p90 = scmp.eq.s32.totalorder %s89, 0
      %s92 = sadd.s32 %s91, 1
      %s93 = scalar_select %p90, %s91, %s92
      %p96 = pneg %p90
      %p97 = scmp.eq.s32.totalorder %s13, 1
      %p98 = por %p96, %p97
      %p99 = scmp.ne.s32.totalorder %s91, %s94
      %p100 = scmp.eq.s32.totalorder %s13, 0
      %p101 = por %p99, %p100
      %p102 = scmp.ne.s32.totalorder %s91, %s94
      %p103 = scmp.eq.s32.totalorder %s18, 1
      %p104 = por %p102, %p103
      %p105 = scmp.ne.s32.totalorder %s94, %s95
      %p106 = scmp.eq.s32.totalorder %s18, 0
      %p107 = por %p105, %p106
      %p108 = scmp.ne.s32.totalorder %s94, %s95
      %p109 = scmp.eq.s32.totalorder %s19, 1
      %p110 = por %p108, %p109
      %p112 = scmp.ne.s32.totalorder %s95, %s111
      %p113 = scmp.eq.s32.totalorder %s19, 0
      %p114 = por %p112, %p113
      %p115 = scmp.le.s32.totalorder 1, %s13
      %p116 = scmp.lt.s32.totalorder %s13, 3
      %p117 = pnand %p115, %p116
      %p118 = pneg %p117
      // Predicated region
      $region9: #{tpu_custom_call.1} parent=5 // pred_check
        _
      $region10: #{tpu_custom_call.1} parent=5 // pred_check_branch
        %120 = sbr.rel (%p117) target = $region12
      $region11: #{tpu_custom_call.1} parent=5 // pred_region
        %s121 = ssub.s32 %s13, 1
        // Predicated region
        $region13: #{tpu_custom_call.1} parent=11 // pred_check
          %p122 = pneg %p60
        $region14: #{tpu_custom_call.1} parent=11 // pred_check_branch
          %124 = sbr.rel (%p122) target = $region16
        $region15: #{tpu_custom_call.1} parent=11 // pred_region
          %s126 = ssub.s32 128, 128
          %127 = vsyncadd [#allocation5], %s126
          %s129 = sshll.u32 [#allocation4], 4
          %s130 = int_to_ptr.vmem [resolvable:$true] %s129
          %132 = dma.hbm_to_vmem [thread:$0]  %s1, 128, %s130, [#allocation5]
        $region16: #{tpu_custom_call.1} parent=11 // pred_fallthru
          _
        // Predicated region
        $region17: #{tpu_custom_call.1} parent=11 // pred_check
          %p133 = pneg %p81
        $region18: #{tpu_custom_call.1} parent=11 // pred_check_branch
          %135 = sbr.rel (%p133) target = $region20
        $region19: #{tpu_custom_call.1} parent=11 // pred_region
          _
        $region20: #{tpu_custom_call.1} parent=11 // pred_fallthru
          _
      $region12: #{tpu_custom_call.1} parent=5 // pred_fallthru
        _
      %p136 = scmp.lt.s32.totalorder %s13, 2
      // Predicated region
      $region21: #{tpu_custom_call.1} parent=5 // pred_check
        %p137 = pneg %p136
      $region22: #{tpu_custom_call.1} parent=5 // pred_check_branch
        %139 = sbr.rel (%p137) target = $region24
      $region23: #{tpu_custom_call.1} parent=5 // pred_region
        // Predicated region
        $region25: #{tpu_custom_call.1} parent=23 // pred_check
          %p140 = pneg %p33
        $region26: #{tpu_custom_call.1} parent=23 // pred_check_branch
          %142 = sbr.rel (%p140) target = $region28
        $region27: #{tpu_custom_call.1} parent=23 // pred_region
          %p143 = scmp.lt.s32.totalorder %s13, 1
          %s144 = scalar_select %p143, %s13, 1
          %s145 = smul.addr %s144, 2
          %s146 = smul.addr %s145, 2
          %s147 = scalar_lea.vmem %s0, %s146
        $region28: #{tpu_custom_call.1} parent=23 // pred_fallthru
          _
      $region24: #{tpu_custom_call.1} parent=5 // pred_fallthru
        _
      %p148 = scmp.le.s32.totalorder 1, %s13
      %p149 = scmp.lt.s32.totalorder %s13, 3
      %p150 = pnand %p148, %p149
      %p151 = pneg %p150
      // Predicated region
      $region29: #{tpu_custom_call.1} parent=5 // pred_check
        _
      $region30: #{tpu_custom_call.1} parent=5 // pred_check_branch
        %153 = sbr.rel (%p150) target = $region32
      $region31: #{tpu_custom_call.1} parent=5 // pred_region
        %s154 = ssub.s32 %s13, 1
        // Predicated region
        $region33: #{tpu_custom_call.1} parent=31 // pred_check
          %p155 = pneg %p60
        $region34: #{tpu_custom_call.1} parent=31 // pred_check_branch
          %157 = sbr.rel (%p155) target = $region36
        $region35: #{tpu_custom_call.1} parent=31 // pred_region
          %158 = dma.done [#allocation5], 128
        $region36: #{tpu_custom_call.1} parent=31 // pred_fallthru
          _
        %p159 = scmp.lt.s32.totalorder %s18, 1
        %s160 = scalar_select %p159, %s18, 1
        %s161 = smul.addr %s160, 2
        %s162 = smul.addr %s161, 2
        %s163 = scalar_lea.vmem %s0, %s162
        %p164 = pneg %p39
        %p165 = pneg %p36
        %p166 = pneg %p60
        %p167 = pneg %p57
        %p168 = pneg %p81
        %p169 = pneg %p78
        %p170 = pneg %p107
        %p171 = pneg %p104
        %s172 = sand.u32 %s94, 1
        %s173 = scalar_lea.sflag [#allocation6], %s172
        %s174 = sand.u32 %s94, 1
        %s175 = smul.addr %s174, 64
        %s176 = scalar_lea.vmem [#allocation7], %s175
        %p177 = scmp.lt.s32.totalorder %s18, 1
        %s178 = scalar_select %p177, %s18, 1
        %s179 = smul.addr %s178, 2
        %s180 = smul.addr %s179, 2
        %s181 = scalar_lea.vmem %s0, %s180
        %183 = vst [vmem:[#allocation2] sm:$0xff] 0
        %184 = vst [vmem:[#allocation2 + $0x8] sm:$0xff] 0
        %185 = vst [vmem:[#allocation2 + $0x10] sm:$0xff] 0
        %186 = vst [vmem:[#allocation2 + $0x18] sm:$0xff] 0
        %187 = vst [vmem:[#allocation2 + $0x20] sm:$0xff] 0
        %188 = vst [vmem:[#allocation2 + $0x28] sm:$0xff] 0
        %189 = vst [vmem:[#allocation2 + $0x30] sm:$0xff] 0
        %190 = vst [vmem:[#allocation2 + $0x38] sm:$0xff] 0
        %191 = vst [vmem:[#allocation2 + $0x40] sm:$0x3] 0
        %192 = vst [vmem:[#allocation3 + $0x240] sm:$0xff] 0
        %193 = vst [vmem:[#allocation3 + $0x248] sm:$0xff] 0
        %194 = vst [vmem:[#allocation3 + $0x250] sm:$0xff] 0
        %195 = vst [vmem:[#allocation3 + $0x258] sm:$0xff] 0
        %196 = vst [vmem:[#allocation3 + $0x260] sm:$0xff] 0
        %197 = vst [vmem:[#allocation3 + $0x268] sm:$0xff] 0
        %198 = vst [vmem:[#allocation3 + $0x270] sm:$0xff] 0
        %199 = vst [vmem:[#allocation3 + $0x278] sm:$0xff] 0
        %200 = vst [vmem:[#allocation3 + $0x280] sm:$0xff] 0
        %201 = vst [vmem:[#allocation3 + $0x288] sm:$0xff] 0
        %202 = vst [vmem:[#allocation3 + $0x290] sm:$0xff] 0
        %203 = vst [vmem:[#allocation3 + $0x298] sm:$0xff] 0
        %204 = vst [vmem:[#allocation3 + $0x2a0] sm:$0xff] 0
        %205 = vst [vmem:[#allocation3 + $0x2a8] sm:$0xff] 0
        %206 = vst [vmem:[#allocation3 + $0x2b0] sm:$0xff] 0
        %207 = vst [vmem:[#allocation3 + $0x2b8] sm:$0xff] 0
        %208 = vst [vmem:[#allocation3 + $0x2c0] sm:$0xff] 0
        %209 = vst [vmem:[#allocation3 + $0x2c8] sm:$0xff] 0
        %210 = vst [vmem:[#allocation3 + $0x2d0] sm:$0xff] 0
        %211 = vst [vmem:[#allocation3 + $0x2d8] sm:$0xff] 0
        %212 = vst [vmem:[#allocation3 + $0x2e0] sm:$0xff] 0
        %213 = vst [vmem:[#allocation3 + $0x2e8] sm:$0xff] 0
        %214 = vst [vmem:[#allocation3 + $0x2f0] sm:$0xff] 0
        %215 = vst [vmem:[#allocation3 + $0x2f8] sm:$0xff] 0
        %216 = vst [vmem:[#allocation3 + $0x300] sm:$0xff] 0
        %217 = vst [vmem:[#allocation3 + $0x308] sm:$0xff] 0
        %218 = vst [vmem:[#allocation3 + $0x310] sm:$0xff] 0
        %219 = vst [vmem:[#allocation3 + $0x318] sm:$0xff] 0
        %220 = vst [vmem:[#allocation3 + $0x320] sm:$0xff] 0
        %221 = vst [vmem:[#allocation3 + $0x328] sm:$0xff] 0
        %222 = vst [vmem:[#allocation3 + $0x330] sm:$0xff] 0
        %223 = vst [vmem:[#allocation3 + $0x338] sm:$0xff] 0
        %224 = vst [vmem:[#allocation3 + $0x340] sm:$0xff] 0
        %225 = vst [vmem:[#allocation3 + $0x348] sm:$0xff] 0
        %226 = vst [vmem:[#allocation3 + $0x350] sm:$0xff] 0
        %227 = vst [vmem:[#allocation3 + $0x358] sm:$0xff] 0
        %228 = vst [vmem:[#allocation3 + $0x360] sm:$0xff] 0
        %229 = vst [vmem:[#allocation3 + $0x368] sm:$0xff] 0
        %230 = vst [vmem:[#allocation3 + $0x370] sm:$0xff] 0
        %231 = vst [vmem:[#allocation3 + $0x378] sm:$0xff] 0
        %232 = vst [vmem:[#allocation3 + $0x380] sm:$0xff] 0
        %233 = vst [vmem:[#allocation3 + $0x388] sm:$0xff] 0
        %234 = vst [vmem:[#allocation3 + $0x390] sm:$0xff] 0
        %235 = vst [vmem:[#allocation3 + $0x398] sm:$0xff] 0
        %236 = vst [vmem:[#allocation3 + $0x3a0] sm:$0xff] 0
        %237 = vst [vmem:[#allocation3 + $0x3a8] sm:$0xff] 0
        %238 = vst [vmem:[#allocation3 + $0x3b0] sm:$0xff] 0
        %239 = vst [vmem:[#allocation3 + $0x3b8] sm:$0xff] 0
        %240 = vst [vmem:[#allocation3 + $0x3c0] sm:$0xff] 0
        %241 = vst [vmem:[#allocation3 + $0x3c8] sm:$0xff] 0
        %242 = vst [vmem:[#allocation3 + $0x3d0] sm:$0xff] 0
        %243 = vst [vmem:[#allocation3 + $0x3d8] sm:$0xff] 0
        %244 = vst [vmem:[#allocation3 + $0x3e0] sm:$0xff] 0
        %245 = vst [vmem:[#allocation3 + $0x3e8] sm:$0xff] 0
        %246 = vst [vmem:[#allocation3 + $0x3f0] sm:$0xff] 0
        %247 = vst [vmem:[#allocation3 + $0x3f8] sm:$0xff] 0
        %v248 = vld [vmem:[%s181] sm:$0x3]
        %250 = vrot.lane.b32.xlu0 %v248, 24
        %v251 = vpop.permute.xlu0 %250
        %vm253 = vcmask 320704
        %254 = vst.msk [vmem:[#allocation2 + $0x18] sm:$0x3] %vm253, %v251
        %v255 = vld [vmem:[%s181] sm:$0x3]
        %257 = vrot.lane.b32.xlu0 %v255, 72
        %v258 = vpop.permute.xlu0 %257
        %vm260 = vcmask 845504
        %261 = vst.msk [vmem:[#allocation2 + $0x18] sm:$0x3] %vm260, %v258
        %v262 = vld [vmem:[%s181] sm:$0x3]
        %264 = vrot.lane.b32.xlu0 %v262, 120
        %v265 = vpop.permute.xlu0 %264
        %267 = vst.msk [vmem:[#allocation2 + $0x1a] sm:$0x3] %vm253, %v265
        %v268 = vld [vmem:[%s181] sm:$0x3]
        %270 = vrot.lane.b32.xlu0 %v268, 40
        %v271 = vpop.permute.xlu0 %270
        %273 = vst.msk [vmem:[#allocation2 + $0x1a] sm:$0x3] %vm260, %v271
        %v274 = vld [vmem:[%s181] sm:$0x3]
        %276 = vrot.lane.b32.xlu0 %v274, 88
        %v277 = vpop.permute.xlu0 %276
        %279 = vst.msk [vmem:[#allocation2 + $0x1c] sm:$0x3] %vm253, %v277
        %v280 = vld [vmem:[%s181] sm:$0x3]
        %282 = vrot.lane.b32.xlu0 %v280, 8
        %v283 = vpop.permute.xlu0 %282
        %285 = vst.msk [vmem:[#allocation2 + $0x1c] sm:$0x3] %vm260, %v283
        %v286 = vld [vmem:[%s181] sm:$0x3]
        %288 = vrot.lane.b32.xlu0 %v286, 56
        %v289 = vpop.permute.xlu0 %288
        %291 = vst.msk [vmem:[#allocation2 + $0x1e] sm:$0x3] %vm253, %v289
        %v292 = vld [vmem:[%s181] sm:$0x3]
        %294 = vrot.lane.b32.xlu0 %v292, 104
        %v295 = vpop.permute.xlu0 %294
        %297 = vst.msk [vmem:[#allocation2 + $0x1e] sm:$0x3] %vm260, %v295
        %v298 = vld [vmem:[%s181 + $0x2] sm:$0x3]
        %300 = vrot.lane.b32.xlu0 %v298, 24
        %v301 = vpop.permute.xlu0 %300
        %303 = vst.msk [vmem:[#allocation2 + $0x20] sm:$0x3] %vm253, %v301
        %v304 = vld [vmem:[%s181 + $0x2] sm:$0x3]
        %306 = vrot.lane.b32.xlu0 %v304, 72
        %v307 = vpop.permute.xlu0 %306
        %309 = vst.msk [vmem:[#allocation2 + $0x20] sm:$0x3] %vm260, %v307
        %v310 = vld [vmem:[%s181 + $0x2] sm:$0x3]
        %312 = vrot.lane.b32.xlu0 %v310, 120
        %v313 = vpop.permute.xlu0 %312
        %315 = vst.msk [vmem:[#allocation2 + $0x22] sm:$0x3] %vm253, %v313
        %v316 = vld [vmem:[%s181 + $0x2] sm:$0x3]
        %318 = vrot.lane.b32.xlu0 %v316, 40
        %v319 = vpop.permute.xlu0 %318
        %321 = vst.msk [vmem:[#allocation2 + $0x22] sm:$0x3] %vm260, %v319
        %v322 = vld [vmem:[%s181 + $0x2] sm:$0x3]
        %324 = vrot.lane.b32.xlu0 %v322, 88
        %v325 = vpop.permute.xlu0 %324
        %327 = vst.msk [vmem:[#allocation2 + $0x24] sm:$0x3] %vm253, %v325
        %v328 = vld [vmem:[%s181 + $0x2] sm:$0x3]
        %330 = vrot.lane.b32.xlu0 %v328, 8
        %v331 = vpop.permute.xlu0 %330
        %333 = vst.msk [vmem:[#allocation2 + $0x24] sm:$0x3] %vm260, %v331
        %v334 = vld [vmem:[%s181 + $0x2] sm:$0x3]
        %336 = vrot.lane.b32.xlu0 %v334, 56
        %v337 = vpop.permute.xlu0 %336
        %339 = vst.msk [vmem:[#allocation2 + $0x26] sm:$0x3] %vm253, %v337
        %v340 = vld [vmem:[%s181 + $0x2] sm:$0x3]
        %342 = vrot.lane.b32.xlu0 %v340, 104
        %v343 = vpop.permute.xlu0 %342
        %345 = vst.msk [vmem:[#allocation2 + $0x26] sm:$0x3] %vm260, %v343
        %v346 = vld [vmem:[#allocation2 + $0x12] sm:$0xff]
        %v347 = vld [vmem:[#allocation2 + $0x1a] sm:$0xff]
        %v348 = vld [vmem:[#allocation2 + $0x22] sm:$0x3]
        %v352 = vcombine.high %v346, %v346
        %v354 = vunpack.c.l.s4 1983009808
        %v355 = vunpack.c.0.s8 %v354
        %v356 = vlaneseq
        %v357 = vshrl.u32 %v356, 7
        %v358 = vsub.s32 %v355, %v357
        %v359 = vrot.slane %v346, %v358
        %v361 = vunpack.c.l.s4 1983009808
        %v362 = vunpack.c.0.s8 %v361
        %v363 = vlaneseq
        %v364 = vshrl.u32 %v363, 7
        %v365 = vsub.s32 %v362, %v364
        %v366 = vrot.slane %v352, %v365
        %v367 = vcombine.high %v359, %v359
        %v368 = vcombine.high %v366, %v366
        %v369 = vcombine.high %v347, %v347
        %v371 = vunpack.c.l.s4 1983009808
        %v372 = vunpack.c.0.s8 %v371
        %v373 = vlaneseq
        %v374 = vshrl.u32 %v373, 7
        %v375 = vsub.s32 %v372, %v374
        %v376 = vrot.slane %v347, %v375
        %v378 = vunpack.c.l.s4 1983009808
        %v379 = vunpack.c.0.s8 %v378
        %v380 = vlaneseq
        %v381 = vshrl.u32 %v380, 7
        %v382 = vsub.s32 %v379, %v381
        %v383 = vrot.slane %v369, %v382
        %v384 = vcombine.high %v376, %v376
        %v385 = vcombine.high %v383, %v383
        %v387 = vunpack.c.l.s4 1983009808
        %v388 = vunpack.c.0.s8 %v387
        %v389 = vlaneseq
        %v390 = vshrl.u32 %v389, 7
        %v391 = vsub.s32 %v388, %v390
        %v392 = vrot.slane %v348, %v391
        %393 = vrot.lane.b32.xlu0 %v359, 110
        %v394 = vpop.permute.xlu0 %393
        %395 = vrot.lane.b32.xlu0 %v367, 110
        %v396 = vpop.permute.xlu0 %395
        %397 = vrot.lane.b32.xlu0 %v366, 110
        %v398 = vpop.permute.xlu0 %397
        %399 = vrot.lane.b32.xlu0 %v368, 110
        %v400 = vpop.permute.xlu0 %399
        %401 = vrot.lane.b32.xlu0 %v376, 110
        %v402 = vpop.permute.xlu0 %401
        %403 = vrot.lane.b32.xlu0 %v384, 110
        %v404 = vpop.permute.xlu0 %403
        %405 = vrot.lane.b32.xlu0 %v383, 110
        %v406 = vpop.permute.xlu0 %405
        %407 = vrot.lane.b32.xlu0 %v385, 110
        %v408 = vpop.permute.xlu0 %407
        %409 = vrot.lane.b32.xlu0 %v392, 110
        %v410 = vpop.permute.xlu0 %409
        %vm411 = vcmask 900096
        %v412 = vsel %vm411, %v394, %v396
        %v413 = vsel %vm411, %v396, %v398
        %v414 = vsel %vm411, %v398, %v400
        %v415 = vsel %vm411, %v400, %v402
        %v416 = vsel %vm411, %v402, %v404
        %v417 = vsel %vm411, %v404, %v406
        %v418 = vsel %vm411, %v406, %v408
        %v419 = vsel %vm411, %v408, %v410
        %428 = vst [vmem:[#allocation3] sm:$0x3] %v412
        %429 = vst [vmem:[#allocation3 + $0x8] sm:$0x3] %v413
        %430 = vst [vmem:[#allocation3 + $0x10] sm:$0x3] %v414
        %431 = vst [vmem:[#allocation3 + $0x18] sm:$0x3] %v415
        %432 = vst [vmem:[#allocation3 + $0x20] sm:$0x3] %v416
        %433 = vst [vmem:[#allocation3 + $0x28] sm:$0x3] %v417
        %434 = vst [vmem:[#allocation3 + $0x30] sm:$0x3] %v418
        %435 = vst [vmem:[#allocation3 + $0x38] sm:$0x3] %v419
        %v436 = vld [vmem:[#allocation2 + $0x12] sm:$0xff]
        %v437 = vld [vmem:[#allocation2 + $0x1a] sm:$0xff]
        %v438 = vld [vmem:[#allocation2 + $0x22] sm:$0x3]
        %v442 = vcombine.low %v436, %v436
        %v444 = vunpack.c.l.s4 1983009808
        %v445 = vunpack.c.0.s8 %v444
        %v446 = vlaneseq
        %v447 = vshrl.u32 %v446, 7
        %v448 = vsub.s32 %v445, %v447
        %v449 = vrot.slane %v442, %v448
        %v451 = vunpack.c.l.s4 1983009808
        %v452 = vunpack.c.0.s8 %v451
        %v453 = vlaneseq
        %v454 = vshrl.u32 %v453, 7
        %v455 = vsub.s32 %v452, %v454
        %v456 = vrot.slane %v436, %v455
        %v457 = vcombine.high %v449, %v449
        %v458 = vcombine.high %v456, %v456
        %v459 = vcombine.low %v437, %v437
        %v461 = vunpack.c.l.s4 1983009808
        %v462 = vunpack.c.0.s8 %v461
        %v463 = vlaneseq
        %v464 = vshrl.u32 %v463, 7
        %v465 = vsub.s32 %v462, %v464
        %v466 = vrot.slane %v459, %v465
        %v468 = vunpack.c.l.s4 1983009808
        %v469 = vunpack.c.0.s8 %v468
        %v470 = vlaneseq
        %v471 = vshrl.u32 %v470, 7
        %v472 = vsub.s32 %v469, %v471
        %v473 = vrot.slane %v437, %v472
        %v474 = vcombine.high %v466, %v466
        %v475 = vcombine.high %v473, %v473
        %v476 = vcombine.low %v438, %v438
        %v478 = vunpack.c.l.s4 1983009808
        %v479 = vunpack.c.0.s8 %v478
        %v480 = vlaneseq
        %v481 = vshrl.u32 %v480, 7
        %v482 = vsub.s32 %v479, %v481
        %v483 = vrot.slane %v476, %v482
        %484 = vrot.lane.b32.xlu0 %v449, 104
        %v485 = vpop.permute.xlu0 %484
        %486 = vrot.lane.b32.xlu0 %v457, 104
        %v487 = vpop.permute.xlu0 %486
        %488 = vrot.lane.b32.xlu0 %v456, 104
        %v489 = vpop.permute.xlu0 %488
        %490 = vrot.lane.b32.xlu0 %v458, 104
        %v491 = vpop.permute.xlu0 %490
        %492 = vrot.lane.b32.xlu0 %v466, 104
        %v493 = vpop.permute.xlu0 %492
        %494 = vrot.lane.b32.xlu0 %v474, 104
        %v495 = vpop.permute.xlu0 %494
        %496 = vrot.lane.b32.xlu0 %v473, 104
        %v497 = vpop.permute.xlu0 %496
        %498 = vrot.lane.b32.xlu0 %v475, 104
        %v499 = vpop.permute.xlu0 %498
        %500 = vrot.lane.b32.xlu0 %v483, 104
        %v501 = vpop.permute.xlu0 %500
        %vm502 = vcmask 850944
        %v503 = vsel %vm502, %v485, %v487
        %v504 = vsel %vm502, %v487, %v489
        %v505 = vsel %vm502, %v489, %v491
        %v506 = vsel %vm502, %v491, %v493
        %v507 = vsel %vm502, %v493, %v495
        %v508 = vsel %vm502, %v495, %v497
        %v509 = vsel %vm502, %v497, %v499
        %v510 = vsel %vm502, %v499, %v501
        %519 = vst [vmem:[#allocation3] sm:$0xc] %v503
        %520 = vst [vmem:[#allocation3 + $0x8] sm:$0xc] %v504
        %521 = vst [vmem:[#allocation3 + $0x10] sm:$0xc] %v505
        %522 = vst [vmem:[#allocation3 + $0x18] sm:$0xc] %v506
        %523 = vst [vmem:[#allocation3 + $0x20] sm:$0xc] %v507
        %524 = vst [vmem:[#allocation3 + $0x28] sm:$0xc] %v508
        %525 = vst [vmem:[#allocation3 + $0x30] sm:$0xc] %v509
        %526 = vst [vmem:[#allocation3 + $0x38] sm:$0xc] %v510
        %v527 = vld [vmem:[#allocation2 + $0x12] sm:$0xff]
        %v528 = vld [vmem:[#allocation2 + $0x1a] sm:$0xff]
        %v529 = vld [vmem:[#allocation2 + $0x22] sm:$0x3]
        %v533 = vcombine.high %v527, %v527
        %v535 = vunpack.c.l.s4 1983009808
        %v536 = vunpack.c.0.s8 %v535
        %v537 = vlaneseq
        %v538 = vshrl.u32 %v537, 7
        %v539 = vsub.s32 %v536, %v538
        %v540 = vrot.slane %v527, %v539
        %v542 = vunpack.c.l.s4 1983009808
        %v543 = vunpack.c.0.s8 %v542
        %v544 = vlaneseq
        %v545 = vshrl.u32 %v544, 7
        %v546 = vsub.s32 %v543, %v545
        %v547 = vrot.slane %v533, %v546
        %v548 = vcombine.low %v540, %v540
        %v549 = vcombine.low %v547, %v547
        %v550 = vcombine.high %v528, %v528
        %v552 = vunpack.c.l.s4 1983009808
        %v553 = vunpack.c.0.s8 %v552
        %v554 = vlaneseq
        %v555 = vshrl.u32 %v554, 7
        %v556 = vsub.s32 %v553, %v555
        %v557 = vrot.slane %v528, %v556
        %v559 = vunpack.c.l.s4 1983009808
        %v560 = vunpack.c.0.s8 %v559
        %v561 = vlaneseq
        %v562 = vshrl.u32 %v561, 7
        %v563 = vsub.s32 %v560, %v562
        %v564 = vrot.slane %v550, %v563
        %v565 = vcombine.low %v557, %v557
        %v566 = vcombine.low %v564, %v564
        %v568 = vunpack.c.l.s4 1983009808
        %v569 = vunpack.c.0.s8 %v568
        %v570 = vlaneseq
        %v571 = vshrl.u32 %v570, 7
        %v572 = vsub.s32 %v569, %v571
        %v573 = vrot.slane %v529, %v572
        %v574 = vcombine.low %v573, %v573
        %575 = vrot.lane.b32.xlu0 %v548, 98
        %v576 = vpop.permute.xlu0 %575
        %577 = vrot.lane.b32.xlu0 %v540, 98
        %v578 = vpop.permute.xlu0 %577
        %579 = vrot.lane.b32.xlu0 %v549, 98
        %v580 = vpop.permute.xlu0 %579
        %581 = vrot.lane.b32.xlu0 %v547, 98
        %v582 = vpop.permute.xlu0 %581
        %583 = vrot.lane.b32.xlu0 %v565, 98
        %v584 = vpop.permute.xlu0 %583
        %585 = vrot.lane.b32.xlu0 %v557, 98
        %v586 = vpop.permute.xlu0 %585
        %587 = vrot.lane.b32.xlu0 %v566, 98
        %v588 = vpop.permute.xlu0 %587
        %589 = vrot.lane.b32.xlu0 %v564, 98
        %v590 = vpop.permute.xlu0 %589
        %591 = vrot.lane.b32.xlu0 %v574, 98
        %v592 = vpop.permute.xlu0 %591
        %vm593 = vcmask 801792
        %v594 = vsel %vm593, %v576, %v578
        %v595 = vsel %vm593, %v578, %v580
        %v596 = vsel %vm593, %v580, %v582
        %v597 = vsel %vm593, %v582, %v584
        %v598 = vsel %vm593, %v584, %v586
        %v599 = vsel %vm593, %v586, %v588
        %v600 = vsel %vm593, %v588, %v590
        %v601 = vsel %vm593, %v590, %v592
        %610 = vst [vmem:[#allocation3] sm:$0x30] %v594
        %611 = vst [vmem:[#allocation3 + $0x8] sm:$0x30] %v595
        %612 = vst [vmem:[#allocation3 + $0x10] sm:$0x30] %v596
        %613 = vst [vmem:[#allocation3 + $0x18] sm:$0x30] %v597
        %614 = vst [vmem:[#allocation3 + $0x20] sm:$0x30] %v598
        %615 = vst [vmem:[#allocation3 + $0x28] sm:$0x30] %v599
        %616 = vst [vmem:[#allocation3 + $0x30] sm:$0x30] %v600
        %617 = vst [vmem:[#allocation3 + $0x38] sm:$0x30] %v601
        %v618 = vld [vmem:[#allocation2 + $0x18] sm:$0xff]
        %v619 = vld [vmem:[#allocation2 + $0x20] sm:$0xff]
        %v620 = vld [vmem:[#allocation2 + $0x28] sm:$0x3]
        %v624 = vcombine.low %v618, %v618
        %v626 = vunpack.c.l.s4 1983009808
        %v627 = vunpack.c.0.s8 %v626
        %v628 = vlaneseq
        %v629 = vshrl.u32 %v628, 7
        %v630 = vsub.s32 %v627, %v629
        %v631 = vrot.slane %v624, %v630
        %v633 = vunpack.c.l.s4 1983009808
        %v634 = vunpack.c.0.s8 %v633
        %v635 = vlaneseq
        %v636 = vshrl.u32 %v635, 7
        %v637 = vsub.s32 %v634, %v636
        %v638 = vrot.slane %v618, %v637
        %v639 = vcombine.low %v631, %v631
        %v640 = vcombine.low %v638, %v638
        %v641 = vcombine.low %v619, %v619
        %v643 = vunpack.c.l.s4 1983009808
        %v644 = vunpack.c.0.s8 %v643
        %v645 = vlaneseq
        %v646 = vshrl.u32 %v645, 7
        %v647 = vsub.s32 %v644, %v646
        %v648 = vrot.slane %v641, %v647
        %v650 = vunpack.c.l.s4 1983009808
        %v651 = vunpack.c.0.s8 %v650
        %v652 = vlaneseq
        %v653 = vshrl.u32 %v652, 7
        %v654 = vsub.s32 %v651, %v653
        %v655 = vrot.slane %v619, %v654
        %v656 = vcombine.low %v648, %v648
        %v657 = vcombine.low %v655, %v655
        %v658 = vcombine.low %v620, %v620
        %v660 = vunpack.c.l.s4 1983009808
        %v661 = vunpack.c.0.s8 %v660
        %v662 = vlaneseq
        %v663 = vshrl.u32 %v662, 7
        %v664 = vsub.s32 %v661, %v663
        %v665 = vrot.slane %v658, %v664
        %v666 = vcombine.low %v665, %v665
        %667 = vrot.lane.b32.xlu0 %v639, 110
        %v668 = vpop.permute.xlu0 %667
        %669 = vrot.lane.b32.xlu0 %v631, 110
        %v670 = vpop.permute.xlu0 %669
        %671 = vrot.lane.b32.xlu0 %v640, 110
        %v672 = vpop.permute.xlu0 %671
        %673 = vrot.lane.b32.xlu0 %v638, 110
        %v674 = vpop.permute.xlu0 %673
        %675 = vrot.lane.b32.xlu0 %v656, 110
        %v676 = vpop.permute.xlu0 %675
        %677 = vrot.lane.b32.xlu0 %v648, 110
        %v678 = vpop.permute.xlu0 %677
        %679 = vrot.lane.b32.xlu0 %v657, 110
        %v680 = vpop.permute.xlu0 %679
        %681 = vrot.lane.b32.xlu0 %v655, 110
        %v682 = vpop.permute.xlu0 %681
        %683 = vrot.lane.b32.xlu0 %v666, 110
        %v684 = vpop.permute.xlu0 %683
        %v685 = vsel %vm411, %v668, %v670
        %v686 = vsel %vm411, %v670, %v672
        %v687 = vsel %vm411, %v672, %v674
        %v688 = vsel %vm411, %v674, %v676
        %v689 = vsel %vm411, %v676, %v678
        %v690 = vsel %vm411, %v678, %v680
        %v691 = vsel %vm411, %v680, %v682
        %v692 = vsel %vm411, %v682, %v684
        %701 = vst [vmem:[#allocation3] sm:$0xc0] %v685
        %702 = vst [vmem:[#allocation3 + $0x8] sm:$0xc0] %v686
        %703 = vst [vmem:[#allocation3 + $0x10] sm:$0xc0] %v687
        %704 = vst [vmem:[#allocation3 + $0x18] sm:$0xc0] %v688
        %705 = vst [vmem:[#allocation3 + $0x20] sm:$0xc0] %v689
        %706 = vst [vmem:[#allocation3 + $0x28] sm:$0xc0] %v690
        %707 = vst [vmem:[#allocation3 + $0x30] sm:$0xc0] %v691
        %708 = vst [vmem:[#allocation3 + $0x38] sm:$0xc0] %v692
        %v709 = vld [vmem:[#allocation2 + $0x18] sm:$0xff]
        %v710 = vld [vmem:[#allocation2 + $0x20] sm:$0xff]
        %v711 = vld [vmem:[#allocation2 + $0x28] sm:$0x3]
        %v715 = vcombine.high %v709, %v709
        %v717 = vunpack.c.l.s4 1983009808
        %v718 = vunpack.c.0.s8 %v717
        %v719 = vlaneseq
        %v720 = vshrl.u32 %v719, 7
        %v721 = vsub.s32 %v718, %v720
        %v722 = vrot.slane %v709, %v721
        %v724 = vunpack.c.l.s4 1983009808
        %v725 = vunpack.c.0.s8 %v724
        %v726 = vlaneseq
        %v727 = vshrl.u32 %v726, 7
        %v728 = vsub.s32 %v725, %v727
        %v729 = vrot.slane %v715, %v728
        %v730 = vcombine.high %v722, %v722
        %v731 = vcombine.high %v729, %v729
        %v732 = vcombine.high %v710, %v710
        %v734 = vunpack.c.l.s4 1983009808
        %v735 = vunpack.c.0.s8 %v734
        %v736 = vlaneseq
        %v737 = vshrl.u32 %v736, 7
        %v738 = vsub.s32 %v735, %v737
        %v739 = vrot.slane %v710, %v738
        %v741 = vunpack.c.l.s4 1983009808
        %v742 = vunpack.c.0.s8 %v741
        %v743 = vlaneseq
        %v744 = vshrl.u32 %v743, 7
        %v745 = vsub.s32 %v742, %v744
        %v746 = vrot.slane %v732, %v745
        %v747 = vcombine.high %v739, %v739
        %v748 = vcombine.high %v746, %v746
        %v750 = vunpack.c.l.s4 1983009808
        %v751 = vunpack.c.0.s8 %v750
        %v752 = vlaneseq
        %v753 = vshrl.u32 %v752, 7
        %v754 = vsub.s32 %v751, %v753
        %v755 = vrot.slane %v711, %v754
        %756 = vrot.lane.b32.xlu0 %v722, 104
        %v757 = vpop.permute.xlu0 %756
        %758 = vrot.lane.b32.xlu0 %v730, 104
        %v759 = vpop.permute.xlu0 %758
        %760 = vrot.lane.b32.xlu0 %v729, 104
        %v761 = vpop.permute.xlu0 %760
        %762 = vrot.lane.b32.xlu0 %v731, 104
        %v763 = vpop.permute.xlu0 %762
        %764 = vrot.lane.b32.xlu0 %v739, 104
        %v765 = vpop.permute.xlu0 %764
        %766 = vrot.lane.b32.xlu0 %v747, 104
        %v767 = vpop.permute.xlu0 %766
        %768 = vrot.lane.b32.xlu0 %v746, 104
        %v769 = vpop.permute.xlu0 %768
        %770 = vrot.lane.b32.xlu0 %v748, 104
        %v771 = vpop.permute.xlu0 %770
        %772 = vrot.lane.b32.xlu0 %v755, 104
        %v773 = vpop.permute.xlu0 %772
        %v774 = vsel %vm502, %v757, %v759
        %v775 = vsel %vm502, %v759, %v761
        %v776 = vsel %vm502, %v761, %v763
        %v777 = vsel %vm502, %v763, %v765
        %v778 = vsel %vm502, %v765, %v767
        %v779 = vsel %vm502, %v767, %v769
        %v780 = vsel %vm502, %v769, %v771
        %v781 = vsel %vm502, %v771, %v773
        %790 = vst [vmem:[#allocation3 + $0x40] sm:$0x3] %v774
        %791 = vst [vmem:[#allocation3 + $0x48] sm:$0x3] %v775
        %792 = vst [vmem:[#allocation3 + $0x50] sm:$0x3] %v776
        %793 = vst [vmem:[#allocation3 + $0x58] sm:$0x3] %v777
        %794 = vst [vmem:[#allocation3 + $0x60] sm:$0x3] %v778
        %795 = vst [vmem:[#allocation3 + $0x68] sm:$0x3] %v779
        %796 = vst [vmem:[#allocation3 + $0x70] sm:$0x3] %v780
        %797 = vst [vmem:[#allocation3 + $0x78] sm:$0x3] %v781
        %v798 = vld [vmem:[#allocation2 + $0x18] sm:$0xff]
        %v799 = vld [vmem:[#allocation2 + $0x20] sm:$0xff]
        %v800 = vld [vmem:[#allocation2 + $0x28] sm:$0x3]
        %v804 = vcombine.low %v798, %v798
        %v806 = vunpack.c.l.s4 1983009808
        %v807 = vunpack.c.0.s8 %v806
        %v808 = vlaneseq
        %v809 = vshrl.u32 %v808, 7
        %v810 = vsub.s32 %v807, %v809
        %v811 = vrot.slane %v804, %v810
        %v813 = vunpack.c.l.s4 1983009808
        %v814 = vunpack.c.0.s8 %v813
        %v815 = vlaneseq
        %v816 = vshrl.u32 %v815, 7
        %v817 = vsub.s32 %v814, %v816
        %v818 = vrot.slane %v798, %v817
        %v819 = vcombine.high %v811, %v811
        %v820 = vcombine.high %v818, %v818
        %v821 = vcombine.low %v799, %v799
        %v823 = vunpack.c.l.s4 1983009808
        %v824 = vunpack.c.0.s8 %v823
        %v825 = vlaneseq
        %v826 = vshrl.u32 %v825, 7
        %v827 = vsub.s32 %v824, %v826
        %v828 = vrot.slane %v821, %v827
        %v830 = vunpack.c.l.s4 1983009808
        %v831 = vunpack.c.0.s8 %v830
        %v832 = vlaneseq
        %v833 = vshrl.u32 %v832, 7
        %v834 = vsub.s32 %v831, %v833
        %v835 = vrot.slane %v799, %v834
        %v836 = vcombine.high %v828, %v828
        %v837 = vcombine.high %v835, %v835
        %v838 = vcombine.low %v800, %v800
        %v840 = vunpack.c.l.s4 1983009808
        %v841 = vunpack.c.0.s8 %v840
        %v842 = vlaneseq
        %v843 = vshrl.u32 %v842, 7
        %v844 = vsub.s32 %v841, %v843
        %v845 = vrot.slane %v838, %v844
        %846 = vrot.lane.b32.xlu0 %v811, 98
        %v847 = vpop.permute.xlu0 %846
        %848 = vrot.lane.b32.xlu0 %v819, 98
        %v849 = vpop.permute.xlu0 %848
        %850 = vrot.lane.b32.xlu0 %v818, 98
        %v851 = vpop.permute.xlu0 %850
        %852 = vrot.lane.b32.xlu0 %v820, 98
        %v853 = vpop.permute.xlu0 %852
        %854 = vrot.lane.b32.xlu0 %v828, 98
        %v855 = vpop.permute.xlu0 %854
        %856 = vrot.lane.b32.xlu0 %v836, 98
        %v857 = vpop.permute.xlu0 %856
        %858 = vrot.lane.b32.xlu0 %v835, 98
        %v859 = vpop.permute.xlu0 %858
        %860 = vrot.lane.b32.xlu0 %v837, 98
        %v861 = vpop.permute.xlu0 %860
        %862 = vrot.lane.b32.xlu0 %v845, 98
        %v863 = vpop.permute.xlu0 %862
        %v864 = vsel %vm593, %v847, %v849
        %v865 = vsel %vm593, %v849, %v851
        %v866 = vsel %vm593, %v851, %v853
        %v867 = vsel %vm593, %v853, %v855
        %v868 = vsel %vm593, %v855, %v857
        %v869 = vsel %vm593, %v857, %v859
        %v870 = vsel %vm593, %v859, %v861
        %v871 = vsel %vm593, %v861, %v863
        %880 = vst [vmem:[#allocation3 + $0x40] sm:$0xc] %v864
        %881 = vst [vmem:[#allocation3 + $0x48] sm:$0xc] %v865
        %882 = vst [vmem:[#allocation3 + $0x50] sm:$0xc] %v866
        %883 = vst [vmem:[#allocation3 + $0x58] sm:$0xc] %v867
        %884 = vst [vmem:[#allocation3 + $0x60] sm:$0xc] %v868
        %885 = vst [vmem:[#allocation3 + $0x68] sm:$0xc] %v869
        %886 = vst [vmem:[#allocation3 + $0x70] sm:$0xc] %v870
        %887 = vst [vmem:[#allocation3 + $0x78] sm:$0xc] %v871
        %v888 = vld [vmem:[#allocation2 + $0x1e] sm:$0xff]
        %v889 = vld [vmem:[#allocation2 + $0x26] sm:$0xff]
        %v890 = vld [vmem:[#allocation2 + $0x2e] sm:$0x3]
        %v894 = vcombine.high %v888, %v888
        %v896 = vunpack.c.l.s4 1983009808
        %v897 = vunpack.c.0.s8 %v896
        %v898 = vlaneseq
        %v899 = vshrl.u32 %v898, 7
        %v900 = vsub.s32 %v897, %v899
        %v901 = vrot.slane %v888, %v900
        %v903 = vunpack.c.l.s4 1983009808
        %v904 = vunpack.c.0.s8 %v903
        %v905 = vlaneseq
        %v906 = vshrl.u32 %v905, 7
        %v907 = vsub.s32 %v904, %v906
        %v908 = vrot.slane %v894, %v907
        %v909 = vcombine.low %v901, %v901
        %v910 = vcombine.low %v908, %v908
        %v911 = vcombine.high %v889, %v889
        %v913 = vunpack.c.l.s4 1983009808
        %v914 = vunpack.c.0.s8 %v913
        %v915 = vlaneseq
        %v916 = vshrl.u32 %v915, 7
        %v917 = vsub.s32 %v914, %v916
        %v918 = vrot.slane %v889, %v917
        %v920 = vunpack.c.l.s4 1983009808
        %v921 = vunpack.c.0.s8 %v920
        %v922 = vlaneseq
        %v923 = vshrl.u32 %v922, 7
        %v924 = vsub.s32 %v921, %v923
        %v925 = vrot.slane %v911, %v924
        %v926 = vcombine.low %v918, %v918
        %v927 = vcombine.low %v925, %v925
        %v929 = vunpack.c.l.s4 1983009808
        %v930 = vunpack.c.0.s8 %v929
        %v931 = vlaneseq
        %v932 = vshrl.u32 %v931, 7
        %v933 = vsub.s32 %v930, %v932
        %v934 = vrot.slane %v890, %v933
        %v935 = vcombine.low %v934, %v934
        %936 = vrot.lane.b32.xlu0 %v909, 110
        %v937 = vpop.permute.xlu0 %936
        %938 = vrot.lane.b32.xlu0 %v901, 110
        %v939 = vpop.permute.xlu0 %938
        %940 = vrot.lane.b32.xlu0 %v910, 110
        %v941 = vpop.permute.xlu0 %940
        %942 = vrot.lane.b32.xlu0 %v908, 110
        %v943 = vpop.permute.xlu0 %942
        %944 = vrot.lane.b32.xlu0 %v926, 110
        %v945 = vpop.permute.xlu0 %944
        %946 = vrot.lane.b32.xlu0 %v918, 110
        %v947 = vpop.permute.xlu0 %946
        %948 = vrot.lane.b32.xlu0 %v927, 110
        %v949 = vpop.permute.xlu0 %948
        %950 = vrot.lane.b32.xlu0 %v925, 110
        %v951 = vpop.permute.xlu0 %950
        %952 = vrot.lane.b32.xlu0 %v935, 110
        %v953 = vpop.permute.xlu0 %952
        %v954 = vsel %vm411, %v937, %v939
        %v955 = vsel %vm411, %v939, %v941
        %v956 = vsel %vm411, %v941, %v943
        %v957 = vsel %vm411, %v943, %v945
        %v958 = vsel %vm411, %v945, %v947
        %v959 = vsel %vm411, %v947, %v949
        %v960 = vsel %vm411, %v949, %v951
        %v961 = vsel %vm411, %v951, %v953
        %970 = vst [vmem:[#allocation3 + $0x40] sm:$0x30] %v954
        %971 = vst [vmem:[#allocation3 + $0x48] sm:$0x30] %v955
        %972 = vst [vmem:[#allocation3 + $0x50] sm:$0x30] %v956
        %973 = vst [vmem:[#allocation3 + $0x58] sm:$0x30] %v957
        %974 = vst [vmem:[#allocation3 + $0x60] sm:$0x30] %v958
        %975 = vst [vmem:[#allocation3 + $0x68] sm:$0x30] %v959
        %976 = vst [vmem:[#allocation3 + $0x70] sm:$0x30] %v960
        %977 = vst [vmem:[#allocation3 + $0x78] sm:$0x30] %v961
        %v978 = vld [vmem:[#allocation2 + $0x1e] sm:$0xff]
        %v979 = vld [vmem:[#allocation2 + $0x26] sm:$0xff]
        %v980 = vld [vmem:[#allocation2 + $0x2e] sm:$0x3]
        %v984 = vcombine.low %v978, %v978
        %v986 = vunpack.c.l.s4 1983009808
        %v987 = vunpack.c.0.s8 %v986
        %v988 = vlaneseq
        %v989 = vshrl.u32 %v988, 7
        %v990 = vsub.s32 %v987, %v989
        %v991 = vrot.slane %v984, %v990
        %v993 = vunpack.c.l.s4 1983009808
        %v994 = vunpack.c.0.s8 %v993
        %v995 = vlaneseq
        %v996 = vshrl.u32 %v995, 7
        %v997 = vsub.s32 %v994, %v996
        %v998 = vrot.slane %v978, %v997
        %v999 = vcombine.low %v991, %v991
        %v1000 = vcombine.low %v998, %v998
        %v1001 = vcombine.low %v979, %v979
        %v1003 = vunpack.c.l.s4 1983009808
        %v1004 = vunpack.c.0.s8 %v1003
        %v1005 = vlaneseq
        %v1006 = vshrl.u32 %v1005, 7
        %v1007 = vsub.s32 %v1004, %v1006
        %v1008 = vrot.slane %v1001, %v1007
        %v1010 = vunpack.c.l.s4 1983009808
        %v1011 = vunpack.c.0.s8 %v1010
        %v1012 = vlaneseq
        %v1013 = vshrl.u32 %v1012, 7
        %v1014 = vsub.s32 %v1011, %v1013
        %v1015 = vrot.slane %v979, %v1014
        %v1016 = vcombine.low %v1008, %v1008
        %v1017 = vcombine.low %v1015, %v1015
        %v1018 = vcombine.low %v980, %v980
        %v1020 = vunpack.c.l.s4 1983009808
        %v1021 = vunpack.c.0.s8 %v1020
        %v1022 = vlaneseq
        %v1023 = vshrl.u32 %v1022, 7
        %v1024 = vsub.s32 %v1021, %v1023
        %v1025 = vrot.slane %v1018, %v1024
        %v1026 = vcombine.low %v1025, %v1025
        %1027 = vrot.lane.b32.xlu0 %v999, 104
        %v1028 = vpop.permute.xlu0 %1027
        %1029 = vrot.lane.b32.xlu0 %v991, 104
        %v1030 = vpop.permute.xlu0 %1029
        %1031 = vrot.lane.b32.xlu0 %v1000, 104
        %v1032 = vpop.permute.xlu0 %1031
        %1033 = vrot.lane.b32.xlu0 %v998, 104
        %v1034 = vpop.permute.xlu0 %1033
        %1035 = vrot.lane.b32.xlu0 %v1016, 104
        %v1036 = vpop.permute.xlu0 %1035
        %1037 = vrot.lane.b32.xlu0 %v1008, 104
        %v1038 = vpop.permute.xlu0 %1037
        %1039 = vrot.lane.b32.xlu0 %v1017, 104
        %v1040 = vpop.permute.xlu0 %1039
        %1041 = vrot.lane.b32.xlu0 %v1015, 104
        %v1042 = vpop.permute.xlu0 %1041
        %1043 = vrot.lane.b32.xlu0 %v1026, 104
        %v1044 = vpop.permute.xlu0 %1043
        %v1045 = vsel %vm502, %v1028, %v1030
        %v1046 = vsel %vm502, %v1030, %v1032
        %v1047 = vsel %vm502, %v1032, %v1034
        %v1048 = vsel %vm502, %v1034, %v1036
        %v1049 = vsel %vm502, %v1036, %v1038
        %v1050 = vsel %vm502, %v1038, %v1040
        %v1051 = vsel %vm502, %v1040, %v1042
        %v1052 = vsel %vm502, %v1042, %v1044
        %1061 = vst [vmem:[#allocation3 + $0x40] sm:$0xc0] %v1045
        %1062 = vst [vmem:[#allocation3 + $0x48] sm:$0xc0] %v1046
        %1063 = vst [vmem:[#allocation3 + $0x50] sm:$0xc0] %v1047
        %1064 = vst [vmem:[#allocation3 + $0x58] sm:$0xc0] %v1048
        %1065 = vst [vmem:[#allocation3 + $0x60] sm:$0xc0] %v1049
        %1066 = vst [vmem:[#allocation3 + $0x68] sm:$0xc0] %v1050
        %1067 = vst [vmem:[#allocation3 + $0x70] sm:$0xc0] %v1051
        %1068 = vst [vmem:[#allocation3 + $0x78] sm:$0xc0] %v1052
        %v1069 = vld [vmem:[#allocation2 + $0x1e] sm:$0xff]
        %v1070 = vld [vmem:[#allocation2 + $0x26] sm:$0xff]
        %v1071 = vld [vmem:[#allocation2 + $0x2e] sm:$0x3]
        %v1075 = vcombine.high %v1069, %v1069
        %v1077 = vunpack.c.l.s4 1983009808
        %v1078 = vunpack.c.0.s8 %v1077
        %v1079 = vlaneseq
        %v1080 = vshrl.u32 %v1079, 7
        %v1081 = vsub.s32 %v1078, %v1080
        %v1082 = vrot.slane %v1069, %v1081
        %v1084 = vunpack.c.l.s4 1983009808
        %v1085 = vunpack.c.0.s8 %v1084
        %v1086 = vlaneseq
        %v1087 = vshrl.u32 %v1086, 7
        %v1088 = vsub.s32 %v1085, %v1087
        %v1089 = vrot.slane %v1075, %v1088
        %v1090 = vcombine.high %v1082, %v1082
        %v1091 = vcombine.high %v1089, %v1089
        %v1092 = vcombine.high %v1070, %v1070
        %v1094 = vunpack.c.l.s4 1983009808
        %v1095 = vunpack.c.0.s8 %v1094
        %v1096 = vlaneseq
        %v1097 = vshrl.u32 %v1096, 7
        %v1098 = vsub.s32 %v1095, %v1097
        %v1099 = vrot.slane %v1070, %v1098
        %v1101 = vunpack.c.l.s4 1983009808
        %v1102 = vunpack.c.0.s8 %v1101
        %v1103 = vlaneseq
        %v1104 = vshrl.u32 %v1103, 7
        %v1105 = vsub.s32 %v1102, %v1104
        %v1106 = vrot.slane %v1092, %v1105
        %v1107 = vcombine.high %v1099, %v1099
        %v1108 = vcombine.high %v1106, %v1106
        %v1110 = vunpack.c.l.s4 1983009808
        %v1111 = vunpack.c.0.s8 %v1110
        %v1112 = vlaneseq
        %v1113 = vshrl.u32 %v1112, 7
        %v1114 = vsub.s32 %v1111, %v1113
        %v1115 = vrot.slane %v1071, %v1114
        %1116 = vrot.lane.b32.xlu0 %v1082, 98
        %v1117 = vpop.permute.xlu0 %1116
        %1118 = vrot.lane.b32.xlu0 %v1090, 98
        %v1119 = vpop.permute.xlu0 %1118
        %1120 = vrot.lane.b32.xlu0 %v1089, 98
        %v1121 = vpop.permute.xlu0 %1120
        %1122 = vrot.lane.b32.xlu0 %v1091, 98
        %v1123 = vpop.permute.xlu0 %1122
        %1124 = vrot.lane.b32.xlu0 %v1099, 98
        %v1125 = vpop.permute.xlu0 %1124
        %1126 = vrot.lane.b32.xlu0 %v1107, 98
        %v1127 = vpop.permute.xlu0 %1126
        %1128 = vrot.lane.b32.xlu0 %v1106, 98
        %v1129 = vpop.permute.xlu0 %1128
        %1130 = vrot.lane.b32.xlu0 %v1108, 98
        %v1131 = vpop.permute.xlu0 %1130
        %1132 = vrot.lane.b32.xlu0 %v1115, 98
        %v1133 = vpop.permute.xlu0 %1132
        %v1134 = vsel %vm593, %v1117, %v1119
        %v1135 = vsel %vm593, %v1119, %v1121
        %v1136 = vsel %vm593, %v1121, %v1123
        %v1137 = vsel %vm593, %v1123, %v1125
        %v1138 = vsel %vm593, %v1125, %v1127
        %v1139 = vsel %vm593, %v1127, %v1129
        %v1140 = vsel %vm593, %v1129, %v1131
        %v1141 = vsel %vm593, %v1131, %v1133
        %1150 = vst [vmem:[#allocation3 + $0x80] sm:$0x3] %v1134
        %1151 = vst [vmem:[#allocation3 + $0x88] sm:$0x3] %v1135
        %1152 = vst [vmem:[#allocation3 + $0x90] sm:$0x3] %v1136
        %1153 = vst [vmem:[#allocation3 + $0x98] sm:$0x3] %v1137
        %1154 = vst [vmem:[#allocation3 + $0xa0] sm:$0x3] %v1138
        %1155 = vst [vmem:[#allocation3 + $0xa8] sm:$0x3] %v1139
        %1156 = vst [vmem:[#allocation3 + $0xb0] sm:$0x3] %v1140
        %1157 = vst [vmem:[#allocation3 + $0xb8] sm:$0x3] %v1141
        %v1158 = vld [vmem:[#allocation2 + $0xc] sm:$0xff]
        %v1159 = vld [vmem:[#allocation2 + $0x14] sm:$0xff]
        %v1160 = vld [vmem:[#allocation2 + $0x1c] sm:$0x3]
        %v1164 = vcombine.low %v1158, %v1158
        %v1166 = vunpack.c.l.s4 1983009808
        %v1167 = vunpack.c.0.s8 %v1166
        %v1168 = vlaneseq
        %v1169 = vshrl.u32 %v1168, 7
        %v1170 = vsub.s32 %v1167, %v1169
        %v1171 = vrot.slane %v1164, %v1170
        %v1173 = vunpack.c.l.s4 1983009808
        %v1174 = vunpack.c.0.s8 %v1173
        %v1175 = vlaneseq
        %v1176 = vshrl.u32 %v1175, 7
        %v1177 = vsub.s32 %v1174, %v1176
        %v1178 = vrot.slane %v1158, %v1177
        %v1179 = vcombine.high %v1171, %v1171
        %v1180 = vcombine.high %v1178, %v1178
        %v1181 = vcombine.low %v1159, %v1159
        %v1183 = vunpack.c.l.s4 1983009808
        %v1184 = vunpack.c.0.s8 %v1183
        %v1185 = vlaneseq
        %v1186 = vshrl.u32 %v1185, 7
        %v1187 = vsub.s32 %v1184, %v1186
        %v1188 = vrot.slane %v1181, %v1187
        %v1190 = vunpack.c.l.s4 1983009808
        %v1191 = vunpack.c.0.s8 %v1190
        %v1192 = vlaneseq
        %v1193 = vshrl.u32 %v1192, 7
        %v1194 = vsub.s32 %v1191, %v1193
        %v1195 = vrot.slane %v1159, %v1194
        %v1196 = vcombine.high %v1188, %v1188
        %v1197 = vcombine.high %v1195, %v1195
        %v1198 = vcombine.low %v1160, %v1160
        %v1200 = vunpack.c.l.s4 1983009808
        %v1201 = vunpack.c.0.s8 %v1200
        %v1202 = vlaneseq
        %v1203 = vshrl.u32 %v1202, 7
        %v1204 = vsub.s32 %v1201, %v1203
        %v1205 = vrot.slane %v1198, %v1204
        %1206 = vrot.lane.b32.xlu0 %v1171, 116
        %v1207 = vpop.permute.xlu0 %1206
        %1208 = vrot.lane.b32.xlu0 %v1179, 116
        %v1209 = vpop.permute.xlu0 %1208
        %1210 = vrot.lane.b32.xlu0 %v1178, 116
        %v1211 = vpop.permute.xlu0 %1210
        %1212 = vrot.lane.b32.xlu0 %v1180, 116
        %v1213 = vpop.permute.xlu0 %1212
        %1214 = vrot.lane.b32.xlu0 %v1188, 116
        %v1215 = vpop.permute.xlu0 %1214
        %1216 = vrot.lane.b32.xlu0 %v1196, 116
        %v1217 = vpop.permute.xlu0 %1216
        %1218 = vrot.lane.b32.xlu0 %v1195, 116
        %v1219 = vpop.permute.xlu0 %1218
        %1220 = vrot.lane.b32.xlu0 %v1197, 116
        %v1221 = vpop.permute.xlu0 %1220
        %1222 = vrot.lane.b32.xlu0 %v1205, 116
        %v1223 = vpop.permute.xlu0 %1222
        %vm1224 = vcmask 949248
        %v1225 = vsel %vm1224, %v1207, %v1209
        %v1226 = vsel %vm1224, %v1209, %v1211
        %v1227 = vsel %vm1224, %v1211, %v1213
        %v1228 = vsel %vm1224, %v1213, %v1215
        %v1229 = vsel %vm1224, %v1215, %v1217
        %v1230 = vsel %vm1224, %v1217, %v1219
        %v1231 = vsel %vm1224, %v1219, %v1221
        %v1232 = vsel %vm1224, %v1221, %v1223
        %1241 = vst [vmem:[#allocation3 + $0x80] sm:$0xc] %v1225
        %1242 = vst [vmem:[#allocation3 + $0x88] sm:$0xc] %v1226
        %1243 = vst [vmem:[#allocation3 + $0x90] sm:$0xc] %v1227
        %1244 = vst [vmem:[#allocation3 + $0x98] sm:$0xc] %v1228
        %1245 = vst [vmem:[#allocation3 + $0xa0] sm:$0xc] %v1229
        %1246 = vst [vmem:[#allocation3 + $0xa8] sm:$0xc] %v1230
        %1247 = vst [vmem:[#allocation3 + $0xb0] sm:$0xc] %v1231
        %1248 = vst [vmem:[#allocation3 + $0xb8] sm:$0xc] %v1232
        %v1249 = vld [vmem:[#allocation2 + $0xc] sm:$0xff]
        %v1250 = vld [vmem:[#allocation2 + $0x14] sm:$0xff]
        %v1251 = vld [vmem:[#allocation2 + $0x1c] sm:$0x3]
        %v1255 = vcombine.high %v1249, %v1249
        %v1257 = vunpack.c.l.s4 1983009808
        %v1258 = vunpack.c.0.s8 %v1257
        %v1259 = vlaneseq
        %v1260 = vshrl.u32 %v1259, 7
        %v1261 = vsub.s32 %v1258, %v1260
        %v1262 = vrot.slane %v1249, %v1261
        %v1264 = vunpack.c.l.s4 1983009808
        %v1265 = vunpack.c.0.s8 %v1264
        %v1266 = vlaneseq
        %v1267 = vshrl.u32 %v1266, 7
        %v1268 = vsub.s32 %v1265, %v1267
        %v1269 = vrot.slane %v1255, %v1268
        %v1270 = vcombine.low %v1262, %v1262
        %v1271 = vcombine.low %v1269, %v1269
        %v1272 = vcombine.high %v1250, %v1250
        %v1274 = vunpack.c.l.s4 1983009808
        %v1275 = vunpack.c.0.s8 %v1274
        %v1276 = vlaneseq
        %v1277 = vshrl.u32 %v1276, 7
        %v1278 = vsub.s32 %v1275, %v1277
        %v1279 = vrot.slane %v1250, %v1278
        %v1281 = vunpack.c.l.s4 1983009808
        %v1282 = vunpack.c.0.s8 %v1281
        %v1283 = vlaneseq
        %v1284 = vshrl.u32 %v1283, 7
        %v1285 = vsub.s32 %v1282, %v1284
        %v1286 = vrot.slane %v1272, %v1285
        %v1287 = vcombine.low %v1279, %v1279
        %v1288 = vcombine.low %v1286, %v1286
        %v1290 = vunpack.c.l.s4 1983009808
        %v1291 = vunpack.c.0.s8 %v1290
        %v1292 = vlaneseq
        %v1293 = vshrl.u32 %v1292, 7
        %v1294 = vsub.s32 %v1291, %v1293
        %v1295 = vrot.slane %v1251, %v1294
        %v1296 = vcombine.low %v1295, %v1295
        %1297 = vrot.lane.b32.xlu0 %v1270, 104
        %v1298 = vpop.permute.xlu0 %1297
        %1299 = vrot.lane.b32.xlu0 %v1262, 104
        %v1300 = vpop.permute.xlu0 %1299
        %1301 = vrot.lane.b32.xlu0 %v1271, 104
        %v1302 = vpop.permute.xlu0 %1301
        %1303 = vrot.lane.b32.xlu0 %v1269, 104
        %v1304 = vpop.permute.xlu0 %1303
        %1305 = vrot.lane.b32.xlu0 %v1287, 104
        %v1306 = vpop.permute.xlu0 %1305
        %1307 = vrot.lane.b32.xlu0 %v1279, 104
        %v1308 = vpop.permute.xlu0 %1307
        %1309 = vrot.lane.b32.xlu0 %v1288, 104
        %v1310 = vpop.permute.xlu0 %1309
        %1311 = vrot.lane.b32.xlu0 %v1286, 104
        %v1312 = vpop.permute.xlu0 %1311
        %1313 = vrot.lane.b32.xlu0 %v1296, 104
        %v1314 = vpop.permute.xlu0 %1313
        %v1315 = vsel %vm502, %v1298, %v1300
        %v1316 = vsel %vm502, %v1300, %v1302
        %v1317 = vsel %vm502, %v1302, %v1304
        %v1318 = vsel %vm502, %v1304, %v1306
        %v1319 = vsel %vm502, %v1306, %v1308
        %v1320 = vsel %vm502, %v1308, %v1310
        %v1321 = vsel %vm502, %v1310, %v1312
        %v1322 = vsel %vm502, %v1312, %v1314
        %1331 = vst [vmem:[#allocation3 + $0x80] sm:$0x30] %v1315
        %1332 = vst [vmem:[#allocation3 + $0x88] sm:$0x30] %v1316
        %1333 = vst [vmem:[#allocation3 + $0x90] sm:$0x30] %v1317
        %1334 = vst [vmem:[#allocation3 + $0x98] sm:$0x30] %v1318
        %1335 = vst [vmem:[#allocation3 + $0xa0] sm:$0x30] %v1319
        %1336 = vst [vmem:[#allocation3 + $0xa8] sm:$0x30] %v1320
        %1337 = vst [vmem:[#allocation3 + $0xb0] sm:$0x30] %v1321
        %1338 = vst [vmem:[#allocation3 + $0xb8] sm:$0x30] %v1322
        %v1339 = vld [vmem:[#allocation2 + $0xc] sm:$0xff]
        %v1340 = vld [vmem:[#allocation2 + $0x14] sm:$0xff]
        %v1341 = vld [vmem:[#allocation2 + $0x1c] sm:$0x3]
        %v1345 = vcombine.low %v1339, %v1339
        %v1347 = vunpack.c.l.s4 1983009808
        %v1348 = vunpack.c.0.s8 %v1347
        %v1349 = vlaneseq
        %v1350 = vshrl.u32 %v1349, 7
        %v1351 = vsub.s32 %v1348, %v1350
        %v1352 = vrot.slane %v1345, %v1351
        %v1354 = vunpack.c.l.s4 1983009808
        %v1355 = vunpack.c.0.s8 %v1354
        %v1356 = vlaneseq
        %v1357 = vshrl.u32 %v1356, 7
        %v1358 = vsub.s32 %v1355, %v1357
        %v1359 = vrot.slane %v1339, %v1358
        %v1360 = vcombine.low %v1352, %v1352
        %v1361 = vcombine.low %v1359, %v1359
        %v1362 = vcombine.low %v1340, %v1340
        %v1364 = vunpack.c.l.s4 1983009808
        %v1365 = vunpack.c.0.s8 %v1364
        %v1366 = vlaneseq
        %v1367 = vshrl.u32 %v1366, 7
        %v1368 = vsub.s32 %v1365, %v1367
        %v1369 = vrot.slane %v1362, %v1368
        %v1371 = vunpack.c.l.s4 1983009808
        %v1372 = vunpack.c.0.s8 %v1371
        %v1373 = vlaneseq
        %v1374 = vshrl.u32 %v1373, 7
        %v1375 = vsub.s32 %v1372, %v1374
        %v1376 = vrot.slane %v1340, %v1375
        %v1377 = vcombine.low %v1369, %v1369
        %v1378 = vcombine.low %v1376, %v1376
        %v1379 = vcombine.low %v1341, %v1341
        %v1381 = vunpack.c.l.s4 1983009808
        %v1382 = vunpack.c.0.s8 %v1381
        %v1383 = vlaneseq
        %v1384 = vshrl.u32 %v1383, 7
        %v1385 = vsub.s32 %v1382, %v1384
        %v1386 = vrot.slane %v1379, %v1385
        %v1387 = vcombine.low %v1386, %v1386
        %1388 = vrot.lane.b32.xlu0 %v1360, 92
        %v1389 = vpop.permute.xlu0 %1388
        %1390 = vrot.lane.b32.xlu0 %v1352, 92
        %v1391 = vpop.permute.xlu0 %1390
        %1392 = vrot.lane.b32.xlu0 %v1361, 92
        %v1393 = vpop.permute.xlu0 %1392
        %1394 = vrot.lane.b32.xlu0 %v1359, 92
        %v1395 = vpop.permute.xlu0 %1394
        %1396 = vrot.lane.b32.xlu0 %v1377, 92
        %v1397 = vpop.permute.xlu0 %1396
        %1398 = vrot.lane.b32.xlu0 %v1369, 92
        %v1399 = vpop.permute.xlu0 %1398
        %1400 = vrot.lane.b32.xlu0 %v1378, 92
        %v1401 = vpop.permute.xlu0 %1400
        %1402 = vrot.lane.b32.xlu0 %v1376, 92
        %v1403 = vpop.permute.xlu0 %1402
        %1404 = vrot.lane.b32.xlu0 %v1387, 92
        %v1405 = vpop.permute.xlu0 %1404
        %vm1406 = vcmask 752640
        %v1407 = vsel %vm1406, %v1389, %v1391
        %v1408 = vsel %vm1406, %v1391, %v1393
        %v1409 = vsel %vm1406, %v1393, %v1395
        %v1410 = vsel %vm1406, %v1395, %v1397
        %v1411 = vsel %vm1406, %v1397, %v1399
        %v1412 = vsel %vm1406, %v1399, %v1401
        %v1413 = vsel %vm1406, %v1401, %v1403
        %v1414 = vsel %vm1406, %v1403, %v1405
        %1423 = vst [vmem:[#allocation3 + $0x80] sm:$0xc0] %v1407
        %1424 = vst [vmem:[#allocation3 + $0x88] sm:$0xc0] %v1408
        %1425 = vst [vmem:[#allocation3 + $0x90] sm:$0xc0] %v1409
        %1426 = vst [vmem:[#allocation3 + $0x98] sm:$0xc0] %v1410
        %1427 = vst [vmem:[#allocation3 + $0xa0] sm:$0xc0] %v1411
        %1428 = vst [vmem:[#allocation3 + $0xa8] sm:$0xc0] %v1412
        %1429 = vst [vmem:[#allocation3 + $0xb0] sm:$0xc0] %v1413
        %1430 = vst [vmem:[#allocation3 + $0xb8] sm:$0xc0] %v1414
        %v1431 = vld [vmem:[#allocation2 + $0x18] sm:$0xff]
        %v1432 = vld [vmem:[#allocation2 + $0x20] sm:$0xff]
        %v1433 = vld [vmem:[#allocation2 + $0x28] sm:$0x3]
        %v1437 = vcombine.high %v1431, %v1431
        %v1439 = vunpack.c.l.s4 1983009808
        %v1440 = vunpack.c.0.s8 %v1439
        %v1441 = vlaneseq
        %v1442 = vshrl.u32 %v1441, 7
        %v1443 = vsub.s32 %v1440, %v1442
        %v1444 = vrot.slane %v1431, %v1443
        %v1446 = vunpack.c.l.s4 1983009808
        %v1447 = vunpack.c.0.s8 %v1446
        %v1448 = vlaneseq
        %v1449 = vshrl.u32 %v1448, 7
        %v1450 = vsub.s32 %v1447, %v1449
        %v1451 = vrot.slane %v1437, %v1450
        %v1452 = vcombine.high %v1444, %v1444
        %v1453 = vcombine.high %v1451, %v1451
        %v1454 = vcombine.high %v1432, %v1432
        %v1456 = vunpack.c.l.s4 1983009808
        %v1457 = vunpack.c.0.s8 %v1456
        %v1458 = vlaneseq
        %v1459 = vshrl.u32 %v1458, 7
        %v1460 = vsub.s32 %v1457, %v1459
        %v1461 = vrot.slane %v1432, %v1460
        %v1463 = vunpack.c.l.s4 1983009808
        %v1464 = vunpack.c.0.s8 %v1463
        %v1465 = vlaneseq
        %v1466 = vshrl.u32 %v1465, 7
        %v1467 = vsub.s32 %v1464, %v1466
        %v1468 = vrot.slane %v1454, %v1467
        %v1469 = vcombine.high %v1461, %v1461
        %v1470 = vcombine.high %v1468, %v1468
        %v1472 = vunpack.c.l.s4 1983009808
        %v1473 = vunpack.c.0.s8 %v1472
        %v1474 = vlaneseq
        %v1475 = vshrl.u32 %v1474, 7
        %v1476 = vsub.s32 %v1473, %v1475
        %v1477 = vrot.slane %v1433, %v1476
        %1478 = vrot.lane.b32.xlu0 %v1444, 116
        %v1479 = vpop.permute.xlu0 %1478
        %1480 = vrot.lane.b32.xlu0 %v1452, 116
        %v1481 = vpop.permute.xlu0 %1480
        %1482 = vrot.lane.b32.xlu0 %v1451, 116
        %v1483 = vpop.permute.xlu0 %1482
        %1484 = vrot.lane.b32.xlu0 %v1453, 116
        %v1485 = vpop.permute.xlu0 %1484
        %1486 = vrot.lane.b32.xlu0 %v1461, 116
        %v1487 = vpop.permute.xlu0 %1486
        %1488 = vrot.lane.b32.xlu0 %v1469, 116
        %v1489 = vpop.permute.xlu0 %1488
        %1490 = vrot.lane.b32.xlu0 %v1468, 116
        %v1491 = vpop.permute.xlu0 %1490
        %1492 = vrot.lane.b32.xlu0 %v1470, 116
        %v1493 = vpop.permute.xlu0 %1492
        %1494 = vrot.lane.b32.xlu0 %v1477, 116
        %v1495 = vpop.permute.xlu0 %1494
        %v1496 = vsel %vm1224, %v1479, %v1481
        %v1497 = vsel %vm1224, %v1481, %v1483
        %v1498 = vsel %vm1224, %v1483, %v1485
        %v1499 = vsel %vm1224, %v1485, %v1487
        %v1500 = vsel %vm1224, %v1487, %v1489
        %v1501 = vsel %vm1224, %v1489, %v1491
        %v1502 = vsel %vm1224, %v1491, %v1493
        %v1503 = vsel %vm1224, %v1493, %v1495
        %1512 = vst [vmem:[#allocation3 + $0xc0] sm:$0x3] %v1496
        %1513 = vst [vmem:[#allocation3 + $0xc8] sm:$0x3] %v1497
        %1514 = vst [vmem:[#allocation3 + $0xd0] sm:$0x3] %v1498
        %1515 = vst [vmem:[#allocation3 + $0xd8] sm:$0x3] %v1499
        %1516 = vst [vmem:[#allocation3 + $0xe0] sm:$0x3] %v1500
        %1517 = vst [vmem:[#allocation3 + $0xe8] sm:$0x3] %v1501
        %1518 = vst [vmem:[#allocation3 + $0xf0] sm:$0x3] %v1502
        %1519 = vst [vmem:[#allocation3 + $0xf8] sm:$0x3] %v1503
        %v1520 = vld [vmem:[#allocation2 + $0x18] sm:$0xff]
        %v1521 = vld [vmem:[#allocation2 + $0x20] sm:$0xff]
        %v1522 = vld [vmem:[#allocation2 + $0x28] sm:$0x3]
        %v1526 = vcombine.low %v1520, %v1520
        %v1528 = vunpack.c.l.s4 1983009808
        %v1529 = vunpack.c.0.s8 %v1528
        %v1530 = vlaneseq
        %v1531 = vshrl.u32 %v1530, 7
        %v1532 = vsub.s32 %v1529, %v1531
        %v1533 = vrot.slane %v1526, %v1532
        %v1535 = vunpack.c.l.s4 1983009808
        %v1536 = vunpack.c.0.s8 %v1535
        %v1537 = vlaneseq
        %v1538 = vshrl.u32 %v1537, 7
        %v1539 = vsub.s32 %v1536, %v1538
        %v1540 = vrot.slane %v1520, %v1539
        %v1541 = vcombine.high %v1533, %v1533
        %v1542 = vcombine.high %v1540, %v1540
        %v1543 = vcombine.low %v1521, %v1521
        %v1545 = vunpack.c.l.s4 1983009808
        %v1546 = vunpack.c.0.s8 %v1545
        %v1547 = vlaneseq
        %v1548 = vshrl.u32 %v1547, 7
        %v1549 = vsub.s32 %v1546, %v1548
        %v1550 = vrot.slane %v1543, %v1549
        %v1552 = vunpack.c.l.s4 1983009808
        %v1553 = vunpack.c.0.s8 %v1552
        %v1554 = vlaneseq
        %v1555 = vshrl.u32 %v1554, 7
        %v1556 = vsub.s32 %v1553, %v1555
        %v1557 = vrot.slane %v1521, %v1556
        %v1558 = vcombine.high %v1550, %v1550
        %v1559 = vcombine.high %v1557, %v1557
        %v1560 = vcombine.low %v1522, %v1522
        %v1562 = vunpack.c.l.s4 1983009808
        %v1563 = vunpack.c.0.s8 %v1562
        %v1564 = vlaneseq
        %v1565 = vshrl.u32 %v1564, 7
        %v1566 = vsub.s32 %v1563, %v1565
        %v1567 = vrot.slane %v1560, %v1566
        %1568 = vrot.lane.b32.xlu0 %v1533, 104
        %v1569 = vpop.permute.xlu0 %1568
        %1570 = vrot.lane.b32.xlu0 %v1541, 104
        %v1571 = vpop.permute.xlu0 %1570
        %1572 = vrot.lane.b32.xlu0 %v1540, 104
        %v1573 = vpop.permute.xlu0 %1572
        %1574 = vrot.lane.b32.xlu0 %v1542, 104
        %v1575 = vpop.permute.xlu0 %1574
        %1576 = vrot.lane.b32.xlu0 %v1550, 104
        %v1577 = vpop.permute.xlu0 %1576
        %1578 = vrot.lane.b32.xlu0 %v1558, 104
        %v1579 = vpop.permute.xlu0 %1578
        %1580 = vrot.lane.b32.xlu0 %v1557, 104
        %v1581 = vpop.permute.xlu0 %1580
        %1582 = vrot.lane.b32.xlu0 %v1559, 104
        %v1583 = vpop.permute.xlu0 %1582
        %1584 = vrot.lane.b32.xlu0 %v1567, 104
        %v1585 = vpop.permute.xlu0 %1584
        %v1586 = vsel %vm502, %v1569, %v1571
        %v1587 = vsel %vm502, %v1571, %v1573
        %v1588 = vsel %vm502, %v1573, %v1575
        %v1589 = vsel %vm502, %v1575, %v1577
        %v1590 = vsel %vm502, %v1577, %v1579
        %v1591 = vsel %vm502, %v1579, %v1581
        %v1592 = vsel %vm502, %v1581, %v1583
        %v1593 = vsel %vm502, %v1583, %v1585
        %1602 = vst [vmem:[#allocation3 + $0xc0] sm:$0xc] %v1586
        %1603 = vst [vmem:[#allocation3 + $0xc8] sm:$0xc] %v1587
        %1604 = vst [vmem:[#allocation3 + $0xd0] sm:$0xc] %v1588
        %1605 = vst [vmem:[#allocation3 + $0xd8] sm:$0xc] %v1589
        %1606 = vst [vmem:[#allocation3 + $0xe0] sm:$0xc] %v1590
        %1607 = vst [vmem:[#allocation3 + $0xe8] sm:$0xc] %v1591
        %1608 = vst [vmem:[#allocation3 + $0xf0] sm:$0xc] %v1592
        %1609 = vst [vmem:[#allocation3 + $0xf8] sm:$0xc] %v1593
        %v1610 = vld [vmem:[#allocation2 + $0x18] sm:$0xff]
        %v1611 = vld [vmem:[#allocation2 + $0x20] sm:$0xff]
        %v1612 = vld [vmem:[#allocation2 + $0x28] sm:$0x3]
        %v1616 = vcombine.high %v1610, %v1610
        %v1618 = vunpack.c.l.s4 1983009808
        %v1619 = vunpack.c.0.s8 %v1618
        %v1620 = vlaneseq
        %v1621 = vshrl.u32 %v1620, 7
        %v1622 = vsub.s32 %v1619, %v1621
        %v1623 = vrot.slane %v1610, %v1622
        %v1625 = vunpack.c.l.s4 1983009808
        %v1626 = vunpack.c.0.s8 %v1625
        %v1627 = vlaneseq
        %v1628 = vshrl.u32 %v1627, 7
        %v1629 = vsub.s32 %v1626, %v1628
        %v1630 = vrot.slane %v1616, %v1629
        %v1631 = vcombine.low %v1623, %v1623
        %v1632 = vcombine.low %v1630, %v1630
        %v1633 = vcombine.high %v1611, %v1611
        %v1635 = vunpack.c.l.s4 1983009808
        %v1636 = vunpack.c.0.s8 %v1635
        %v1637 = vlaneseq
        %v1638 = vshrl.u32 %v1637, 7
        %v1639 = vsub.s32 %v1636, %v1638
        %v1640 = vrot.slane %v1611, %v1639
        %v1642 = vunpack.c.l.s4 1983009808
        %v1643 = vunpack.c.0.s8 %v1642
        %v1644 = vlaneseq
        %v1645 = vshrl.u32 %v1644, 7
        %v1646 = vsub.s32 %v1643, %v1645
        %v1647 = vrot.slane %v1633, %v1646
        %v1648 = vcombine.low %v1640, %v1640
        %v1649 = vcombine.low %v1647, %v1647
        %v1651 = vunpack.c.l.s4 1983009808
        %v1652 = vunpack.c.0.s8 %v1651
        %v1653 = vlaneseq
        %v1654 = vshrl.u32 %v1653, 7
        %v1655 = vsub.s32 %v1652, %v1654
        %v1656 = vrot.slane %v1612, %v1655
        %v1657 = vcombine.low %v1656, %v1656
        %1658 = vrot.lane.b32.xlu0 %v1631, 92
        %v1659 = vpop.permute.xlu0 %1658
        %1660 = vrot.lane.b32.xlu0 %v1623, 92
        %v1661 = vpop.permute.xlu0 %1660
        %1662 = vrot.lane.b32.xlu0 %v1632, 92
        %v1663 = vpop.permute.xlu0 %1662
        %1664 = vrot.lane.b32.xlu0 %v1630, 92
        %v1665 = vpop.permute.xlu0 %1664
        %1666 = vrot.lane.b32.xlu0 %v1648, 92
        %v1667 = vpop.permute.xlu0 %1666
        %1668 = vrot.lane.b32.xlu0 %v1640, 92
        %v1669 = vpop.permute.xlu0 %1668
        %1670 = vrot.lane.b32.xlu0 %v1649, 92
        %v1671 = vpop.permute.xlu0 %1670
        %1672 = vrot.lane.b32.xlu0 %v1647, 92
        %v1673 = vpop.permute.xlu0 %1672
        %1674 = vrot.lane.b32.xlu0 %v1657, 92
        %v1675 = vpop.permute.xlu0 %1674
        %v1676 = vsel %vm1406, %v1659, %v1661
        %v1677 = vsel %vm1406, %v1661, %v1663
        %v1678 = vsel %vm1406, %v1663, %v1665
        %v1679 = vsel %vm1406, %v1665, %v1667
        %v1680 = vsel %vm1406, %v1667, %v1669
        %v1681 = vsel %vm1406, %v1669, %v1671
        %v1682 = vsel %vm1406, %v1671, %v1673
        %v1683 = vsel %vm1406, %v1673, %v1675
        %1692 = vst [vmem:[#allocation3 + $0xc0] sm:$0x30] %v1676
        %1693 = vst [vmem:[#allocation3 + $0xc8] sm:$0x30] %v1677
        %1694 = vst [vmem:[#allocation3 + $0xd0] sm:$0x30] %v1678
        %1695 = vst [vmem:[#allocation3 + $0xd8] sm:$0x30] %v1679
        %1696 = vst [vmem:[#allocation3 + $0xe0] sm:$0x30] %v1680
        %1697 = vst [vmem:[#allocation3 + $0xe8] sm:$0x30] %v1681
        %1698 = vst [vmem:[#allocation3 + $0xf0] sm:$0x30] %v1682
        %1699 = vst [vmem:[#allocation3 + $0xf8] sm:$0x30] %v1683
        %v1700 = vld [vmem:[#allocation2 + $0x24] sm:$0xff]
        %v1701 = vld [vmem:[#allocation2 + $0x2c] sm:$0xff]
        %v1702 = vld [vmem:[#allocation2 + $0x34] sm:$0x3]
        %v1706 = vcombine.low %v1700, %v1700
        %v1708 = vunpack.c.l.s4 1983009808
        %v1709 = vunpack.c.0.s8 %v1708
        %v1710 = vlaneseq
        %v1711 = vshrl.u32 %v1710, 7
        %v1712 = vsub.s32 %v1709, %v1711
        %v1713 = vrot.slane %v1706, %v1712
        %v1715 = vunpack.c.l.s4 1983009808
        %v1716 = vunpack.c.0.s8 %v1715
        %v1717 = vlaneseq
        %v1718 = vshrl.u32 %v1717, 7
        %v1719 = vsub.s32 %v1716, %v1718
        %v1720 = vrot.slane %v1700, %v1719
        %v1721 = vcombine.low %v1713, %v1713
        %v1722 = vcombine.low %v1720, %v1720
        %v1723 = vcombine.low %v1701, %v1701
        %v1725 = vunpack.c.l.s4 1983009808
        %v1726 = vunpack.c.0.s8 %v1725
        %v1727 = vlaneseq
        %v1728 = vshrl.u32 %v1727, 7
        %v1729 = vsub.s32 %v1726, %v1728
        %v1730 = vrot.slane %v1723, %v1729
        %v1732 = vunpack.c.l.s4 1983009808
        %v1733 = vunpack.c.0.s8 %v1732
        %v1734 = vlaneseq
        %v1735 = vshrl.u32 %v1734, 7
        %v1736 = vsub.s32 %v1733, %v1735
        %v1737 = vrot.slane %v1701, %v1736
        %v1738 = vcombine.low %v1730, %v1730
        %v1739 = vcombine.low %v1737, %v1737
        %v1740 = vcombine.low %v1702, %v1702
        %v1742 = vunpack.c.l.s4 1983009808
        %v1743 = vunpack.c.0.s8 %v1742
        %v1744 = vlaneseq
        %v1745 = vshrl.u32 %v1744, 7
        %v1746 = vsub.s32 %v1743, %v1745
        %v1747 = vrot.slane %v1740, %v1746
        %v1748 = vcombine.low %v1747, %v1747
        %1749 = vrot.lane.b32.xlu0 %v1721, 116
        %v1750 = vpop.permute.xlu0 %1749
        %1751 = vrot.lane.b32.xlu0 %v1713, 116
        %v1752 = vpop.permute.xlu0 %1751
        %1753 = vrot.lane.b32.xlu0 %v1722, 116
        %v1754 = vpop.permute.xlu0 %1753
        %1755 = vrot.lane.b32.xlu0 %v1720, 116
        %v1756 = vpop.permute.xlu0 %1755
        %1757 = vrot.lane.b32.xlu0 %v1738, 116
        %v1758 = vpop.permute.xlu0 %1757
        %1759 = vrot.lane.b32.xlu0 %v1730, 116
        %v1760 = vpop.permute.xlu0 %1759
        %1761 = vrot.lane.b32.xlu0 %v1739, 116
        %v1762 = vpop.permute.xlu0 %1761
        %1763 = vrot.lane.b32.xlu0 %v1737, 116
        %v1764 = vpop.permute.xlu0 %1763
        %1765 = vrot.lane.b32.xlu0 %v1748, 116
        %v1766 = vpop.permute.xlu0 %1765
        %v1767 = vsel %vm1224, %v1750, %v1752
        %v1768 = vsel %vm1224, %v1752, %v1754
        %v1769 = vsel %vm1224, %v1754, %v1756
        %v1770 = vsel %vm1224, %v1756, %v1758
        %v1771 = vsel %vm1224, %v1758, %v1760
        %v1772 = vsel %vm1224, %v1760, %v1762
        %v1773 = vsel %vm1224, %v1762, %v1764
        %v1774 = vsel %vm1224, %v1764, %v1766
        %1783 = vst [vmem:[#allocation3 + $0xc0] sm:$0xc0] %v1767
        %1784 = vst [vmem:[#allocation3 + $0xc8] sm:$0xc0] %v1768
        %1785 = vst [vmem:[#allocation3 + $0xd0] sm:$0xc0] %v1769
        %1786 = vst [vmem:[#allocation3 + $0xd8] sm:$0xc0] %v1770
        %1787 = vst [vmem:[#allocation3 + $0xe0] sm:$0xc0] %v1771
        %1788 = vst [vmem:[#allocation3 + $0xe8] sm:$0xc0] %v1772
        %1789 = vst [vmem:[#allocation3 + $0xf0] sm:$0xc0] %v1773
        %1790 = vst [vmem:[#allocation3 + $0xf8] sm:$0xc0] %v1774
        %v1791 = vld [vmem:[#allocation2 + $0x24] sm:$0xff]
        %v1792 = vld [vmem:[#allocation2 + $0x2c] sm:$0xff]
        %v1793 = vld [vmem:[#allocation2 + $0x34] sm:$0x3]
        %v1797 = vcombine.high %v1791, %v1791
        %v1799 = vunpack.c.l.s4 1983009808
        %v1800 = vunpack.c.0.s8 %v1799
        %v1801 = vlaneseq
        %v1802 = vshrl.u32 %v1801, 7
        %v1803 = vsub.s32 %v1800, %v1802
        %v1804 = vrot.slane %v1791, %v1803
        %v1806 = vunpack.c.l.s4 1983009808
        %v1807 = vunpack.c.0.s8 %v1806
        %v1808 = vlaneseq
        %v1809 = vshrl.u32 %v1808, 7
        %v1810 = vsub.s32 %v1807, %v1809
        %v1811 = vrot.slane %v1797, %v1810
        %v1812 = vcombine.high %v1804, %v1804
        %v1813 = vcombine.high %v1811, %v1811
        %v1814 = vcombine.high %v1792, %v1792
        %v1816 = vunpack.c.l.s4 1983009808
        %v1817 = vunpack.c.0.s8 %v1816
        %v1818 = vlaneseq
        %v1819 = vshrl.u32 %v1818, 7
        %v1820 = vsub.s32 %v1817, %v1819
        %v1821 = vrot.slane %v1792, %v1820
        %v1823 = vunpack.c.l.s4 1983009808
        %v1824 = vunpack.c.0.s8 %v1823
        %v1825 = vlaneseq
        %v1826 = vshrl.u32 %v1825, 7
        %v1827 = vsub.s32 %v1824, %v1826
        %v1828 = vrot.slane %v1814, %v1827
        %v1829 = vcombine.high %v1821, %v1821
        %v1830 = vcombine.high %v1828, %v1828
        %v1832 = vunpack.c.l.s4 1983009808
        %v1833 = vunpack.c.0.s8 %v1832
        %v1834 = vlaneseq
        %v1835 = vshrl.u32 %v1834, 7
        %v1836 = vsub.s32 %v1833, %v1835
        %v1837 = vrot.slane %v1793, %v1836
        %1838 = vrot.lane.b32.xlu0 %v1804, 104
        %v1839 = vpop.permute.xlu0 %1838
        %1840 = vrot.lane.b32.xlu0 %v1812, 104
        %v1841 = vpop.permute.xlu0 %1840
        %1842 = vrot.lane.b32.xlu0 %v1811, 104
        %v1843 = vpop.permute.xlu0 %1842
        %1844 = vrot.lane.b32.xlu0 %v1813, 104
        %v1845 = vpop.permute.xlu0 %1844
        %1846 = vrot.lane.b32.xlu0 %v1821, 104
        %v1847 = vpop.permute.xlu0 %1846
        %1848 = vrot.lane.b32.xlu0 %v1829, 104
        %v1849 = vpop.permute.xlu0 %1848
        %1850 = vrot.lane.b32.xlu0 %v1828, 104
        %v1851 = vpop.permute.xlu0 %1850
        %1852 = vrot.lane.b32.xlu0 %v1830, 104
        %v1853 = vpop.permute.xlu0 %1852
        %1854 = vrot.lane.b32.xlu0 %v1837, 104
        %v1855 = vpop.permute.xlu0 %1854
        %v1856 = vsel %vm502, %v1839, %v1841
        %v1857 = vsel %vm502, %v1841, %v1843
        %v1858 = vsel %vm502, %v1843, %v1845
        %v1859 = vsel %vm502, %v1845, %v1847
        %v1860 = vsel %vm502, %v1847, %v1849
        %v1861 = vsel %vm502, %v1849, %v1851
        %v1862 = vsel %vm502, %v1851, %v1853
        %v1863 = vsel %vm502, %v1853, %v1855
        %1872 = vst [vmem:[#allocation3 + $0x100] sm:$0x3] %v1856
        %1873 = vst [vmem:[#allocation3 + $0x108] sm:$0x3] %v1857
        %1874 = vst [vmem:[#allocation3 + $0x110] sm:$0x3] %v1858
        %1875 = vst [vmem:[#allocation3 + $0x118] sm:$0x3] %v1859
        %1876 = vst [vmem:[#allocation3 + $0x120] sm:$0x3] %v1860
        %1877 = vst [vmem:[#allocation3 + $0x128] sm:$0x3] %v1861
        %1878 = vst [vmem:[#allocation3 + $0x130] sm:$0x3] %v1862
        %1879 = vst [vmem:[#allocation3 + $0x138] sm:$0x3] %v1863
        %v1880 = vld [vmem:[#allocation2 + $0x24] sm:$0xff]
        %v1881 = vld [vmem:[#allocation2 + $0x2c] sm:$0xff]
        %v1882 = vld [vmem:[#allocation2 + $0x34] sm:$0x3]
        %v1886 = vcombine.low %v1880, %v1880
        %v1888 = vunpack.c.l.s4 1983009808
        %v1889 = vunpack.c.0.s8 %v1888
        %v1890 = vlaneseq
        %v1891 = vshrl.u32 %v1890, 7
        %v1892 = vsub.s32 %v1889, %v1891
        %v1893 = vrot.slane %v1886, %v1892
        %v1895 = vunpack.c.l.s4 1983009808
        %v1896 = vunpack.c.0.s8 %v1895
        %v1897 = vlaneseq
        %v1898 = vshrl.u32 %v1897, 7
        %v1899 = vsub.s32 %v1896, %v1898
        %v1900 = vrot.slane %v1880, %v1899
        %v1901 = vcombine.high %v1893, %v1893
        %v1902 = vcombine.high %v1900, %v1900
        %v1903 = vcombine.low %v1881, %v1881
        %v1905 = vunpack.c.l.s4 1983009808
        %v1906 = vunpack.c.0.s8 %v1905
        %v1907 = vlaneseq
        %v1908 = vshrl.u32 %v1907, 7
        %v1909 = vsub.s32 %v1906, %v1908
        %v1910 = vrot.slane %v1903, %v1909
        %v1912 = vunpack.c.l.s4 1983009808
        %v1913 = vunpack.c.0.s8 %v1912
        %v1914 = vlaneseq
        %v1915 = vshrl.u32 %v1914, 7
        %v1916 = vsub.s32 %v1913, %v1915
        %v1917 = vrot.slane %v1881, %v1916
        %v1918 = vcombine.high %v1910, %v1910
        %v1919 = vcombine.high %v1917, %v1917
        %v1920 = vcombine.low %v1882, %v1882
        %v1922 = vunpack.c.l.s4 1983009808
        %v1923 = vunpack.c.0.s8 %v1922
        %v1924 = vlaneseq
        %v1925 = vshrl.u32 %v1924, 7
        %v1926 = vsub.s32 %v1923, %v1925
        %v1927 = vrot.slane %v1920, %v1926
        %1928 = vrot.lane.b32.xlu0 %v1893, 92
        %v1929 = vpop.permute.xlu0 %1928
        %1930 = vrot.lane.b32.xlu0 %v1901, 92
        %v1931 = vpop.permute.xlu0 %1930
        %1932 = vrot.lane.b32.xlu0 %v1900, 92
        %v1933 = vpop.permute.xlu0 %1932
        %1934 = vrot.lane.b32.xlu0 %v1902, 92
        %v1935 = vpop.permute.xlu0 %1934
        %1936 = vrot.lane.b32.xlu0 %v1910, 92
        %v1937 = vpop.permute.xlu0 %1936
        %1938 = vrot.lane.b32.xlu0 %v1918, 92
        %v1939 = vpop.permute.xlu0 %1938
        %1940 = vrot.lane.b32.xlu0 %v1917, 92
        %v1941 = vpop.permute.xlu0 %1940
        %1942 = vrot.lane.b32.xlu0 %v1919, 92
        %v1943 = vpop.permute.xlu0 %1942
        %1944 = vrot.lane.b32.xlu0 %v1927, 92
        %v1945 = vpop.permute.xlu0 %1944
        %v1946 = vsel %vm1406, %v1929, %v1931
        %v1947 = vsel %vm1406, %v1931, %v1933
        %v1948 = vsel %vm1406, %v1933, %v1935
        %v1949 = vsel %vm1406, %v1935, %v1937
        %v1950 = vsel %vm1406, %v1937, %v1939
        %v1951 = vsel %vm1406, %v1939, %v1941
        %v1952 = vsel %vm1406, %v1941, %v1943
        %v1953 = vsel %vm1406, %v1943, %v1945
        %1962 = vst [vmem:[#allocation3 + $0x100] sm:$0xc] %v1946
        %1963 = vst [vmem:[#allocation3 + $0x108] sm:$0xc] %v1947
        %1964 = vst [vmem:[#allocation3 + $0x110] sm:$0xc] %v1948
        %1965 = vst [vmem:[#allocation3 + $0x118] sm:$0xc] %v1949
        %1966 = vst [vmem:[#allocation3 + $0x120] sm:$0xc] %v1950
        %1967 = vst [vmem:[#allocation3 + $0x128] sm:$0xc] %v1951
        %1968 = vst [vmem:[#allocation3 + $0x130] sm:$0xc] %v1952
        %1969 = vst [vmem:[#allocation3 + $0x138] sm:$0xc] %v1953
        %v1970 = vld [vmem:[#allocation2 + $0x6] sm:$0xff]
        %v1971 = vld [vmem:[#allocation2 + $0xe] sm:$0xff]
        %v1972 = vld [vmem:[#allocation2 + $0x16] sm:$0x3]
        %v1976 = vcombine.high %v1970, %v1970
        %v1978 = vunpack.c.l.s4 1983009808
        %v1979 = vunpack.c.0.s8 %v1978
        %v1980 = vlaneseq
        %v1981 = vshrl.u32 %v1980, 7
        %v1982 = vsub.s32 %v1979, %v1981
        %v1983 = vrot.slane %v1970, %v1982
        %v1985 = vunpack.c.l.s4 1983009808
        %v1986 = vunpack.c.0.s8 %v1985
        %v1987 = vlaneseq
        %v1988 = vshrl.u32 %v1987, 7
        %v1989 = vsub.s32 %v1986, %v1988
        %v1990 = vrot.slane %v1976, %v1989
        %v1991 = vcombine.low %v1983, %v1983
        %v1992 = vcombine.low %v1990, %v1990
        %v1993 = vcombine.high %v1971, %v1971
        %v1995 = vunpack.c.l.s4 1983009808
        %v1996 = vunpack.c.0.s8 %v1995
        %v1997 = vlaneseq
        %v1998 = vshrl.u32 %v1997, 7
        %v1999 = vsub.s32 %v1996, %v1998
        %v2000 = vrot.slane %v1971, %v1999
        %v2002 = vunpack.c.l.s4 1983009808
        %v2003 = vunpack.c.0.s8 %v2002
        %v2004 = vlaneseq
        %v2005 = vshrl.u32 %v2004, 7
        %v2006 = vsub.s32 %v2003, %v2005
        %v2007 = vrot.slane %v1993, %v2006
        %v2008 = vcombine.low %v2000, %v2000
        %v2009 = vcombine.low %v2007, %v2007
        %v2011 = vunpack.c.l.s4 1983009808
        %v2012 = vunpack.c.0.s8 %v2011
        %v2013 = vlaneseq
        %v2014 = vshrl.u32 %v2013, 7
        %v2015 = vsub.s32 %v2012, %v2014
        %v2016 = vrot.slane %v1972, %v2015
        %v2017 = vcombine.low %v2016, %v2016
        %2018 = vrot.lane.b32.xlu0 %v1991, 122
        %v2019 = vpop.permute.xlu0 %2018
        %2020 = vrot.lane.b32.xlu0 %v1983, 122
        %v2021 = vpop.permute.xlu0 %2020
        %2022 = vrot.lane.b32.xlu0 %v1992, 122
        %v2023 = vpop.permute.xlu0 %2022
        %2024 = vrot.lane.b32.xlu0 %v1990, 122
        %v2025 = vpop.permute.xlu0 %2024
        %2026 = vrot.lane.b32.xlu0 %v2008, 122
        %v2027 = vpop.permute.xlu0 %2026
        %2028 = vrot.lane.b32.xlu0 %v2000, 122
        %v2029 = vpop.permute.xlu0 %2028
        %2030 = vrot.lane.b32.xlu0 %v2009, 122
        %v2031 = vpop.permute.xlu0 %2030
        %2032 = vrot.lane.b32.xlu0 %v2007, 122
        %v2033 = vpop.permute.xlu0 %2032
        %2034 = vrot.lane.b32.xlu0 %v2017, 122
        %v2035 = vpop.permute.xlu0 %2034
        %vm2036 = vcmask 998400
        %v2037 = vsel %vm2036, %v2019, %v2021
        %v2038 = vsel %vm2036, %v2021, %v2023
        %v2039 = vsel %vm2036, %v2023, %v2025
        %v2040 = vsel %vm2036, %v2025, %v2027
        %v2041 = vsel %vm2036, %v2027, %v2029
        %v2042 = vsel %vm2036, %v2029, %v2031
        %v2043 = vsel %vm2036, %v2031, %v2033
        %v2044 = vsel %vm2036, %v2033, %v2035
        %2053 = vst [vmem:[#allocation3 + $0x100] sm:$0x30] %v2037
        %2054 = vst [vmem:[#allocation3 + $0x108] sm:$0x30] %v2038
        %2055 = vst [vmem:[#allocation3 + $0x110] sm:$0x30] %v2039
        %2056 = vst [vmem:[#allocation3 + $0x118] sm:$0x30] %v2040
        %2057 = vst [vmem:[#allocation3 + $0x120] sm:$0x30] %v2041
        %2058 = vst [vmem:[#allocation3 + $0x128] sm:$0x30] %v2042
        %2059 = vst [vmem:[#allocation3 + $0x130] sm:$0x30] %v2043
        %2060 = vst [vmem:[#allocation3 + $0x138] sm:$0x30] %v2044
        %v2061 = vld [vmem:[#allocation2 + $0x6] sm:$0xff]
        %v2062 = vld [vmem:[#allocation2 + $0xe] sm:$0xff]
        %v2063 = vld [vmem:[#allocation2 + $0x16] sm:$0x3]
        %v2067 = vcombine.low %v2061, %v2061
        %v2069 = vunpack.c.l.s4 1983009808
        %v2070 = vunpack.c.0.s8 %v2069
        %v2071 = vlaneseq
        %v2072 = vshrl.u32 %v2071, 7
        %v2073 = vsub.s32 %v2070, %v2072
        %v2074 = vrot.slane %v2067, %v2073
        %v2076 = vunpack.c.l.s4 1983009808
        %v2077 = vunpack.c.0.s8 %v2076
        %v2078 = vlaneseq
        %v2079 = vshrl.u32 %v2078, 7
        %v2080 = vsub.s32 %v2077, %v2079
        %v2081 = vrot.slane %v2061, %v2080
        %v2082 = vcombine.low %v2074, %v2074
        %v2083 = vcombine.low %v2081, %v2081
        %v2084 = vcombine.low %v2062, %v2062
        %v2086 = vunpack.c.l.s4 1983009808
        %v2087 = vunpack.c.0.s8 %v2086
        %v2088 = vlaneseq
        %v2089 = vshrl.u32 %v2088, 7
        %v2090 = vsub.s32 %v2087, %v2089
        %v2091 = vrot.slane %v2084, %v2090
        %v2093 = vunpack.c.l.s4 1983009808
        %v2094 = vunpack.c.0.s8 %v2093
        %v2095 = vlaneseq
        %v2096 = vshrl.u32 %v2095, 7
        %v2097 = vsub.s32 %v2094, %v2096
        %v2098 = vrot.slane %v2062, %v2097
        %v2099 = vcombine.low %v2091, %v2091
        %v2100 = vcombine.low %v2098, %v2098
        %v2101 = vcombine.low %v2063, %v2063
        %v2103 = vunpack.c.l.s4 1983009808
        %v2104 = vunpack.c.0.s8 %v2103
        %v2105 = vlaneseq
        %v2106 = vshrl.u32 %v2105, 7
        %v2107 = vsub.s32 %v2104, %v2106
        %v2108 = vrot.slane %v2101, %v2107
        %v2109 = vcombine.low %v2108, %v2108
        %2110 = vrot.lane.b32.xlu0 %v2082, 104
        %v2111 = vpop.permute.xlu0 %2110
        %2112 = vrot.lane.b32.xlu0 %v2074, 104
        %v2113 = vpop.permute.xlu0 %2112
        %2114 = vrot.lane.b32.xlu0 %v2083, 104
        %v2115 = vpop.permute.xlu0 %2114
        %2116 = vrot.lane.b32.xlu0 %v2081, 104
        %v2117 = vpop.permute.xlu0 %2116
        %2118 = vrot.lane.b32.xlu0 %v2099, 104
        %v2119 = vpop.permute.xlu0 %2118
        %2120 = vrot.lane.b32.xlu0 %v2091, 104
        %v2121 = vpop.permute.xlu0 %2120
        %2122 = vrot.lane.b32.xlu0 %v2100, 104
        %v2123 = vpop.permute.xlu0 %2122
        %2124 = vrot.lane.b32.xlu0 %v2098, 104
        %v2125 = vpop.permute.xlu0 %2124
        %2126 = vrot.lane.b32.xlu0 %v2109, 104
        %v2127 = vpop.permute.xlu0 %2126
        %v2128 = vsel %vm502, %v2111, %v2113
        %v2129 = vsel %vm502, %v2113, %v2115
        %v2130 = vsel %vm502, %v2115, %v2117
        %v2131 = vsel %vm502, %v2117, %v2119
        %v2132 = vsel %vm502, %v2119, %v2121
        %v2133 = vsel %vm502, %v2121, %v2123
        %v2134 = vsel %vm502, %v2123, %v2125
        %v2135 = vsel %vm502, %v2125, %v2127
        %2144 = vst [vmem:[#allocation3 + $0x100] sm:$0xc0] %v2128
        %2145 = vst [vmem:[#allocation3 + $0x108] sm:$0xc0] %v2129
        %2146 = vst [vmem:[#allocation3 + $0x110] sm:$0xc0] %v2130
        %2147 = vst [vmem:[#allocation3 + $0x118] sm:$0xc0] %v2131
        %2148 = vst [vmem:[#allocation3 + $0x120] sm:$0xc0] %v2132
        %2149 = vst [vmem:[#allocation3 + $0x128] sm:$0xc0] %v2133
        %2150 = vst [vmem:[#allocation3 + $0x130] sm:$0xc0] %v2134
        %2151 = vst [vmem:[#allocation3 + $0x138] sm:$0xc0] %v2135
        %v2152 = vld [vmem:[#allocation2 + $0x6] sm:$0xff]
        %v2153 = vld [vmem:[#allocation2 + $0xe] sm:$0xff]
        %v2154 = vld [vmem:[#allocation2 + $0x16] sm:$0x3]
        %v2158 = vcombine.high %v2152, %v2152
        %v2160 = vunpack.c.l.s4 1983009808
        %v2161 = vunpack.c.0.s8 %v2160
        %v2162 = vlaneseq
        %v2163 = vshrl.u32 %v2162, 7
        %v2164 = vsub.s32 %v2161, %v2163
        %v2165 = vrot.slane %v2152, %v2164
        %v2167 = vunpack.c.l.s4 1983009808
        %v2168 = vunpack.c.0.s8 %v2167
        %v2169 = vlaneseq
        %v2170 = vshrl.u32 %v2169, 7
        %v2171 = vsub.s32 %v2168, %v2170
        %v2172 = vrot.slane %v2158, %v2171
        %v2173 = vcombine.high %v2165, %v2165
        %v2174 = vcombine.high %v2172, %v2172
        %v2175 = vcombine.high %v2153, %v2153
        %v2177 = vunpack.c.l.s4 1983009808
        %v2178 = vunpack.c.0.s8 %v2177
        %v2179 = vlaneseq
        %v2180 = vshrl.u32 %v2179, 7
        %v2181 = vsub.s32 %v2178, %v2180
        %v2182 = vrot.slane %v2153, %v2181
        %v2184 = vunpack.c.l.s4 1983009808
        %v2185 = vunpack.c.0.s8 %v2184
        %v2186 = vlaneseq
        %v2187 = vshrl.u32 %v2186, 7
        %v2188 = vsub.s32 %v2185, %v2187
        %v2189 = vrot.slane %v2175, %v2188
        %v2190 = vcombine.high %v2182, %v2182
        %v2191 = vcombine.high %v2189, %v2189
        %v2193 = vunpack.c.l.s4 1983009808
        %v2194 = vunpack.c.0.s8 %v2193
        %v2195 = vlaneseq
        %v2196 = vshrl.u32 %v2195, 7
        %v2197 = vsub.s32 %v2194, %v2196
        %v2198 = vrot.slane %v2154, %v2197
        %2199 = vrot.lane.b32.xlu0 %v2165, 86
        %v2200 = vpop.permute.xlu0 %2199
        %2201 = vrot.lane.b32.xlu0 %v2173, 86
        %v2202 = vpop.permute.xlu0 %2201
        %2203 = vrot.lane.b32.xlu0 %v2172, 86
        %v2204 = vpop.permute.xlu0 %2203
        %2205 = vrot.lane.b32.xlu0 %v2174, 86
        %v2206 = vpop.permute.xlu0 %2205
        %2207 = vrot.lane.b32.xlu0 %v2182, 86
        %v2208 = vpop.permute.xlu0 %2207
        %2209 = vrot.lane.b32.xlu0 %v2190, 86
        %v2210 = vpop.permute.xlu0 %2209
        %2211 = vrot.lane.b32.xlu0 %v2189, 86
        %v2212 = vpop.permute.xlu0 %2211
        %2213 = vrot.lane.b32.xlu0 %v2191, 86
        %v2214 = vpop.permute.xlu0 %2213
        %2215 = vrot.lane.b32.xlu0 %v2198, 86
        %v2216 = vpop.permute.xlu0 %2215
        %vm2217 = vcmask 703488
        %v2218 = vsel %vm2217, %v2200, %v2202
        %v2219 = vsel %vm2217, %v2202, %v2204
        %v2220 = vsel %vm2217, %v2204, %v2206
        %v2221 = vsel %vm2217, %v2206, %v2208
        %v2222 = vsel %vm2217, %v2208, %v2210
        %v2223 = vsel %vm2217, %v2210, %v2212
        %v2224 = vsel %vm2217, %v2212, %v2214
        %v2225 = vsel %vm2217, %v2214, %v2216
        %2234 = vst [vmem:[#allocation3 + $0x140] sm:$0x3] %v2218
        %2235 = vst [vmem:[#allocation3 + $0x148] sm:$0x3] %v2219
        %2236 = vst [vmem:[#allocation3 + $0x150] sm:$0x3] %v2220
        %2237 = vst [vmem:[#allocation3 + $0x158] sm:$0x3] %v2221
        %2238 = vst [vmem:[#allocation3 + $0x160] sm:$0x3] %v2222
        %2239 = vst [vmem:[#allocation3 + $0x168] sm:$0x3] %v2223
        %2240 = vst [vmem:[#allocation3 + $0x170] sm:$0x3] %v2224
        %2241 = vst [vmem:[#allocation3 + $0x178] sm:$0x3] %v2225
        %v2242 = vld [vmem:[#allocation2 + $0x18] sm:$0xff]
        %v2243 = vld [vmem:[#allocation2 + $0x20] sm:$0xff]
        %v2244 = vld [vmem:[#allocation2 + $0x28] sm:$0x3]
        %v2248 = vcombine.low %v2242, %v2242
        %v2250 = vunpack.c.l.s4 1983009808
        %v2251 = vunpack.c.0.s8 %v2250
        %v2252 = vlaneseq
        %v2253 = vshrl.u32 %v2252, 7
        %v2254 = vsub.s32 %v2251, %v2253
        %v2255 = vrot.slane %v2248, %v2254
        %v2257 = vunpack.c.l.s4 1983009808
        %v2258 = vunpack.c.0.s8 %v2257
        %v2259 = vlaneseq
        %v2260 = vshrl.u32 %v2259, 7
        %v2261 = vsub.s32 %v2258, %v2260
        %v2262 = vrot.slane %v2242, %v2261
        %v2263 = vcombine.high %v2255, %v2255
        %v2264 = vcombine.high %v2262, %v2262
        %v2265 = vcombine.low %v2243, %v2243
        %v2267 = vunpack.c.l.s4 1983009808
        %v2268 = vunpack.c.0.s8 %v2267
        %v2269 = vlaneseq
        %v2270 = vshrl.u32 %v2269, 7
        %v2271 = vsub.s32 %v2268, %v2270
        %v2272 = vrot.slane %v2265, %v2271
        %v2274 = vunpack.c.l.s4 1983009808
        %v2275 = vunpack.c.0.s8 %v2274
        %v2276 = vlaneseq
        %v2277 = vshrl.u32 %v2276, 7
        %v2278 = vsub.s32 %v2275, %v2277
        %v2279 = vrot.slane %v2243, %v2278
        %v2280 = vcombine.high %v2272, %v2272
        %v2281 = vcombine.high %v2279, %v2279
        %v2282 = vcombine.low %v2244, %v2244
        %v2284 = vunpack.c.l.s4 1983009808
        %v2285 = vunpack.c.0.s8 %v2284
        %v2286 = vlaneseq
        %v2287 = vshrl.u32 %v2286, 7
        %v2288 = vsub.s32 %v2285, %v2287
        %v2289 = vrot.slane %v2282, %v2288
        %2290 = vrot.lane.b32.xlu0 %v2255, 122
        %v2291 = vpop.permute.xlu0 %2290
        %2292 = vrot.lane.b32.xlu0 %v2263, 122
        %v2293 = vpop.permute.xlu0 %2292
        %2294 = vrot.lane.b32.xlu0 %v2262, 122
        %v2295 = vpop.permute.xlu0 %2294
        %2296 = vrot.lane.b32.xlu0 %v2264, 122
        %v2297 = vpop.permute.xlu0 %2296
        %2298 = vrot.lane.b32.xlu0 %v2272, 122
        %v2299 = vpop.permute.xlu0 %2298
        %2300 = vrot.lane.b32.xlu0 %v2280, 122
        %v2301 = vpop.permute.xlu0 %2300
        %2302 = vrot.lane.b32.xlu0 %v2279, 122
        %v2303 = vpop.permute.xlu0 %2302
        %2304 = vrot.lane.b32.xlu0 %v2281, 122
        %v2305 = vpop.permute.xlu0 %2304
        %2306 = vrot.lane.b32.xlu0 %v2289, 122
        %v2307 = vpop.permute.xlu0 %2306
        %v2308 = vsel %vm2036, %v2291, %v2293
        %v2309 = vsel %vm2036, %v2293, %v2295
        %v2310 = vsel %vm2036, %v2295, %v2297
        %v2311 = vsel %vm2036, %v2297, %v2299
        %v2312 = vsel %vm2036, %v2299, %v2301
        %v2313 = vsel %vm2036, %v2301, %v2303
        %v2314 = vsel %vm2036, %v2303, %v2305
        %v2315 = vsel %vm2036, %v2305, %v2307
        %2324 = vst [vmem:[#allocation3 + $0x140] sm:$0xc] %v2308
        %2325 = vst [vmem:[#allocation3 + $0x148] sm:$0xc] %v2309
        %2326 = vst [vmem:[#allocation3 + $0x150] sm:$0xc] %v2310
        %2327 = vst [vmem:[#allocation3 + $0x158] sm:$0xc] %v2311
        %2328 = vst [vmem:[#allocation3 + $0x160] sm:$0xc] %v2312
        %2329 = vst [vmem:[#allocation3 + $0x168] sm:$0xc] %v2313
        %2330 = vst [vmem:[#allocation3 + $0x170] sm:$0xc] %v2314
        %2331 = vst [vmem:[#allocation3 + $0x178] sm:$0xc] %v2315
        %v2332 = vld [vmem:[#allocation2 + $0x18] sm:$0xff]
        %v2333 = vld [vmem:[#allocation2 + $0x20] sm:$0xff]
        %v2334 = vld [vmem:[#allocation2 + $0x28] sm:$0x3]
        %v2338 = vcombine.high %v2332, %v2332
        %v2340 = vunpack.c.l.s4 1983009808
        %v2341 = vunpack.c.0.s8 %v2340
        %v2342 = vlaneseq
        %v2343 = vshrl.u32 %v2342, 7
        %v2344 = vsub.s32 %v2341, %v2343
        %v2345 = vrot.slane %v2332, %v2344
        %v2347 = vunpack.c.l.s4 1983009808
        %v2348 = vunpack.c.0.s8 %v2347
        %v2349 = vlaneseq
        %v2350 = vshrl.u32 %v2349, 7
        %v2351 = vsub.s32 %v2348, %v2350
        %v2352 = vrot.slane %v2338, %v2351
        %v2353 = vcombine.low %v2345, %v2345
        %v2354 = vcombine.low %v2352, %v2352
        %v2355 = vcombine.high %v2333, %v2333
        %v2357 = vunpack.c.l.s4 1983009808
        %v2358 = vunpack.c.0.s8 %v2357
        %v2359 = vlaneseq
        %v2360 = vshrl.u32 %v2359, 7
        %v2361 = vsub.s32 %v2358, %v2360
        %v2362 = vrot.slane %v2333, %v2361
        %v2364 = vunpack.c.l.s4 1983009808
        %v2365 = vunpack.c.0.s8 %v2364
        %v2366 = vlaneseq
        %v2367 = vshrl.u32 %v2366, 7
        %v2368 = vsub.s32 %v2365, %v2367
        %v2369 = vrot.slane %v2355, %v2368
        %v2370 = vcombine.low %v2362, %v2362
        %v2371 = vcombine.low %v2369, %v2369
        %v2373 = vunpack.c.l.s4 1983009808
        %v2374 = vunpack.c.0.s8 %v2373
        %v2375 = vlaneseq
        %v2376 = vshrl.u32 %v2375, 7
        %v2377 = vsub.s32 %v2374, %v2376
        %v2378 = vrot.slane %v2334, %v2377
        %v2379 = vcombine.low %v2378, %v2378
        %2380 = vrot.lane.b32.xlu0 %v2353, 104
        %v2381 = vpop.permute.xlu0 %2380
        %2382 = vrot.lane.b32.xlu0 %v2345, 104
        %v2383 = vpop.permute.xlu0 %2382
        %2384 = vrot.lane.b32.xlu0 %v2354, 104
        %v2385 = vpop.permute.xlu0 %2384
        %2386 = vrot.lane.b32.xlu0 %v2352, 104
        %v2387 = vpop.permute.xlu0 %2386
        %2388 = vrot.lane.b32.xlu0 %v2370, 104
        %v2389 = vpop.permute.xlu0 %2388
        %2390 = vrot.lane.b32.xlu0 %v2362, 104
        %v2391 = vpop.permute.xlu0 %2390
        %2392 = vrot.lane.b32.xlu0 %v2371, 104
        %v2393 = vpop.permute.xlu0 %2392
        %2394 = vrot.lane.b32.xlu0 %v2369, 104
        %v2395 = vpop.permute.xlu0 %2394
        %2396 = vrot.lane.b32.xlu0 %v2379, 104
        %v2397 = vpop.permute.xlu0 %2396
        %v2398 = vsel %vm502, %v2381, %v2383
        %v2399 = vsel %vm502, %v2383, %v2385
        %v2400 = vsel %vm502, %v2385, %v2387
        %v2401 = vsel %vm502, %v2387, %v2389
        %v2402 = vsel %vm502, %v2389, %v2391
        %v2403 = vsel %vm502, %v2391, %v2393
        %v2404 = vsel %vm502, %v2393, %v2395
        %v2405 = vsel %vm502, %v2395, %v2397
        %2414 = vst [vmem:[#allocation3 + $0x140] sm:$0x30] %v2398
        %2415 = vst [vmem:[#allocation3 + $0x148] sm:$0x30] %v2399
        %2416 = vst [vmem:[#allocation3 + $0x150] sm:$0x30] %v2400
        %2417 = vst [vmem:[#allocation3 + $0x158] sm:$0x30] %v2401
        %2418 = vst [vmem:[#allocation3 + $0x160] sm:$0x30] %v2402
        %2419 = vst [vmem:[#allocation3 + $0x168] sm:$0x30] %v2403
        %2420 = vst [vmem:[#allocation3 + $0x170] sm:$0x30] %v2404
        %2421 = vst [vmem:[#allocation3 + $0x178] sm:$0x30] %v2405
        %v2422 = vld [vmem:[#allocation2 + $0x18] sm:$0xff]
        %v2423 = vld [vmem:[#allocation2 + $0x20] sm:$0xff]
        %v2424 = vld [vmem:[#allocation2 + $0x28] sm:$0x3]
        %v2428 = vcombine.low %v2422, %v2422
        %v2430 = vunpack.c.l.s4 1983009808
        %v2431 = vunpack.c.0.s8 %v2430
        %v2432 = vlaneseq
        %v2433 = vshrl.u32 %v2432, 7
        %v2434 = vsub.s32 %v2431, %v2433
        %v2435 = vrot.slane %v2428, %v2434
        %v2437 = vunpack.c.l.s4 1983009808
        %v2438 = vunpack.c.0.s8 %v2437
        %v2439 = vlaneseq
        %v2440 = vshrl.u32 %v2439, 7
        %v2441 = vsub.s32 %v2438, %v2440
        %v2442 = vrot.slane %v2422, %v2441
        %v2443 = vcombine.low %v2435, %v2435
        %v2444 = vcombine.low %v2442, %v2442
        %v2445 = vcombine.low %v2423, %v2423
        %v2447 = vunpack.c.l.s4 1983009808
        %v2448 = vunpack.c.0.s8 %v2447
        %v2449 = vlaneseq
        %v2450 = vshrl.u32 %v2449, 7
        %v2451 = vsub.s32 %v2448, %v2450
        %v2452 = vrot.slane %v2445, %v2451
        %v2454 = vunpack.c.l.s4 1983009808
        %v2455 = vunpack.c.0.s8 %v2454
        %v2456 = vlaneseq
        %v2457 = vshrl.u32 %v2456, 7
        %v2458 = vsub.s32 %v2455, %v2457
        %v2459 = vrot.slane %v2423, %v2458
        %v2460 = vcombine.low %v2452, %v2452
        %v2461 = vcombine.low %v2459, %v2459
        %v2462 = vcombine.low %v2424, %v2424
        %v2464 = vunpack.c.l.s4 1983009808
        %v2465 = vunpack.c.0.s8 %v2464
        %v2466 = vlaneseq
        %v2467 = vshrl.u32 %v2466, 7
        %v2468 = vsub.s32 %v2465, %v2467
        %v2469 = vrot.slane %v2462, %v2468
        %v2470 = vcombine.low %v2469, %v2469
        %2471 = vrot.lane.b32.xlu0 %v2443, 86
        %v2472 = vpop.permute.xlu0 %2471
        %2473 = vrot.lane.b32.xlu0 %v2435, 86
        %v2474 = vpop.permute.xlu0 %2473
        %2475 = vrot.lane.b32.xlu0 %v2444, 86
        %v2476 = vpop.permute.xlu0 %2475
        %2477 = vrot.lane.b32.xlu0 %v2442, 86
        %v2478 = vpop.permute.xlu0 %2477
        %2479 = vrot.lane.b32.xlu0 %v2460, 86
        %v2480 = vpop.permute.xlu0 %2479
        %2481 = vrot.lane.b32.xlu0 %v2452, 86
        %v2482 = vpop.permute.xlu0 %2481
        %2483 = vrot.lane.b32.xlu0 %v2461, 86
        %v2484 = vpop.permute.xlu0 %2483
        %2485 = vrot.lane.b32.xlu0 %v2459, 86
        %v2486 = vpop.permute.xlu0 %2485
        %2487 = vrot.lane.b32.xlu0 %v2470, 86
        %v2488 = vpop.permute.xlu0 %2487
        %v2489 = vsel %vm2217, %v2472, %v2474
        %v2490 = vsel %vm2217, %v2474, %v2476
        %v2491 = vsel %vm2217, %v2476, %v2478
        %v2492 = vsel %vm2217, %v2478, %v2480
        %v2493 = vsel %vm2217, %v2480, %v2482
        %v2494 = vsel %vm2217, %v2482, %v2484
        %v2495 = vsel %vm2217, %v2484, %v2486
        %v2496 = vsel %vm2217, %v2486, %v2488
        %2505 = vst [vmem:[#allocation3 + $0x140] sm:$0xc0] %v2489
        %2506 = vst [vmem:[#allocation3 + $0x148] sm:$0xc0] %v2490
        %2507 = vst [vmem:[#allocation3 + $0x150] sm:$0xc0] %v2491
        %2508 = vst [vmem:[#allocation3 + $0x158] sm:$0xc0] %v2492
        %2509 = vst [vmem:[#allocation3 + $0x160] sm:$0xc0] %v2493
        %2510 = vst [vmem:[#allocation3 + $0x168] sm:$0xc0] %v2494
        %2511 = vst [vmem:[#allocation3 + $0x170] sm:$0xc0] %v2495
        %2512 = vst [vmem:[#allocation3 + $0x178] sm:$0xc0] %v2496
        %v2513 = vld [vmem:[#allocation2 + $0x2a] sm:$0xff]
        %v2514 = vld [vmem:[#allocation2 + $0x32] sm:$0xff]
        %v2515 = vld [vmem:[#allocation2 + $0x3a] sm:$0x3]
        %v2519 = vcombine.high %v2513, %v2513
        %v2521 = vunpack.c.l.s4 1983009808
        %v2522 = vunpack.c.0.s8 %v2521
        %v2523 = vlaneseq
        %v2524 = vshrl.u32 %v2523, 7
        %v2525 = vsub.s32 %v2522, %v2524
        %v2526 = vrot.slane %v2513, %v2525
        %v2528 = vunpack.c.l.s4 1983009808
        %v2529 = vunpack.c.0.s8 %v2528
        %v2530 = vlaneseq
        %v2531 = vshrl.u32 %v2530, 7
        %v2532 = vsub.s32 %v2529, %v2531
        %v2533 = vrot.slane %v2519, %v2532
        %v2534 = vcombine.high %v2526, %v2526
        %v2535 = vcombine.high %v2533, %v2533
        %v2536 = vcombine.high %v2514, %v2514
        %v2538 = vunpack.c.l.s4 1983009808
        %v2539 = vunpack.c.0.s8 %v2538
        %v2540 = vlaneseq
        %v2541 = vshrl.u32 %v2540, 7
        %v2542 = vsub.s32 %v2539, %v2541
        %v2543 = vrot.slane %v2514, %v2542
        %v2545 = vunpack.c.l.s4 1983009808
        %v2546 = vunpack.c.0.s8 %v2545
        %v2547 = vlaneseq
        %v2548 = vshrl.u32 %v2547, 7
        %v2549 = vsub.s32 %v2546, %v2548
        %v2550 = vrot.slane %v2536, %v2549
        %v2551 = vcombine.high %v2543, %v2543
        %v2552 = vcombine.high %v2550, %v2550
        %v2554 = vunpack.c.l.s4 1983009808
        %v2555 = vunpack.c.0.s8 %v2554
        %v2556 = vlaneseq
        %v2557 = vshrl.u32 %v2556, 7
        %v2558 = vsub.s32 %v2555, %v2557
        %v2559 = vrot.slane %v2515, %v2558
        %2560 = vrot.lane.b32.xlu0 %v2526, 122
        %v2561 = vpop.permute.xlu0 %2560
        %2562 = vrot.lane.b32.xlu0 %v2534, 122
        %v2563 = vpop.permute.xlu0 %2562
        %2564 = vrot.lane.b32.xlu0 %v2533, 122
        %v2565 = vpop.permute.xlu0 %2564
        %2566 = vrot.lane.b32.xlu0 %v2535, 122
        %v2567 = vpop.permute.xlu0 %2566
        %2568 = vrot.lane.b32.xlu0 %v2543, 122
        %v2569 = vpop.permute.xlu0 %2568
        %2570 = vrot.lane.b32.xlu0 %v2551, 122
        %v2571 = vpop.permute.xlu0 %2570
        %2572 = vrot.lane.b32.xlu0 %v2550, 122
        %v2573 = vpop.permute.xlu0 %2572
        %2574 = vrot.lane.b32.xlu0 %v2552, 122
        %v2575 = vpop.permute.xlu0 %2574
        %2576 = vrot.lane.b32.xlu0 %v2559, 122
        %v2577 = vpop.permute.xlu0 %2576
        %v2578 = vsel %vm2036, %v2561, %v2563
        %v2579 = vsel %vm2036, %v2563, %v2565
        %v2580 = vsel %vm2036, %v2565, %v2567
        %v2581 = vsel %vm2036, %v2567, %v2569
        %v2582 = vsel %vm2036, %v2569, %v2571
        %v2583 = vsel %vm2036, %v2571, %v2573
        %v2584 = vsel %vm2036, %v2573, %v2575
        %v2585 = vsel %vm2036, %v2575, %v2577
        %2594 = vst [vmem:[#allocation3 + $0x180] sm:$0x3] %v2578
        %2595 = vst [vmem:[#allocation3 + $0x188] sm:$0x3] %v2579
        %2596 = vst [vmem:[#allocation3 + $0x190] sm:$0x3] %v2580
        %2597 = vst [vmem:[#allocation3 + $0x198] sm:$0x3] %v2581
        %2598 = vst [vmem:[#allocation3 + $0x1a0] sm:$0x3] %v2582
        %2599 = vst [vmem:[#allocation3 + $0x1a8] sm:$0x3] %v2583
        %2600 = vst [vmem:[#allocation3 + $0x1b0] sm:$0x3] %v2584
        %2601 = vst [vmem:[#allocation3 + $0x1b8] sm:$0x3] %v2585
        %v2602 = vld [vmem:[#allocation2 + $0x2a] sm:$0xff]
        %v2603 = vld [vmem:[#allocation2 + $0x32] sm:$0xff]
        %v2604 = vld [vmem:[#allocation2 + $0x3a] sm:$0x3]
        %v2608 = vcombine.low %v2602, %v2602
        %v2610 = vunpack.c.l.s4 1983009808
        %v2611 = vunpack.c.0.s8 %v2610
        %v2612 = vlaneseq
        %v2613 = vshrl.u32 %v2612, 7
        %v2614 = vsub.s32 %v2611, %v2613
        %v2615 = vrot.slane %v2608, %v2614
        %v2617 = vunpack.c.l.s4 1983009808
        %v2618 = vunpack.c.0.s8 %v2617
        %v2619 = vlaneseq
        %v2620 = vshrl.u32 %v2619, 7
        %v2621 = vsub.s32 %v2618, %v2620
        %v2622 = vrot.slane %v2602, %v2621
        %v2623 = vcombine.high %v2615, %v2615
        %v2624 = vcombine.high %v2622, %v2622
        %v2625 = vcombine.low %v2603, %v2603
        %v2627 = vunpack.c.l.s4 1983009808
        %v2628 = vunpack.c.0.s8 %v2627
        %v2629 = vlaneseq
        %v2630 = vshrl.u32 %v2629, 7
        %v2631 = vsub.s32 %v2628, %v2630
        %v2632 = vrot.slane %v2625, %v2631
        %v2634 = vunpack.c.l.s4 1983009808
        %v2635 = vunpack.c.0.s8 %v2634
        %v2636 = vlaneseq
        %v2637 = vshrl.u32 %v2636, 7
        %v2638 = vsub.s32 %v2635, %v2637
        %v2639 = vrot.slane %v2603, %v2638
        %v2640 = vcombine.high %v2632, %v2632
        %v2641 = vcombine.high %v2639, %v2639
        %v2642 = vcombine.low %v2604, %v2604
        %v2644 = vunpack.c.l.s4 1983009808
        %v2645 = vunpack.c.0.s8 %v2644
        %v2646 = vlaneseq
        %v2647 = vshrl.u32 %v2646, 7
        %v2648 = vsub.s32 %v2645, %v2647
        %v2649 = vrot.slane %v2642, %v2648
        %2650 = vrot.lane.b32.xlu0 %v2615, 104
        %v2651 = vpop.permute.xlu0 %2650
        %2652 = vrot.lane.b32.xlu0 %v2623, 104
        %v2653 = vpop.permute.xlu0 %2652
        %2654 = vrot.lane.b32.xlu0 %v2622, 104
        %v2655 = vpop.permute.xlu0 %2654
        %2656 = vrot.lane.b32.xlu0 %v2624, 104
        %v2657 = vpop.permute.xlu0 %2656
        %2658 = vrot.lane.b32.xlu0 %v2632, 104
        %v2659 = vpop.permute.xlu0 %2658
        %2660 = vrot.lane.b32.xlu0 %v2640, 104
        %v2661 = vpop.permute.xlu0 %2660
        %2662 = vrot.lane.b32.xlu0 %v2639, 104
        %v2663 = vpop.permute.xlu0 %2662
        %2664 = vrot.lane.b32.xlu0 %v2641, 104
        %v2665 = vpop.permute.xlu0 %2664
        %2666 = vrot.lane.b32.xlu0 %v2649, 104
        %v2667 = vpop.permute.xlu0 %2666
        %v2668 = vsel %vm502, %v2651, %v2653
        %v2669 = vsel %vm502, %v2653, %v2655
        %v2670 = vsel %vm502, %v2655, %v2657
        %v2671 = vsel %vm502, %v2657, %v2659
        %v2672 = vsel %vm502, %v2659, %v2661
        %v2673 = vsel %vm502, %v2661, %v2663
        %v2674 = vsel %vm502, %v2663, %v2665
        %v2675 = vsel %vm502, %v2665, %v2667
        %2684 = vst [vmem:[#allocation3 + $0x180] sm:$0xc] %v2668
        %2685 = vst [vmem:[#allocation3 + $0x188] sm:$0xc] %v2669
        %2686 = vst [vmem:[#allocation3 + $0x190] sm:$0xc] %v2670
        %2687 = vst [vmem:[#allocation3 + $0x198] sm:$0xc] %v2671
        %2688 = vst [vmem:[#allocation3 + $0x1a0] sm:$0xc] %v2672
        %2689 = vst [vmem:[#allocation3 + $0x1a8] sm:$0xc] %v2673
        %2690 = vst [vmem:[#allocation3 + $0x1b0] sm:$0xc] %v2674
        %2691 = vst [vmem:[#allocation3 + $0x1b8] sm:$0xc] %v2675
        %v2692 = vld [vmem:[#allocation2 + $0x2a] sm:$0xff]
        %v2693 = vld [vmem:[#allocation2 + $0x32] sm:$0xff]
        %v2694 = vld [vmem:[#allocation2 + $0x3a] sm:$0x3]
        %v2698 = vcombine.high %v2692, %v2692
        %v2700 = vunpack.c.l.s4 1983009808
        %v2701 = vunpack.c.0.s8 %v2700
        %v2702 = vlaneseq
        %v2703 = vshrl.u32 %v2702, 7
        %v2704 = vsub.s32 %v2701, %v2703
        %v2705 = vrot.slane %v2692, %v2704
        %v2707 = vunpack.c.l.s4 1983009808
        %v2708 = vunpack.c.0.s8 %v2707
        %v2709 = vlaneseq
        %v2710 = vshrl.u32 %v2709, 7
        %v2711 = vsub.s32 %v2708, %v2710
        %v2712 = vrot.slane %v2698, %v2711
        %v2713 = vcombine.low %v2705, %v2705
        %v2714 = vcombine.low %v2712, %v2712
        %v2715 = vcombine.high %v2693, %v2693
        %v2717 = vunpack.c.l.s4 1983009808
        %v2718 = vunpack.c.0.s8 %v2717
        %v2719 = vlaneseq
        %v2720 = vshrl.u32 %v2719, 7
        %v2721 = vsub.s32 %v2718, %v2720
        %v2722 = vrot.slane %v2693, %v2721
        %v2724 = vunpack.c.l.s4 1983009808
        %v2725 = vunpack.c.0.s8 %v2724
        %v2726 = vlaneseq
        %v2727 = vshrl.u32 %v2726, 7
        %v2728 = vsub.s32 %v2725, %v2727
        %v2729 = vrot.slane %v2715, %v2728
        %v2730 = vcombine.low %v2722, %v2722
        %v2731 = vcombine.low %v2729, %v2729
        %v2733 = vunpack.c.l.s4 1983009808
        %v2734 = vunpack.c.0.s8 %v2733
        %v2735 = vlaneseq
        %v2736 = vshrl.u32 %v2735, 7
        %v2737 = vsub.s32 %v2734, %v2736
        %v2738 = vrot.slane %v2694, %v2737
        %v2739 = vcombine.low %v2738, %v2738
        %2740 = vrot.lane.b32.xlu0 %v2713, 86
        %v2741 = vpop.permute.xlu0 %2740
        %2742 = vrot.lane.b32.xlu0 %v2705, 86
        %v2743 = vpop.permute.xlu0 %2742
        %2744 = vrot.lane.b32.xlu0 %v2714, 86
        %v2745 = vpop.permute.xlu0 %2744
        %2746 = vrot.lane.b32.xlu0 %v2712, 86
        %v2747 = vpop.permute.xlu0 %2746
        %2748 = vrot.lane.b32.xlu0 %v2730, 86
        %v2749 = vpop.permute.xlu0 %2748
        %2750 = vrot.lane.b32.xlu0 %v2722, 86
        %v2751 = vpop.permute.xlu0 %2750
        %2752 = vrot.lane.b32.xlu0 %v2731, 86
        %v2753 = vpop.permute.xlu0 %2752
        %2754 = vrot.lane.b32.xlu0 %v2729, 86
        %v2755 = vpop.permute.xlu0 %2754
        %2756 = vrot.lane.b32.xlu0 %v2739, 86
        %v2757 = vpop.permute.xlu0 %2756
        %v2758 = vsel %vm2217, %v2741, %v2743
        %v2759 = vsel %vm2217, %v2743, %v2745
        %v2760 = vsel %vm2217, %v2745, %v2747
        %v2761 = vsel %vm2217, %v2747, %v2749
        %v2762 = vsel %vm2217, %v2749, %v2751
        %v2763 = vsel %vm2217, %v2751, %v2753
        %v2764 = vsel %vm2217, %v2753, %v2755
        %v2765 = vsel %vm2217, %v2755, %v2757
        %2774 = vst [vmem:[#allocation3 + $0x180] sm:$0x30] %v2758
        %2775 = vst [vmem:[#allocation3 + $0x188] sm:$0x30] %v2759
        %2776 = vst [vmem:[#allocation3 + $0x190] sm:$0x30] %v2760
        %2777 = vst [vmem:[#allocation3 + $0x198] sm:$0x30] %v2761
        %2778 = vst [vmem:[#allocation3 + $0x1a0] sm:$0x30] %v2762
        %2779 = vst [vmem:[#allocation3 + $0x1a8] sm:$0x30] %v2763
        %2780 = vst [vmem:[#allocation3 + $0x1b0] sm:$0x30] %v2764
        %2781 = vst [vmem:[#allocation3 + $0x1b8] sm:$0x30] %v2765
        %v2782 = vld [vmem:[#allocation2] sm:$0xff]
        %v2783 = vld [vmem:[#allocation2 + $0x8] sm:$0xff]
        %v2786 = vcombine.low %v2782, %v2782
        %v2788 = vunpack.c.l.s4 1983009808
        %v2789 = vunpack.c.0.s8 %v2788
        %v2790 = vlaneseq
        %v2791 = vshrl.u32 %v2790, 7
        %v2792 = vsub.s32 %v2789, %v2791
        %v2793 = vrot.slane %v2786, %v2792
        %v2795 = vunpack.c.l.s4 1983009808
        %v2796 = vunpack.c.0.s8 %v2795
        %v2797 = vlaneseq
        %v2798 = vshrl.u32 %v2797, 7
        %v2799 = vsub.s32 %v2796, %v2798
        %v2800 = vrot.slane %v2782, %v2799
        %v2801 = vcombine.low %v2793, %v2793
        %v2802 = vcombine.low %v2800, %v2800
        %v2803 = vcombine.low %v2783, %v2783
        %v2805 = vunpack.c.l.s4 1983009808
        %v2806 = vunpack.c.0.s8 %v2805
        %v2807 = vlaneseq
        %v2808 = vshrl.u32 %v2807, 7
        %v2809 = vsub.s32 %v2806, %v2808
        %v2810 = vrot.slane %v2803, %v2809
        %v2812 = vunpack.c.l.s4 1983009808
        %v2813 = vunpack.c.0.s8 %v2812
        %v2814 = vlaneseq
        %v2815 = vshrl.u32 %v2814, 7
        %v2816 = vsub.s32 %v2813, %v2815
        %v2817 = vrot.slane %v2783, %v2816
        %v2818 = vcombine.low %v2810, %v2810
        %v2819 = vcombine.low %v2817, %v2817
        %2828 = vst [vmem:[#allocation3 + $0x180] sm:$0xc0] %v2801
        %2829 = vst [vmem:[#allocation3 + $0x188] sm:$0xc0] %v2793
        %2830 = vst [vmem:[#allocation3 + $0x190] sm:$0xc0] %v2802
        %2831 = vst [vmem:[#allocation3 + $0x198] sm:$0xc0] %v2800
        %2832 = vst [vmem:[#allocation3 + $0x1a0] sm:$0xc0] %v2818
        %2833 = vst [vmem:[#allocation3 + $0x1a8] sm:$0xc0] %v2810
        %2834 = vst [vmem:[#allocation3 + $0x1b0] sm:$0xc0] %v2819
        %2835 = vst [vmem:[#allocation3 + $0x1b8] sm:$0xc0] %v2817
        %v2836 = vld [vmem:[#allocation2] sm:$0xff]
        %v2837 = vld [vmem:[#allocation2 + $0x8] sm:$0xff]
        %v2838 = vld [vmem:[#allocation2 + $0x10] sm:$0x3]
        %v2842 = vcombine.high %v2836, %v2836
        %v2844 = vunpack.c.l.s4 1983009808
        %v2845 = vunpack.c.0.s8 %v2844
        %v2846 = vlaneseq
        %v2847 = vshrl.u32 %v2846, 7
        %v2848 = vsub.s32 %v2845, %v2847
        %v2849 = vrot.slane %v2836, %v2848
        %v2851 = vunpack.c.l.s4 1983009808
        %v2852 = vunpack.c.0.s8 %v2851
        %v2853 = vlaneseq
        %v2854 = vshrl.u32 %v2853, 7
        %v2855 = vsub.s32 %v2852, %v2854
        %v2856 = vrot.slane %v2842, %v2855
        %v2857 = vcombine.high %v2849, %v2849
        %v2858 = vcombine.high %v2856, %v2856
        %v2859 = vcombine.high %v2837, %v2837
        %v2861 = vunpack.c.l.s4 1983009808
        %v2862 = vunpack.c.0.s8 %v2861
        %v2863 = vlaneseq
        %v2864 = vshrl.u32 %v2863, 7
        %v2865 = vsub.s32 %v2862, %v2864
        %v2866 = vrot.slane %v2837, %v2865
        %v2868 = vunpack.c.l.s4 1983009808
        %v2869 = vunpack.c.0.s8 %v2868
        %v2870 = vlaneseq
        %v2871 = vshrl.u32 %v2870, 7
        %v2872 = vsub.s32 %v2869, %v2871
        %v2873 = vrot.slane %v2859, %v2872
        %v2874 = vcombine.high %v2866, %v2866
        %v2875 = vcombine.high %v2873, %v2873
        %v2877 = vunpack.c.l.s4 1983009808
        %v2878 = vunpack.c.0.s8 %v2877
        %v2879 = vlaneseq
        %v2880 = vshrl.u32 %v2879, 7
        %v2881 = vsub.s32 %v2878, %v2880
        %v2882 = vrot.slane %v2838, %v2881
        %2883 = vrot.lane.b32.xlu0 %v2849, 104
        %v2884 = vpop.permute.xlu0 %2883
        %2885 = vrot.lane.b32.xlu0 %v2857, 104
        %v2886 = vpop.permute.xlu0 %2885
        %2887 = vrot.lane.b32.xlu0 %v2856, 104
        %v2888 = vpop.permute.xlu0 %2887
        %2889 = vrot.lane.b32.xlu0 %v2858, 104
        %v2890 = vpop.permute.xlu0 %2889
        %2891 = vrot.lane.b32.xlu0 %v2866, 104
        %v2892 = vpop.permute.xlu0 %2891
        %2893 = vrot.lane.b32.xlu0 %v2874, 104
        %v2894 = vpop.permute.xlu0 %2893
        %2895 = vrot.lane.b32.xlu0 %v2873, 104
        %v2896 = vpop.permute.xlu0 %2895
        %2897 = vrot.lane.b32.xlu0 %v2875, 104
        %v2898 = vpop.permute.xlu0 %2897
        %2899 = vrot.lane.b32.xlu0 %v2882, 104
        %v2900 = vpop.permute.xlu0 %2899
        %v2901 = vsel %vm502, %v2884, %v2886
        %v2902 = vsel %vm502, %v2886, %v2888
        %v2903 = vsel %vm502, %v2888, %v2890
        %v2904 = vsel %vm502, %v2890, %v2892
        %v2905 = vsel %vm502, %v2892, %v2894
        %v2906 = vsel %vm502, %v2894, %v2896
        %v2907 = vsel %vm502, %v2896, %v2898
        %v2908 = vsel %vm502, %v2898, %v2900
        %2917 = vst [vmem:[#allocation3 + $0x1c0] sm:$0x3] %v2901
        %2918 = vst [vmem:[#allocation3 + $0x1c8] sm:$0x3] %v2902
        %2919 = vst [vmem:[#allocation3 + $0x1d0] sm:$0x3] %v2903
        %2920 = vst [vmem:[#allocation3 + $0x1d8] sm:$0x3] %v2904
        %2921 = vst [vmem:[#allocation3 + $0x1e0] sm:$0x3] %v2905
        %2922 = vst [vmem:[#allocation3 + $0x1e8] sm:$0x3] %v2906
        %2923 = vst [vmem:[#allocation3 + $0x1f0] sm:$0x3] %v2907
        %2924 = vst [vmem:[#allocation3 + $0x1f8] sm:$0x3] %v2908
        %v2925 = vld [vmem:[#allocation2] sm:$0xff]
        %v2926 = vld [vmem:[#allocation2 + $0x8] sm:$0xff]
        %v2927 = vld [vmem:[#allocation2 + $0x10] sm:$0x3]
        %v2931 = vcombine.low %v2925, %v2925
        %v2933 = vunpack.c.l.s4 1983009808
        %v2934 = vunpack.c.0.s8 %v2933
        %v2935 = vlaneseq
        %v2936 = vshrl.u32 %v2935, 7
        %v2937 = vsub.s32 %v2934, %v2936
        %v2938 = vrot.slane %v2931, %v2937
        %v2940 = vunpack.c.l.s4 1983009808
        %v2941 = vunpack.c.0.s8 %v2940
        %v2942 = vlaneseq
        %v2943 = vshrl.u32 %v2942, 7
        %v2944 = vsub.s32 %v2941, %v2943
        %v2945 = vrot.slane %v2925, %v2944
        %v2946 = vcombine.high %v2938, %v2938
        %v2947 = vcombine.high %v2945, %v2945
        %v2948 = vcombine.low %v2926, %v2926
        %v2950 = vunpack.c.l.s4 1983009808
        %v2951 = vunpack.c.0.s8 %v2950
        %v2952 = vlaneseq
        %v2953 = vshrl.u32 %v2952, 7
        %v2954 = vsub.s32 %v2951, %v2953
        %v2955 = vrot.slane %v2948, %v2954
        %v2957 = vunpack.c.l.s4 1983009808
        %v2958 = vunpack.c.0.s8 %v2957
        %v2959 = vlaneseq
        %v2960 = vshrl.u32 %v2959, 7
        %v2961 = vsub.s32 %v2958, %v2960
        %v2962 = vrot.slane %v2926, %v2961
        %v2963 = vcombine.high %v2955, %v2955
        %v2964 = vcombine.high %v2962, %v2962
        %v2965 = vcombine.low %v2927, %v2927
        %v2967 = vunpack.c.l.s4 1983009808
        %v2968 = vunpack.c.0.s8 %v2967
        %v2969 = vlaneseq
        %v2970 = vshrl.u32 %v2969, 7
        %v2971 = vsub.s32 %v2968, %v2970
        %v2972 = vrot.slane %v2965, %v2971
        %2973 = vrot.lane.b32.xlu0 %v2938, 80
        %v2974 = vpop.permute.xlu0 %2973
        %2975 = vrot.lane.b32.xlu0 %v2946, 80
        %v2976 = vpop.permute.xlu0 %2975
        %2977 = vrot.lane.b32.xlu0 %v2945, 80
        %v2978 = vpop.permute.xlu0 %2977
        %2979 = vrot.lane.b32.xlu0 %v2947, 80
        %v2980 = vpop.permute.xlu0 %2979
        %2981 = vrot.lane.b32.xlu0 %v2955, 80
        %v2982 = vpop.permute.xlu0 %2981
        %2983 = vrot.lane.b32.xlu0 %v2963, 80
        %v2984 = vpop.permute.xlu0 %2983
        %2985 = vrot.lane.b32.xlu0 %v2962, 80
        %v2986 = vpop.permute.xlu0 %2985
        %2987 = vrot.lane.b32.xlu0 %v2964, 80
        %v2988 = vpop.permute.xlu0 %2987
        %2989 = vrot.lane.b32.xlu0 %v2972, 80
        %v2990 = vpop.permute.xlu0 %2989
        %vm2991 = vcmask 654336
        %v2992 = vsel %vm2991, %v2974, %v2976
        %v2993 = vsel %vm2991, %v2976, %v2978
        %v2994 = vsel %vm2991, %v2978, %v2980
        %v2995 = vsel %vm2991, %v2980, %v2982
        %v2996 = vsel %vm2991, %v2982, %v2984
        %v2997 = vsel %vm2991, %v2984, %v2986
        %v2998 = vsel %vm2991, %v2986, %v2988
        %v2999 = vsel %vm2991, %v2988, %v2990
        %3008 = vst [vmem:[#allocation3 + $0x1c0] sm:$0xc] %v2992
        %3009 = vst [vmem:[#allocation3 + $0x1c8] sm:$0xc] %v2993
        %3010 = vst [vmem:[#allocation3 + $0x1d0] sm:$0xc] %v2994
        %3011 = vst [vmem:[#allocation3 + $0x1d8] sm:$0xc] %v2995
        %3012 = vst [vmem:[#allocation3 + $0x1e0] sm:$0xc] %v2996
        %3013 = vst [vmem:[#allocation3 + $0x1e8] sm:$0xc] %v2997
        %3014 = vst [vmem:[#allocation3 + $0x1f0] sm:$0xc] %v2998
        %3015 = vst [vmem:[#allocation3 + $0x1f8] sm:$0xc] %v2999
        %v3016 = vld [vmem:[#allocation2 + $0x18] sm:$0xff]
        %v3017 = vld [vmem:[#allocation2 + $0x20] sm:$0xff]
        %v3020 = vcombine.high %v3016, %v3016
        %v3022 = vunpack.c.l.s4 1983009808
        %v3023 = vunpack.c.0.s8 %v3022
        %v3024 = vlaneseq
        %v3025 = vshrl.u32 %v3024, 7
        %v3026 = vsub.s32 %v3023, %v3025
        %v3027 = vrot.slane %v3016, %v3026
        %v3029 = vunpack.c.l.s4 1983009808
        %v3030 = vunpack.c.0.s8 %v3029
        %v3031 = vlaneseq
        %v3032 = vshrl.u32 %v3031, 7
        %v3033 = vsub.s32 %v3030, %v3032
        %v3034 = vrot.slane %v3020, %v3033
        %v3035 = vcombine.low %v3027, %v3027
        %v3036 = vcombine.low %v3034, %v3034
        %v3037 = vcombine.high %v3017, %v3017
        %v3039 = vunpack.c.l.s4 1983009808
        %v3040 = vunpack.c.0.s8 %v3039
        %v3041 = vlaneseq
        %v3042 = vshrl.u32 %v3041, 7
        %v3043 = vsub.s32 %v3040, %v3042
        %v3044 = vrot.slane %v3017, %v3043
        %v3046 = vunpack.c.l.s4 1983009808
        %v3047 = vunpack.c.0.s8 %v3046
        %v3048 = vlaneseq
        %v3049 = vshrl.u32 %v3048, 7
        %v3050 = vsub.s32 %v3047, %v3049
        %v3051 = vrot.slane %v3037, %v3050
        %v3052 = vcombine.low %v3044, %v3044
        %v3053 = vcombine.low %v3051, %v3051
        %3062 = vst [vmem:[#allocation3 + $0x1c0] sm:$0x30] %v3035
        %3063 = vst [vmem:[#allocation3 + $0x1c8] sm:$0x30] %v3027
        %3064 = vst [vmem:[#allocation3 + $0x1d0] sm:$0x30] %v3036
        %3065 = vst [vmem:[#allocation3 + $0x1d8] sm:$0x30] %v3034
        %3066 = vst [vmem:[#allocation3 + $0x1e0] sm:$0x30] %v3052
        %3067 = vst [vmem:[#allocation3 + $0x1e8] sm:$0x30] %v3044
        %3068 = vst [vmem:[#allocation3 + $0x1f0] sm:$0x30] %v3053
        %3069 = vst [vmem:[#allocation3 + $0x1f8] sm:$0x30] %v3051
        %v3070 = vld [vmem:[#allocation2 + $0x18] sm:$0xff]
        %v3071 = vld [vmem:[#allocation2 + $0x20] sm:$0xff]
        %v3072 = vld [vmem:[#allocation2 + $0x28] sm:$0x3]
        %v3076 = vcombine.low %v3070, %v3070
        %v3078 = vunpack.c.l.s4 1983009808
        %v3079 = vunpack.c.0.s8 %v3078
        %v3080 = vlaneseq
        %v3081 = vshrl.u32 %v3080, 7
        %v3082 = vsub.s32 %v3079, %v3081
        %v3083 = vrot.slane %v3076, %v3082
        %v3085 = vunpack.c.l.s4 1983009808
        %v3086 = vunpack.c.0.s8 %v3085
        %v3087 = vlaneseq
        %v3088 = vshrl.u32 %v3087, 7
        %v3089 = vsub.s32 %v3086, %v3088
        %v3090 = vrot.slane %v3070, %v3089
        %v3091 = vcombine.low %v3083, %v3083
        %v3092 = vcombine.low %v3090, %v3090
        %v3093 = vcombine.low %v3071, %v3071
        %v3095 = vunpack.c.l.s4 1983009808
        %v3096 = vunpack.c.0.s8 %v3095
        %v3097 = vlaneseq
        %v3098 = vshrl.u32 %v3097, 7
        %v3099 = vsub.s32 %v3096, %v3098
        %v3100 = vrot.slane %v3093, %v3099
        %v3102 = vunpack.c.l.s4 1983009808
        %v3103 = vunpack.c.0.s8 %v3102
        %v3104 = vlaneseq
        %v3105 = vshrl.u32 %v3104, 7
        %v3106 = vsub.s32 %v3103, %v3105
        %v3107 = vrot.slane %v3071, %v3106
        %v3108 = vcombine.low %v3100, %v3100
        %v3109 = vcombine.low %v3107, %v3107
        %v3110 = vcombine.low %v3072, %v3072
        %v3112 = vunpack.c.l.s4 1983009808
        %v3113 = vunpack.c.0.s8 %v3112
        %v3114 = vlaneseq
        %v3115 = vshrl.u32 %v3114, 7
        %v3116 = vsub.s32 %v3113, %v3115
        %v3117 = vrot.slane %v3110, %v3116
        %v3118 = vcombine.low %v3117, %v3117
        %3119 = vrot.lane.b32.xlu0 %v3091, 104
        %v3120 = vpop.permute.xlu0 %3119
        %3121 = vrot.lane.b32.xlu0 %v3083, 104
        %v3122 = vpop.permute.xlu0 %3121
        %3123 = vrot.lane.b32.xlu0 %v3092, 104
        %v3124 = vpop.permute.xlu0 %3123
        %3125 = vrot.lane.b32.xlu0 %v3090, 104
        %v3126 = vpop.permute.xlu0 %3125
        %3127 = vrot.lane.b32.xlu0 %v3108, 104
        %v3128 = vpop.permute.xlu0 %3127
        %3129 = vrot.lane.b32.xlu0 %v3100, 104
        %v3130 = vpop.permute.xlu0 %3129
        %3131 = vrot.lane.b32.xlu0 %v3109, 104
        %v3132 = vpop.permute.xlu0 %3131
        %3133 = vrot.lane.b32.xlu0 %v3107, 104
        %v3134 = vpop.permute.xlu0 %3133
        %3135 = vrot.lane.b32.xlu0 %v3118, 104
        %v3136 = vpop.permute.xlu0 %3135
        %v3137 = vsel %vm502, %v3120, %v3122
        %v3138 = vsel %vm502, %v3122, %v3124
        %v3139 = vsel %vm502, %v3124, %v3126
        %v3140 = vsel %vm502, %v3126, %v3128
        %v3141 = vsel %vm502, %v3128, %v3130
        %v3142 = vsel %vm502, %v3130, %v3132
        %v3143 = vsel %vm502, %v3132, %v3134
        %v3144 = vsel %vm502, %v3134, %v3136
        %3153 = vst [vmem:[#allocation3 + $0x1c0] sm:$0xc0] %v3137
        %3154 = vst [vmem:[#allocation3 + $0x1c8] sm:$0xc0] %v3138
        %3155 = vst [vmem:[#allocation3 + $0x1d0] sm:$0xc0] %v3139
        %3156 = vst [vmem:[#allocation3 + $0x1d8] sm:$0xc0] %v3140
        %3157 = vst [vmem:[#allocation3 + $0x1e0] sm:$0xc0] %v3141
        %3158 = vst [vmem:[#allocation3 + $0x1e8] sm:$0xc0] %v3142
        %3159 = vst [vmem:[#allocation3 + $0x1f0] sm:$0xc0] %v3143
        %3160 = vst [vmem:[#allocation3 + $0x1f8] sm:$0xc0] %v3144
        %v3161 = vld [vmem:[#allocation2 + $0x18] sm:$0xff]
        %v3162 = vld [vmem:[#allocation2 + $0x20] sm:$0xff]
        %v3163 = vld [vmem:[#allocation2 + $0x28] sm:$0x3]
        %v3167 = vcombine.high %v3161, %v3161
        %v3169 = vunpack.c.l.s4 1983009808
        %v3170 = vunpack.c.0.s8 %v3169
        %v3171 = vlaneseq
        %v3172 = vshrl.u32 %v3171, 7
        %v3173 = vsub.s32 %v3170, %v3172
        %v3174 = vrot.slane %v3161, %v3173
        %v3176 = vunpack.c.l.s4 1983009808
        %v3177 = vunpack.c.0.s8 %v3176
        %v3178 = vlaneseq
        %v3179 = vshrl.u32 %v3178, 7
        %v3180 = vsub.s32 %v3177, %v3179
        %v3181 = vrot.slane %v3167, %v3180
        %v3182 = vcombine.high %v3174, %v3174
        %v3183 = vcombine.high %v3181, %v3181
        %v3184 = vcombine.high %v3162, %v3162
        %v3186 = vunpack.c.l.s4 1983009808
        %v3187 = vunpack.c.0.s8 %v3186
        %v3188 = vlaneseq
        %v3189 = vshrl.u32 %v3188, 7
        %v3190 = vsub.s32 %v3187, %v3189
        %v3191 = vrot.slane %v3162, %v3190
        %v3193 = vunpack.c.l.s4 1983009808
        %v3194 = vunpack.c.0.s8 %v3193
        %v3195 = vlaneseq
        %v3196 = vshrl.u32 %v3195, 7
        %v3197 = vsub.s32 %v3194, %v3196
        %v3198 = vrot.slane %v3184, %v3197
        %v3199 = vcombine.high %v3191, %v3191
        %v3200 = vcombine.high %v3198, %v3198
        %v3202 = vunpack.c.l.s4 1983009808
        %v3203 = vunpack.c.0.s8 %v3202
        %v3204 = vlaneseq
        %v3205 = vshrl.u32 %v3204, 7
        %v3206 = vsub.s32 %v3203, %v3205
        %v3207 = vrot.slane %v3163, %v3206
        %3208 = vrot.lane.b32.xlu0 %v3174, 80
        %v3209 = vpop.permute.xlu0 %3208
        %3210 = vrot.lane.b32.xlu0 %v3182, 80
        %v3211 = vpop.permute.xlu0 %3210
        %3212 = vrot.lane.b32.xlu0 %v3181, 80
        %v3213 = vpop.permute.xlu0 %3212
        %3214 = vrot.lane.b32.xlu0 %v3183, 80
        %v3215 = vpop.permute.xlu0 %3214
        %3216 = vrot.lane.b32.xlu0 %v3191, 80
        %v3217 = vpop.permute.xlu0 %3216
        %3218 = vrot.lane.b32.xlu0 %v3199, 80
        %v3219 = vpop.permute.xlu0 %3218
        %3220 = vrot.lane.b32.xlu0 %v3198, 80
        %v3221 = vpop.permute.xlu0 %3220
        %3222 = vrot.lane.b32.xlu0 %v3200, 80
        %v3223 = vpop.permute.xlu0 %3222
        %3224 = vrot.lane.b32.xlu0 %v3207, 80
        %v3225 = vpop.permute.xlu0 %3224
        %v3226 = vsel %vm2991, %v3209, %v3211
        %v3227 = vsel %vm2991, %v3211, %v3213
        %v3228 = vsel %vm2991, %v3213, %v3215
        %v3229 = vsel %vm2991, %v3215, %v3217
        %v3230 = vsel %vm2991, %v3217, %v3219
        %v3231 = vsel %vm2991, %v3219, %v3221
        %v3232 = vsel %vm2991, %v3221, %v3223
        %v3233 = vsel %vm2991, %v3223, %v3225
        %3242 = vst [vmem:[#allocation3 + $0x200] sm:$0x3] %v3226
        %3243 = vst [vmem:[#allocation3 + $0x208] sm:$0x3] %v3227
        %3244 = vst [vmem:[#allocation3 + $0x210] sm:$0x3] %v3228
        %3245 = vst [vmem:[#allocation3 + $0x218] sm:$0x3] %v3229
        %3246 = vst [vmem:[#allocation3 + $0x220] sm:$0x3] %v3230
        %3247 = vst [vmem:[#allocation3 + $0x228] sm:$0x3] %v3231
        %3248 = vst [vmem:[#allocation3 + $0x230] sm:$0x3] %v3232
        %3249 = vst [vmem:[#allocation3 + $0x238] sm:$0x3] %v3233
        %v3250 = vld [vmem:[#allocation2 + $0x30] sm:$0xff]
        %v3251 = vld [vmem:[#allocation2 + $0x38] sm:$0xff]
        %v3254 = vcombine.low %v3250, %v3250
        %v3256 = vunpack.c.l.s4 1983009808
        %v3257 = vunpack.c.0.s8 %v3256
        %v3258 = vlaneseq
        %v3259 = vshrl.u32 %v3258, 7
        %v3260 = vsub.s32 %v3257, %v3259
        %v3261 = vrot.slane %v3254, %v3260
        %v3263 = vunpack.c.l.s4 1983009808
        %v3264 = vunpack.c.0.s8 %v3263
        %v3265 = vlaneseq
        %v3266 = vshrl.u32 %v3265, 7
        %v3267 = vsub.s32 %v3264, %v3266
        %v3268 = vrot.slane %v3250, %v3267
        %v3269 = vcombine.high %v3261, %v3261
        %v3270 = vcombine.high %v3268, %v3268
        %v3271 = vcombine.low %v3251, %v3251
        %v3273 = vunpack.c.l.s4 1983009808
        %v3274 = vunpack.c.0.s8 %v3273
        %v3275 = vlaneseq
        %v3276 = vshrl.u32 %v3275, 7
        %v3277 = vsub.s32 %v3274, %v3276
        %v3278 = vrot.slane %v3271, %v3277
        %v3280 = vunpack.c.l.s4 1983009808
        %v3281 = vunpack.c.0.s8 %v3280
        %v3282 = vlaneseq
        %v3283 = vshrl.u32 %v3282, 7
        %v3284 = vsub.s32 %v3281, %v3283
        %v3285 = vrot.slane %v3251, %v3284
        %v3286 = vcombine.high %v3278, %v3278
        %v3287 = vcombine.high %v3285, %v3285
        %3296 = vst [vmem:[#allocation3 + $0x200] sm:$0xc] %v3261
        %3297 = vst [vmem:[#allocation3 + $0x208] sm:$0xc] %v3269
        %3298 = vst [vmem:[#allocation3 + $0x210] sm:$0xc] %v3268
        %3299 = vst [vmem:[#allocation3 + $0x218] sm:$0xc] %v3270
        %3300 = vst [vmem:[#allocation3 + $0x220] sm:$0xc] %v3278
        %3301 = vst [vmem:[#allocation3 + $0x228] sm:$0xc] %v3286
        %3302 = vst [vmem:[#allocation3 + $0x230] sm:$0xc] %v3285
        %3303 = vst [vmem:[#allocation3 + $0x238] sm:$0xc] %v3287
        %v3304 = vld [vmem:[#allocation2 + $0x30] sm:$0xff]
        %v3305 = vld [vmem:[#allocation2 + $0x38] sm:$0xff]
        %v3306 = vld [vmem:[#allocation2 + $0x40] sm:$0x3]
        %v3310 = vcombine.high %v3304, %v3304
        %v3312 = vunpack.c.l.s4 1983009808
        %v3313 = vunpack.c.0.s8 %v3312
        %v3314 = vlaneseq
        %v3315 = vshrl.u32 %v3314, 7
        %v3316 = vsub.s32 %v3313, %v3315
        %v3317 = vrot.slane %v3304, %v3316
        %v3319 = vunpack.c.l.s4 1983009808
        %v3320 = vunpack.c.0.s8 %v3319
        %v3321 = vlaneseq
        %v3322 = vshrl.u32 %v3321, 7
        %v3323 = vsub.s32 %v3320, %v3322
        %v3324 = vrot.slane %v3310, %v3323
        %v3325 = vcombine.low %v3317, %v3317
        %v3326 = vcombine.low %v3324, %v3324
        %v3327 = vcombine.high %v3305, %v3305
        %v3329 = vunpack.c.l.s4 1983009808
        %v3330 = vunpack.c.0.s8 %v3329
        %v3331 = vlaneseq
        %v3332 = vshrl.u32 %v3331, 7
        %v3333 = vsub.s32 %v3330, %v3332
        %v3334 = vrot.slane %v3305, %v3333
        %v3336 = vunpack.c.l.s4 1983009808
        %v3337 = vunpack.c.0.s8 %v3336
        %v3338 = vlaneseq
        %v3339 = vshrl.u32 %v3338, 7
        %v3340 = vsub.s32 %v3337, %v3339
        %v3341 = vrot.slane %v3327, %v3340
        %v3342 = vcombine.low %v3334, %v3334
        %v3343 = vcombine.low %v3341, %v3341
        %v3345 = vunpack.c.l.s4 1983009808
        %v3346 = vunpack.c.0.s8 %v3345
        %v3347 = vlaneseq
        %v3348 = vshrl.u32 %v3347, 7
        %v3349 = vsub.s32 %v3346, %v3348
        %v3350 = vrot.slane %v3306, %v3349
        %v3351 = vcombine.low %v3350, %v3350
        %3352 = vrot.lane.b32.xlu0 %v3325, 104
        %v3353 = vpop.permute.xlu0 %3352
        %3354 = vrot.lane.b32.xlu0 %v3317, 104
        %v3355 = vpop.permute.xlu0 %3354
        %3356 = vrot.lane.b32.xlu0 %v3326, 104
        %v3357 = vpop.permute.xlu0 %3356
        %3358 = vrot.lane.b32.xlu0 %v3324, 104
        %v3359 = vpop.permute.xlu0 %3358
        %3360 = vrot.lane.b32.xlu0 %v3342, 104
        %v3361 = vpop.permute.xlu0 %3360
        %3362 = vrot.lane.b32.xlu0 %v3334, 104
        %v3363 = vpop.permute.xlu0 %3362
        %3364 = vrot.lane.b32.xlu0 %v3343, 104
        %v3365 = vpop.permute.xlu0 %3364
        %3366 = vrot.lane.b32.xlu0 %v3341, 104
        %v3367 = vpop.permute.xlu0 %3366
        %3368 = vrot.lane.b32.xlu0 %v3351, 104
        %v3369 = vpop.permute.xlu0 %3368
        %v3370 = vsel %vm502, %v3353, %v3355
        %v3371 = vsel %vm502, %v3355, %v3357
        %v3372 = vsel %vm502, %v3357, %v3359
        %v3373 = vsel %vm502, %v3359, %v3361
        %v3374 = vsel %vm502, %v3361, %v3363
        %v3375 = vsel %vm502, %v3363, %v3365
        %v3376 = vsel %vm502, %v3365, %v3367
        %v3377 = vsel %vm502, %v3367, %v3369
        %3386 = vst [vmem:[#allocation3 + $0x200] sm:$0x30] %v3370
        %3387 = vst [vmem:[#allocation3 + $0x208] sm:$0x30] %v3371
        %3388 = vst [vmem:[#allocation3 + $0x210] sm:$0x30] %v3372
        %3389 = vst [vmem:[#allocation3 + $0x218] sm:$0x30] %v3373
        %3390 = vst [vmem:[#allocation3 + $0x220] sm:$0x30] %v3374
        %3391 = vst [vmem:[#allocation3 + $0x228] sm:$0x30] %v3375
        %3392 = vst [vmem:[#allocation3 + $0x230] sm:$0x30] %v3376
        %3393 = vst [vmem:[#allocation3 + $0x238] sm:$0x30] %v3377
        %v3394 = vld [vmem:[#allocation2 + $0x30] sm:$0xff]
        %v3395 = vld [vmem:[#allocation2 + $0x38] sm:$0xff]
        %v3396 = vld [vmem:[#allocation2 + $0x40] sm:$0x3]
        %v3400 = vcombine.low %v3394, %v3394
        %v3402 = vunpack.c.l.s4 1983009808
        %v3403 = vunpack.c.0.s8 %v3402
        %v3404 = vlaneseq
        %v3405 = vshrl.u32 %v3404, 7
        %v3406 = vsub.s32 %v3403, %v3405
        %v3407 = vrot.slane %v3400, %v3406
        %v3409 = vunpack.c.l.s4 1983009808
        %v3410 = vunpack.c.0.s8 %v3409
        %v3411 = vlaneseq
        %v3412 = vshrl.u32 %v3411, 7
        %v3413 = vsub.s32 %v3410, %v3412
        %v3414 = vrot.slane %v3394, %v3413
        %v3415 = vcombine.low %v3407, %v3407
        %v3416 = vcombine.low %v3414, %v3414
        %v3417 = vcombine.low %v3395, %v3395
        %v3419 = vunpack.c.l.s4 1983009808
        %v3420 = vunpack.c.0.s8 %v3419
        %v3421 = vlaneseq
        %v3422 = vshrl.u32 %v3421, 7
        %v3423 = vsub.s32 %v3420, %v3422
        %v3424 = vrot.slane %v3417, %v3423
        %v3426 = vunpack.c.l.s4 1983009808
        %v3427 = vunpack.c.0.s8 %v3426
        %v3428 = vlaneseq
        %v3429 = vshrl.u32 %v3428, 7
        %v3430 = vsub.s32 %v3427, %v3429
        %v3431 = vrot.slane %v3395, %v3430
        %v3432 = vcombine.low %v3424, %v3424
        %v3433 = vcombine.low %v3431, %v3431
        %v3434 = vcombine.low %v3396, %v3396
        %v3436 = vunpack.c.l.s4 1983009808
        %v3437 = vunpack.c.0.s8 %v3436
        %v3438 = vlaneseq
        %v3439 = vshrl.u32 %v3438, 7
        %v3440 = vsub.s32 %v3437, %v3439
        %v3441 = vrot.slane %v3434, %v3440
        %v3442 = vcombine.low %v3441, %v3441
        %3443 = vrot.lane.b32.xlu0 %v3415, 80
        %v3444 = vpop.permute.xlu0 %3443
        %3445 = vrot.lane.b32.xlu0 %v3407, 80
        %v3446 = vpop.permute.xlu0 %3445
        %3447 = vrot.lane.b32.xlu0 %v3416, 80
        %v3448 = vpop.permute.xlu0 %3447
        %3449 = vrot.lane.b32.xlu0 %v3414, 80
        %v3450 = vpop.permute.xlu0 %3449
        %3451 = vrot.lane.b32.xlu0 %v3432, 80
        %v3452 = vpop.permute.xlu0 %3451
        %3453 = vrot.lane.b32.xlu0 %v3424, 80
        %v3454 = vpop.permute.xlu0 %3453
        %3455 = vrot.lane.b32.xlu0 %v3433, 80
        %v3456 = vpop.permute.xlu0 %3455
        %3457 = vrot.lane.b32.xlu0 %v3431, 80
        %v3458 = vpop.permute.xlu0 %3457
        %3459 = vrot.lane.b32.xlu0 %v3442, 80
        %v3460 = vpop.permute.xlu0 %3459
        %v3461 = vsel %vm2991, %v3444, %v3446
        %v3462 = vsel %vm2991, %v3446, %v3448
        %v3463 = vsel %vm2991, %v3448, %v3450
        %v3464 = vsel %vm2991, %v3450, %v3452
        %v3465 = vsel %vm2991, %v3452, %v3454
        %v3466 = vsel %vm2991, %v3454, %v3456
        %v3467 = vsel %vm2991, %v3456, %v3458
        %v3468 = vsel %vm2991, %v3458, %v3460
        %3477 = vst [vmem:[#allocation3 + $0x200] sm:$0xc0] %v3461
        %3478 = vst [vmem:[#allocation3 + $0x208] sm:$0xc0] %v3462
        %3479 = vst [vmem:[#allocation3 + $0x210] sm:$0xc0] %v3463
        %3480 = vst [vmem:[#allocation3 + $0x218] sm:$0xc0] %v3464
        %3481 = vst [vmem:[#allocation3 + $0x220] sm:$0xc0] %v3465
        %3482 = vst [vmem:[#allocation3 + $0x228] sm:$0xc0] %v3466
        %3483 = vst [vmem:[#allocation3 + $0x230] sm:$0xc0] %v3467
        %3484 = vst [vmem:[#allocation3 + $0x238] sm:$0xc0] %v3468
        %v3485 = vld [vmem:[#allocation4] sm:$0xff]
        %v3486 = vld [vmem:[#allocation3] sm:$0xff]
        %v3487 = vld [vmem:[#allocation3 + $0x8] sm:$0xff]
        %v3488 = vld [vmem:[#allocation3 + $0x10] sm:$0xff]
        %v3489 = vld [vmem:[#allocation3 + $0x18] sm:$0xff]
        %v3490 = vld [vmem:[#allocation3 + $0x20] sm:$0xff]
        %v3491 = vld [vmem:[#allocation3 + $0x28] sm:$0xff]
        %v3492 = vld [vmem:[#allocation3 + $0x30] sm:$0xff]
        %v3493 = vld [vmem:[#allocation3 + $0x38] sm:$0xff]
        %v3494 = vld [vmem:[#allocation3 + $0x40] sm:$0xff]
        %v3495 = vld [vmem:[#allocation3 + $0x48] sm:$0xff]
        %v3496 = vld [vmem:[#allocation3 + $0x50] sm:$0xff]
        %v3497 = vld [vmem:[#allocation3 + $0x58] sm:$0xff]
        %v3498 = vld [vmem:[#allocation3 + $0x60] sm:$0xff]
        %v3499 = vld [vmem:[#allocation3 + $0x68] sm:$0xff]
        %v3500 = vld [vmem:[#allocation3 + $0x70] sm:$0xff]
        %v3501 = vld [vmem:[#allocation3 + $0x78] sm:$0xff]
        %v3502 = vld [vmem:[#allocation3 + $0x80] sm:$0xff]
        %v3503 = vld [vmem:[#allocation3 + $0x88] sm:$0xff]
        %v3504 = vld [vmem:[#allocation3 + $0x90] sm:$0xff]
        %v3505 = vld [vmem:[#allocation3 + $0x98] sm:$0xff]
        %v3506 = vld [vmem:[#allocation3 + $0xa0] sm:$0xff]
        %v3507 = vld [vmem:[#allocation3 + $0xa8] sm:$0xff]
        %v3508 = vld [vmem:[#allocation3 + $0xb0] sm:$0xff]
        %v3509 = vld [vmem:[#allocation3 + $0xb8] sm:$0xff]
        %v3510 = vld [vmem:[#allocation3 + $0xc0] sm:$0xff]
        %v3511 = vld [vmem:[#allocation3 + $0xc8] sm:$0xff]
        %v3512 = vld [vmem:[#allocation3 + $0xd0] sm:$0xff]
        %v3513 = vld [vmem:[#allocation3 + $0xd8] sm:$0xff]
        %v3514 = vld [vmem:[#allocation3 + $0xe0] sm:$0xff]
        %v3515 = vld [vmem:[#allocation3 + $0xe8] sm:$0xff]
        %v3516 = vld [vmem:[#allocation3 + $0xf0] sm:$0xff]
        %v3517 = vld [vmem:[#allocation3 + $0xf8] sm:$0xff]
        %v3518 = vld [vmem:[#allocation3 + $0x100] sm:$0xff]
        %v3519 = vld [vmem:[#allocation3 + $0x108] sm:$0xff]
        %v3520 = vld [vmem:[#allocation3 + $0x110] sm:$0xff]
        %v3521 = vld [vmem:[#allocation3 + $0x118] sm:$0xff]
        %v3522 = vld [vmem:[#allocation3 + $0x120] sm:$0xff]
        %v3523 = vld [vmem:[#allocation3 + $0x128] sm:$0xff]
        %v3524 = vld [vmem:[#allocation3 + $0x130] sm:$0xff]
        %v3525 = vld [vmem:[#allocation3 + $0x138] sm:$0xff]
        %v3526 = vld [vmem:[#allocation3 + $0x140] sm:$0xff]
        %v3527 = vld [vmem:[#allocation3 + $0x148] sm:$0xff]
        %v3528 = vld [vmem:[#allocation3 + $0x150] sm:$0xff]
        %v3529 = vld [vmem:[#allocation3 + $0x158] sm:$0xff]
        %v3530 = vld [vmem:[#allocation3 + $0x160] sm:$0xff]
        %v3531 = vld [vmem:[#allocation3 + $0x168] sm:$0xff]
        %v3532 = vld [vmem:[#allocation3 + $0x170] sm:$0xff]
        %v3533 = vld [vmem:[#allocation3 + $0x178] sm:$0xff]
        %v3534 = vld [vmem:[#allocation3 + $0x180] sm:$0xff]
        %v3535 = vld [vmem:[#allocation3 + $0x188] sm:$0xff]
        %v3536 = vld [vmem:[#allocation3 + $0x190] sm:$0xff]
        %v3537 = vld [vmem:[#allocation3 + $0x198] sm:$0xff]
        %v3538 = vld [vmem:[#allocation3 + $0x1a0] sm:$0xff]
        %v3539 = vld [vmem:[#allocation3 + $0x1a8] sm:$0xff]
        %v3540 = vld [vmem:[#allocation3 + $0x1b0] sm:$0xff]
        %v3541 = vld [vmem:[#allocation3 + $0x1b8] sm:$0xff]
        %v3542 = vld [vmem:[#allocation3 + $0x1c0] sm:$0xff]
        %v3543 = vld [vmem:[#allocation3 + $0x1c8] sm:$0xff]
        %v3544 = vld [vmem:[#allocation3 + $0x1d0] sm:$0xff]
        %v3545 = vld [vmem:[#allocation3 + $0x1d8] sm:$0xff]
        %v3546 = vld [vmem:[#allocation3 + $0x1e0] sm:$0xff]
        %v3547 = vld [vmem:[#allocation3 + $0x1e8] sm:$0xff]
        %v3548 = vld [vmem:[#allocation3 + $0x1f0] sm:$0xff]
        %v3549 = vld [vmem:[#allocation3 + $0x1f8] sm:$0xff]
        %v3550 = vld [vmem:[#allocation3 + $0x200] sm:$0xff]
        %v3551 = vld [vmem:[#allocation3 + $0x208] sm:$0xff]
        %v3552 = vld [vmem:[#allocation3 + $0x210] sm:$0xff]
        %v3553 = vld [vmem:[#allocation3 + $0x218] sm:$0xff]
        %v3554 = vld [vmem:[#allocation3 + $0x220] sm:$0xff]
        %v3555 = vld [vmem:[#allocation3 + $0x228] sm:$0xff]
        %v3556 = vld [vmem:[#allocation3 + $0x230] sm:$0xff]
        %v3557 = vld [vmem:[#allocation3 + $0x238] sm:$0xff]
        %v3558 = vld [vmem:[#allocation3 + $0x240] sm:$0xff]
        %v3559 = vld [vmem:[#allocation3 + $0x248] sm:$0xff]
        %v3560 = vld [vmem:[#allocation3 + $0x250] sm:$0xff]
        %v3561 = vld [vmem:[#allocation3 + $0x258] sm:$0xff]
        %v3562 = vld [vmem:[#allocation3 + $0x260] sm:$0xff]
        %v3563 = vld [vmem:[#allocation3 + $0x268] sm:$0xff]
        %v3564 = vld [vmem:[#allocation3 + $0x270] sm:$0xff]
        %v3565 = vld [vmem:[#allocation3 + $0x278] sm:$0xff]
        %v3566 = vld [vmem:[#allocation3 + $0x280] sm:$0xff]
        %v3567 = vld [vmem:[#allocation3 + $0x288] sm:$0xff]
        %v3568 = vld [vmem:[#allocation3 + $0x290] sm:$0xff]
        %v3569 = vld [vmem:[#allocation3 + $0x298] sm:$0xff]
        %v3570 = vld [vmem:[#allocation3 + $0x2a0] sm:$0xff]
        %v3571 = vld [vmem:[#allocation3 + $0x2a8] sm:$0xff]
        %v3572 = vld [vmem:[#allocation3 + $0x2b0] sm:$0xff]
        %v3573 = vld [vmem:[#allocation3 + $0x2b8] sm:$0xff]
        %v3574 = vld [vmem:[#allocation3 + $0x2c0] sm:$0xff]
        %v3575 = vld [vmem:[#allocation3 + $0x2c8] sm:$0xff]
        %v3576 = vld [vmem:[#allocation3 + $0x2d0] sm:$0xff]
        %v3577 = vld [vmem:[#allocation3 + $0x2d8] sm:$0xff]
        %v3578 = vld [vmem:[#allocation3 + $0x2e0] sm:$0xff]
        %v3579 = vld [vmem:[#allocation3 + $0x2e8] sm:$0xff]
        %v3580 = vld [vmem:[#allocation3 + $0x2f0] sm:$0xff]
        %v3581 = vld [vmem:[#allocation3 + $0x2f8] sm:$0xff]
        %v3582 = vld [vmem:[#allocation3 + $0x300] sm:$0xff]
        %v3583 = vld [vmem:[#allocation3 + $0x308] sm:$0xff]
        %v3584 = vld [vmem:[#allocation3 + $0x310] sm:$0xff]
        %v3585 = vld [vmem:[#allocation3 + $0x318] sm:$0xff]
        %v3586 = vld [vmem:[#allocation3 + $0x320] sm:$0xff]
        %v3587 = vld [vmem:[#allocation3 + $0x328] sm:$0xff]
        %v3588 = vld [vmem:[#allocation3 + $0x330] sm:$0xff]
        %v3589 = vld [vmem:[#allocation3 + $0x338] sm:$0xff]
        %v3590 = vld [vmem:[#allocation3 + $0x340] sm:$0xff]
        %v3591 = vld [vmem:[#allocation3 + $0x348] sm:$0xff]
        %v3592 = vld [vmem:[#allocation3 + $0x350] sm:$0xff]
        %v3593 = vld [vmem:[#allocation3 + $0x358] sm:$0xff]
        %v3594 = vld [vmem:[#allocation3 + $0x360] sm:$0xff]
        %v3595 = vld [vmem:[#allocation3 + $0x368] sm:$0xff]
        %v3596 = vld [vmem:[#allocation3 + $0x370] sm:$0xff]
        %v3597 = vld [vmem:[#allocation3 + $0x378] sm:$0xff]
        %v3598 = vld [vmem:[#allocation3 + $0x380] sm:$0xff]
        %v3599 = vld [vmem:[#allocation3 + $0x388] sm:$0xff]
        %v3600 = vld [vmem:[#allocation3 + $0x390] sm:$0xff]
        %v3601 = vld [vmem:[#allocation3 + $0x398] sm:$0xff]
        %v3602 = vld [vmem:[#allocation3 + $0x3a0] sm:$0xff]
        %v3603 = vld [vmem:[#allocation3 + $0x3a8] sm:$0xff]
        %v3604 = vld [vmem:[#allocation3 + $0x3b0] sm:$0xff]
        %v3605 = vld [vmem:[#allocation3 + $0x3b8] sm:$0xff]
        %v3606 = vld [vmem:[#allocation3 + $0x3c0] sm:$0xff]
        %v3607 = vld [vmem:[#allocation3 + $0x3c8] sm:$0xff]
        %v3608 = vld [vmem:[#allocation3 + $0x3d0] sm:$0xff]
        %v3609 = vld [vmem:[#allocation3 + $0x3d8] sm:$0xff]
        %v3610 = vld [vmem:[#allocation3 + $0x3e0] sm:$0xff]
        %v3611 = vld [vmem:[#allocation3 + $0x3e8] sm:$0xff]
        %v3612 = vld [vmem:[#allocation3 + $0x3f0] sm:$0xff]
        %v3613 = vld [vmem:[#allocation3 + $0x3f8] sm:$0xff]
        %v3614 = vld [vmem:[%s2] sm:$0xff]
        %3616 = vset.pattern.permute.xlu0 0
        %3617 = vperm.xlu0 %3616, %v3614
        %v3618 = vpop.permute.xlu0 %3617
        %v3621 = vunpack.c.l.b16 %v3485
        %v3622 = vunpack.c.h.b16 %v3485
        %v3623 = vpack.c.b16 %v3621, %v3621
        %v3624 = vpack.c.b16 %v3622, %v3622
        %3627 = vmatprep.subr.bf16.mxu0 %v3487
        %3628 = vmatpush1.bf16.msra.mxu0 %v3486
        %3629 = vmatprep.subr.bf16.mxu0 %v3495
        %3630 = vmatpush1.bf16.msra.mxu0 %v3494
        %3631 = vmatprep.subr.bf16.mxu0 %v3503
        %3632 = vmatpush1.bf16.msra.mxu0 %v3502
        %3633 = vmatprep.subr.bf16.mxu0 %v3511
        %3634 = vmatpush1.bf16.msra.mxu0 %v3510
        %3635 = vmatprep.subr.bf16.mxu0 %v3519
        %3636 = vmatpush1.bf16.msra.mxu0 %v3518
        %3637 = vmatprep.subr.bf16.mxu0 %v3527
        %3638 = vmatpush1.bf16.msra.mxu0 %v3526
        %3639 = vmatprep.subr.bf16.mxu0 %v3535
        %3640 = vmatpush1.bf16.msra.mxu0 %v3534
        %3641 = vmatprep.subr.bf16.mxu0 %v3543
        %3642 = vmatpush1.bf16.msra.mxu0 %v3542
        %3643 = vmatprep.subr.bf16.mxu0 %v3551
        %3644 = vmatpush1.bf16.msra.mxu0 %v3550
        %3645 = vmatprep.subr.bf16.mxu0 %v3559
        %3646 = vmatpush1.bf16.msra.mxu0 %v3558
        %3647 = vmatprep.subr.bf16.mxu0 %v3567
        %3648 = vmatpush1.bf16.msra.mxu0 %v3566
        %3649 = vmatprep.subr.bf16.mxu0 %v3575
        %3650 = vmatpush1.bf16.msra.mxu0 %v3574
        %3651 = vmatprep.subr.bf16.mxu0 %v3583
        %3652 = vmatpush1.bf16.msra.mxu0 %v3582
        %3653 = vmatprep.subr.bf16.mxu0 %v3591
        %3654 = vmatpush1.bf16.msra.mxu0 %v3590
        %3655 = vmatprep.subr.bf16.mxu0 %v3599
        %3656 = vmatpush1.bf16.msra.mxu0 %v3598
        %3657 = vmatprep.subr.bf16.mxu0 %v3607
        %3658 = vmatpush1.bf16.msra.mxu0 %v3606
        %3659 = vmatprep.mubr.bf16.mxu0 %v3624
        %3660 = vmatmul.mubr.bf16.gmra.mrb[0].mxu0 %v3623
        %v3661 = vpop.f32.mrb[0].mxu0
        %v3662 = vadd.f32 %v3618, %v3661
        %v3663 = vpop.f32.mrb[0].mxu0
        %v3664 = vadd.f32 %v3618, %v3663
        %v3665 = vpop.f32.mrb[0].mxu0
        %v3666 = vpop.f32.mrb[0].mxu0
        %3667 = vdwg.mxu0
        %3668 = vmatprep.subr.bf16.mxu0 %v3489
        %3669 = vmatpush1.bf16.msra.mxu0 %v3488
        %3670 = vmatprep.subr.bf16.mxu0 %v3497
        %3671 = vmatpush1.bf16.msra.mxu0 %v3496
        %3672 = vmatprep.subr.bf16.mxu0 %v3505
        %3673 = vmatpush1.bf16.msra.mxu0 %v3504
        %3674 = vmatprep.subr.bf16.mxu0 %v3513
        %3675 = vmatpush1.bf16.msra.mxu0 %v3512
        %3676 = vmatprep.subr.bf16.mxu0 %v3521
        %3677 = vmatpush1.bf16.msra.mxu0 %v3520
        %3678 = vmatprep.subr.bf16.mxu0 %v3529
        %3679 = vmatpush1.bf16.msra.mxu0 %v3528
        %3680 = vmatprep.subr.bf16.mxu0 %v3537
        %3681 = vmatpush1.bf16.msra.mxu0 %v3536
        %3682 = vmatprep.subr.bf16.mxu0 %v3545
        %3683 = vmatpush1.bf16.msra.mxu0 %v3544
        %3684 = vmatprep.subr.bf16.mxu0 %v3553
        %3685 = vmatpush1.bf16.msra.mxu0 %v3552
        %3686 = vmatprep.subr.bf16.mxu0 %v3561
        %3687 = vmatpush1.bf16.msra.mxu0 %v3560
        %3688 = vmatprep.subr.bf16.mxu0 %v3569
        %3689 = vmatpush1.bf16.msra.mxu0 %v3568
        %3690 = vmatprep.subr.bf16.mxu0 %v3577
        %3691 = vmatpush1.bf16.msra.mxu0 %v3576
        %3692 = vmatprep.subr.bf16.mxu0 %v3585
        %3693 = vmatpush1.bf16.msra.mxu0 %v3584
        %3694 = vmatprep.subr.bf16.mxu0 %v3593
        %3695 = vmatpush1.bf16.msra.mxu0 %v3592
        %3696 = vmatprep.subr.bf16.mxu0 %v3601
        %3697 = vmatpush1.bf16.msra.mxu0 %v3600
        %3698 = vmatprep.subr.bf16.mxu0 %v3609
        %3699 = vmatpush1.bf16.msra.mxu0 %v3608
        %3700 = vmatprep.mubr.bf16.mxu0 %v3624
        %3701 = vmatmul.mubr.bf16.gmra.mrb[0].mxu0 %v3623
        %v3702 = vpop.f32.mrb[0].mxu0
        %v3703 = vadd.f32 %v3618, %v3702
        %v3704 = vpop.f32.mrb[0].mxu0
        %v3705 = vadd.f32 %v3618, %v3704
        %v3706 = vpop.f32.mrb[0].mxu0
        %v3707 = vpop.f32.mrb[0].mxu0
        %3708 = vdwg.mxu0
        %3709 = vmatprep.subr.bf16.mxu0 %v3491
        %3710 = vmatpush1.bf16.msra.mxu0 %v3490
        %3711 = vmatprep.subr.bf16.mxu0 %v3499
        %3712 = vmatpush1.bf16.msra.mxu0 %v3498
        %3713 = vmatprep.subr.bf16.mxu0 %v3507
        %3714 = vmatpush1.bf16.msra.mxu0 %v3506
        %3715 = vmatprep.subr.bf16.mxu0 %v3515
        %3716 = vmatpush1.bf16.msra.mxu0 %v3514
        %3717 = vmatprep.subr.bf16.mxu0 %v3523
        %3718 = vmatpush1.bf16.msra.mxu0 %v3522
        %3719 = vmatprep.subr.bf16.mxu0 %v3531
        %3720 = vmatpush1.bf16.msra.mxu0 %v3530
        %3721 = vmatprep.subr.bf16.mxu0 %v3539
        %3722 = vmatpush1.bf16.msra.mxu0 %v3538
        %3723 = vmatprep.subr.bf16.mxu0 %v3547
        %3724 = vmatpush1.bf16.msra.mxu0 %v3546
        %3725 = vmatprep.subr.bf16.mxu0 %v3555
        %3726 = vmatpush1.bf16.msra.mxu0 %v3554
        %3727 = vmatprep.subr.bf16.mxu0 %v3563
        %3728 = vmatpush1.bf16.msra.mxu0 %v3562
        %3729 = vmatprep.subr.bf16.mxu0 %v3571
        %3730 = vmatpush1.bf16.msra.mxu0 %v3570
        %3731 = vmatprep.subr.bf16.mxu0 %v3579
        %3732 = vmatpush1.bf16.msra.mxu0 %v3578
        %3733 = vmatprep.subr.bf16.mxu0 %v3587
        %3734 = vmatpush1.bf16.msra.mxu0 %v3586
        %3735 = vmatprep.subr.bf16.mxu0 %v3595
        %3736 = vmatpush1.bf16.msra.mxu0 %v3594
        %3737 = vmatprep.subr.bf16.mxu0 %v3603
        %3738 = vmatpush1.bf16.msra.mxu0 %v3602
        %3739 = vmatprep.subr.bf16.mxu0 %v3611
        %3740 = vmatpush1.bf16.msra.mxu0 %v3610
        %3741 = vmatprep.mubr.bf16.mxu0 %v3624
        %3742 = vmatmul.mubr.bf16.gmra.mrb[0].mxu0 %v3623
        %v3743 = vpop.f32.mrb[0].mxu0
        %v3744 = vadd.f32 %v3618, %v3743
        %v3745 = vpop.f32.mrb[0].mxu0
        %v3746 = vadd.f32 %v3618, %v3745
        %v3747 = vpop.f32.mrb[0].mxu0
        %v3748 = vpop.f32.mrb[0].mxu0
        %3749 = vdwg.mxu0
        %3750 = vmatprep.subr.bf16.mxu0 %v3493
        %3751 = vmatpush1.bf16.msra.mxu0 %v3492
        %3752 = vmatprep.subr.bf16.mxu0 %v3501
        %3753 = vmatpush1.bf16.msra.mxu0 %v3500
        %3754 = vmatprep.subr.bf16.mxu0 %v3509
        %3755 = vmatpush1.bf16.msra.mxu0 %v3508
        %3756 = vmatprep.subr.bf16.mxu0 %v3517
        %3757 = vmatpush1.bf16.msra.mxu0 %v3516
        %3758 = vmatprep.subr.bf16.mxu0 %v3525
        %3759 = vmatpush1.bf16.msra.mxu0 %v3524
        %3760 = vmatprep.subr.bf16.mxu0 %v3533
        %3761 = vmatpush1.bf16.msra.mxu0 %v3532
        %3762 = vmatprep.subr.bf16.mxu0 %v3541
        %3763 = vmatpush1.bf16.msra.mxu0 %v3540
        %3764 = vmatprep.subr.bf16.mxu0 %v3549
        %3765 = vmatpush1.bf16.msra.mxu0 %v3548
        %3766 = vmatprep.subr.bf16.mxu0 %v3557
        %3767 = vmatpush1.bf16.msra.mxu0 %v3556
        %3768 = vmatprep.subr.bf16.mxu0 %v3565
        %3769 = vmatpush1.bf16.msra.mxu0 %v3564
        %3770 = vmatprep.subr.bf16.mxu0 %v3573
        %3771 = vmatpush1.bf16.msra.mxu0 %v3572
        %3772 = vmatprep.subr.bf16.mxu0 %v3581
        %3773 = vmatpush1.bf16.msra.mxu0 %v3580
        %3774 = vmatprep.subr.bf16.mxu0 %v3589
        %3775 = vmatpush1.bf16.msra.mxu0 %v3588
        %3776 = vmatprep.subr.bf16.mxu0 %v3597
        %3777 = vmatpush1.bf16.msra.mxu0 %v3596
        %3778 = vmatprep.subr.bf16.mxu0 %v3605
        %3779 = vmatpush1.bf16.msra.mxu0 %v3604
        %3780 = vmatprep.subr.bf16.mxu0 %v3613
        %3781 = vmatpush1.bf16.msra.mxu0 %v3612
        %3782 = vmatprep.mubr.bf16.mxu0 %v3624
        %3783 = vmatmul.mubr.bf16.gmra.mrb[0].mxu0 %v3623
        %v3784 = vpop.f32.mrb[0].mxu0
        %v3785 = vadd.f32 %v3618, %v3784
        %v3786 = vpop.f32.mrb[0].mxu0
        %v3787 = vadd.f32 %v3618, %v3786
        %v3788 = vpop.f32.mrb[0].mxu0
        %v3789 = vpop.f32.mrb[0].mxu0
        %3790 = vdwg.mxu0
        %3791 = vst [vmem:[%s176] sm:$0xff] %v3662
        %3792 = vst [vmem:[%s176 + $0x8] sm:$0xff] %v3664
        %3793 = vst [vmem:[%s176 + $0x10] sm:$0xff] %v3703
        %3794 = vst [vmem:[%s176 + $0x18] sm:$0xff] %v3705
        %3795 = vst [vmem:[%s176 + $0x20] sm:$0xff] %v3744
        %3796 = vst [vmem:[%s176 + $0x28] sm:$0xff] %v3746
        %3797 = vst [vmem:[%s176 + $0x30] sm:$0xff] %v3785
        %3798 = vst [vmem:[%s176 + $0x38] sm:$0xff] %v3787
        %s3799 = sand.u32 %s94, 1
        %s3800 = scalar_lea.sflag [#allocation6], %s3799
        %s3801 = sand.u32 %s94, 1
        %s3802 = smul.addr %s3801, 64
        %s3803 = scalar_lea.vmem [#allocation7], %s3802
        // Predicated region
        $region37: #{tpu_custom_call.1} parent=31 // pred_check
          %p3804 = pneg %p104
        $region38: #{tpu_custom_call.1} parent=31 // pred_check_branch
          %3806 = sbr.rel (%p3804) target = $region40
        $region39: #{tpu_custom_call.1} parent=31 // pred_region
          %s3808 = ssub.s32 1024, 1024
          %3809 = vsyncadd %s3800, %s3808
          %s3810 = smul.addr %s18, 8
          %s3811 = smul.addr %s3810, 128
          %s3812 = scalar_lea.hbm %s3, %s3811
          %s3814 = sshll.u32 %s3803, 4
          %s3815 = int_to_ptr.vmem [resolvable:$true] %s3814
          %3817 = dma.vmem_to_hbm [thread:$0]  %s3815, 1024, %s3812, %s3800
        $region40: #{tpu_custom_call.1} parent=31 // pred_fallthru
          _
      $region32: #{tpu_custom_call.1} parent=5 // pred_fallthru
        _
      %p3818 = scmp.le.s32.totalorder 2, %s13
      // Predicated region
      $region41: #{tpu_custom_call.1} parent=5 // pred_check
        %p3819 = pneg %p3818
      $region42: #{tpu_custom_call.1} parent=5 // pred_check_branch
        %3821 = sbr.rel (%p3819) target = $region44
      $region43: #{tpu_custom_call.1} parent=5 // pred_region
        %s3822 = ssub.s32 %s13, 2
        // Predicated region
        $region45: #{tpu_custom_call.1} parent=43 // pred_check
          %p3823 = pneg %p110
        $region46: #{tpu_custom_call.1} parent=43 // pred_check_branch
          %3825 = sbr.rel (%p3823) target = $region48
        $region47: #{tpu_custom_call.1} parent=43 // pred_region
          %s3826 = sand.u32 %s95, 1
          %s3827 = scalar_lea.sflag [#allocation6], %s3826
          %s3828 = sand.u32 %s95, 1
          %s3829 = smul.addr %s3828, 64
          %s3830 = scalar_lea.vmem [#allocation7], %s3829
          %3831 = dma.done %s3827, 1024
        $region48: #{tpu_custom_call.1} parent=43 // pred_fallthru
          _
      $region44: #{tpu_custom_call.1} parent=5 // pred_fallthru
        _
    $region6: #{tpu_custom_call.1} parent=1 // loop_footer
      %s17 = sadd.s32 1, %s13
    $region7: #{tpu_custom_call.1} parent=1 // loop_footer_branch
      %12 = sbr.rel target = $region3
    $region8: #{tpu_custom_call.1} parent=1 // loop_exit
      _
    %3832 = vsyncpa [#allocation5], 1
    %s3833 = scalar_lea.sflag [#allocation5], 1
    %3834 = vsyncpa %s3833, 1
    %3835 = vsyncpa [#allocation6], 1
    %s3836 = scalar_lea.sflag [#allocation6], 1
    %3837 = vsyncpa %s3836, 1

</llo_original>
